<compile_context>
chip_gen: v5e
topology: v5e:2x2
jax: 0.10.0
libtpu: 0.0.40
codegen_flags: <defaults>
</compile_context>

<pallas_src>
import functools

import jax
import jax.numpy as jnp
from jax.experimental import pallas as pl
from jax.experimental.pallas import tpu as pltpu

LANE = 128


def _round_up(x, m):
    return (x + m - 1) // m * m


# ------------------------------ Pallas kernel ------------------------------ #

def _fused_vgg_block_kernel(num_convs, H, W, x_ref, w_ref, b_ref, o_ref,
                            pad_ref, act_ref):
    """Fused [3x3 conv + ReLU] x num_convs followed by 2x2/2 max-pool.

    Processes ONE batch element per grid step.

      x_ref    (1, H, W, C)            channel-padded NHWC input
      w_ref    (num_convs*9, C, C)     tap-stacked weights, tap = kh*3 + kw
      b_ref    (num_convs, 1, C)       channel-padded biases
      o_ref    (1, H/2, W/2, C)        pooled output
      pad_ref  (H+2, W+2, C)  scratch  zero-halo activation buffer
      act_ref  (H*W, C)       scratch  last conv output (pool source)
    """
    C = x_ref.shape[-1]
    H2, W2 = H // 2, W // 2

    # Zero halo + drop the image into the interior.
    pad_ref[...] = jnp.zeros_like(pad_ref)
    pad_ref[1:H + 1, 1:W + 1, :] = x_ref[0]

    act = None
    for layer in range(num_convs):
        # Bias-initialized accumulator.
        acc = jnp.broadcast_to(b_ref[layer], (H * W, C)).astype(jnp.float32)
        # 3x3 conv as 9 channel-contraction matmuls, K = C = 128 on the MXU.
        for kh in range(3):
            for kw in range(3):
                patch = pad_ref[kh:kh + H, kw:kw + W, :]            # (H, W, C)
                acc = acc + jnp.dot(patch.reshape(H * W, C),
                                    w_ref[layer * 9 + kh * 3 + kw],
                                    preferred_element_type=jnp.float32)
        act = jnp.maximum(acc, 0.0)                                 # ReLU
        if layer + 1 < num_convs:
            # Re-pad for the next conv; halo stays zero.
            pad_ref[1:H + 1, 1:W + 1, :] = act.reshape(H, W, C)

    # --------------- fused 2x2 / stride-2 max pool (in VMEM) --------------- #
    # Rows of `act` are ordered (h, w) with w fastest, so the W-direction pool
    # pairs adjacent sublane rows: read them back with stride-2 ref loads.
    act_ref[...] = act
    w_even = act_ref[pl.ds(0, H * W2, stride=2), :]                 # (H*W2, C)
    w_odd = act_ref[pl.ds(1, H * W2, stride=2), :]                  # (H*W2, C)
    wmax = jnp.maximum(w_even, w_odd)                               # rows (h, w2)
    # Layout-preserving split: (H*W2, C) -> (H2, 2, W2, C); max over the h-pair.
    wmax4 = wmax.reshape(H2, 2, W2, C)
    o_ref[0] = jnp.maximum(wmax4[:, 0], wmax4[:, 1]).astype(o_ref.dtype)


# ------------------------------ JAX wrapper -------------------------------- #

def _pad_last(a, target):
    pad = target - a.shape[-1]
    if pad == 0:
        return a
    return jnp.pad(a, [(0, 0)] * (a.ndim - 1) + [(0, pad)])


def my_vgg_block(x_nchw, params):
    """Pallas TPU implementation of MyVGGBlock.forward. x: NCHW float32."""
    N, Cin, H, W = x_nchw.shape
    assert H % 2 == 0 and W % 2 == 0, "MaxPool2d(2,2) path assumes even H, W"
    num_convs = len(params)
    Cout = params[-1][1].shape[0]
    H2, W2 = H // 2, W // 2

    # Common lane-dense channel padding so the VMEM scratch is reusable per layer.
    chans = [Cin, Cout]
    for w_hwio, _ in params:
        chans += [w_hwio.shape[2], w_hwio.shape[3]]
    C = _round_up(max(chans), LANE)

    x = jnp.transpose(x_nchw, (0, 2, 3, 1)).astype(jnp.float32)     # NCHW -> NHWC
    x = _pad_last(x, C)

    # Stack all layers' weights / biases into single channel-padded arrays.
    w_all = jnp.zeros((num_convs * 9, C, C), jnp.float32)
    b_all = jnp.zeros((num_convs, 1, C), jnp.float32)
    for i, (w_hwio, b) in enumerate(params):
        ci, co = w_hwio.shape[2], w_hwio.shape[3]
        w_all = w_all.at[i * 9:(i + 1) * 9, :ci, :co].set(
            w_hwio.reshape(9, ci, co).astype(jnp.float32))
        b_all = b_all.at[i, 0, :co].set(b.astype(jnp.float32))

    flops = 2 * N * num_convs * H * W * 9 * C * C
    bytes_accessed = 4 * (x.size + int(w_all.size) + int(b_all.size)
                          + N * H2 * W2 * C)

    out = pl.pallas_call(
        functools.partial(_fused_vgg_block_kernel, num_convs, H, W),
        out_shape=jax.ShapeDtypeStruct((N, H2, W2, C), jnp.float32),
        grid=(N,),
        in_specs=[
            pl.BlockSpec((1, H, W, C), lambda n: (n, 0, 0, 0)),
            pl.BlockSpec((num_convs * 9, C, C), lambda n: (0, 0, 0)),
            pl.BlockSpec((num_convs, 1, C), lambda n: (0, 0, 0)),
        ],
        out_specs=pl.BlockSpec((1, H2, W2, C), lambda n: (n, 0, 0, 0)),
        scratch_shapes=[
            pltpu.VMEM((H + 2, W + 2, C), jnp.float32),   # padded activation
            pltpu.VMEM((H * W, C), jnp.float32),          # pool source
        ],
        compiler_params=pltpu.CompilerParams(
            dimension_semantics=("parallel",),
        ),
        cost_estimate=pl.CostEstimate(
            flops=flops, transcendentals=0, bytes_accessed=bytes_accessed),
    )(x, w_all, b_all)

    out = out[..., :Cout]                                           # drop channel pad
    return jnp.transpose(out, (0, 3, 1, 2))                         # NHWC -> NCHW


# --------------------------- reference (plain JAX) -------------------------- #

def reference_vgg_block(x_nchw, params):
    x = x_nchw
    for w_hwio, b in params:
        w_oihw = jnp.transpose(w_hwio, (3, 2, 0, 1))
        x = jax.lax.conv_general_dilated(
            x, w_oihw, window_strides=(1, 1), padding="SAME",
            dimension_numbers=("NCHW", "OIHW", "NCHW"))
        x = jnp.maximum(x + b.reshape(1, -1, 1, 1), 0.0)
    x = jax.lax.reduce_window(x, -jnp.inf, jax.lax.max,
                              (1, 1, 2, 2), (1, 1, 2, 2), "VALID")
    return x


# ---------------------------------- main ----------------------------------- #

if __name__ == "__main__":
    # Module config: MyVGGBlock(in_channels=4, out_channels=8, num_convs=2)
    in_channels, out_channels, num_convs = 4, 8, 2
    N, H, W = 2, 16, 16

    key = jax.random.PRNGKey(0)
    key, xkey = jax.random.split(key)

    params = []
    cin = in_channels
    for _ in range(num_convs):
        key, kw_, kb_ = jax.random.split(key, 3)
        w = 0.1 * jax.random.normal(kw_, (3, 3, cin, out_channels), jnp.float32)
        b = 0.05 * jax.random.normal(kb_, (out_channels,), jnp.float32)
        params.append((w, b))
        cin = out_channels

    x = jax.random.normal(xkey, (N, in_channels, H, W), jnp.float32)   # NCHW

    out = jax.jit(my_vgg_block)(x, params)
    out = jax.block_until_ready(out)

    ref = reference_vgg_block(x, params)
    assert out.shape == (N, out_channels, H // 2, W // 2), out.shape
    assert jnp.allclose(out, ref, atol=1e-3, rtol=1e-3), "mismatch vs reference"

    print("KERNEL_OK")
</pallas_src>

<mosaic_0001>
module attributes {stable_mosaic.version = 11 : i64} {
  func.func @_fused_vgg_block_kernel(%arg0: i32, %arg1: memref<1x16x16x128xf32, #tpu.memory_space<vmem>>, %arg2: memref<18x128x128xf32, #tpu.memory_space<vmem>>, %arg3: memref<2x1x128xf32, #tpu.memory_space<vmem>>, %arg4: memref<1x8x8x128xf32, #tpu.memory_space<vmem>>, %arg5: memref<18x18x128xf32, #tpu.memory_space<vmem>>, %arg6: memref<256x128xf32, #tpu.memory_space<vmem>>) attributes {dimension_semantics = [#tpu.dimension_semantics<parallel>], iteration_bounds = array<i64: 2>, scalar_prefetch = 0 : i64, scratch_operands = 2 : i64, tpu.core_type = #tpu.core_type<tc>, window_params = [{transform_indices = @transform_0, window_bounds = array<i64: 1, 16, 16, 128>}, {pipeline_mode = #tpu.pipeline_mode<synchronous>, transform_indices = @transform_1, window_bounds = array<i64: 18, 128, 128>}, {pipeline_mode = #tpu.pipeline_mode<synchronous>, transform_indices = @transform_2, window_bounds = array<i64: 2, 1, 128>}, {transform_indices = @transform_3, window_bounds = array<i64: 1, 8, 8, 128>}]} {
    %cst = arith.constant 0.000000e+00 : f32
    %0 = vector.broadcast %cst : f32 to vector<18x18x128xf32>
    %c0 = arith.constant 0 : index
    %c0_0 = arith.constant 0 : index
    %c0_1 = arith.constant 0 : index
    %1 = vector.load %arg5[%c0, %c0_0, %c0_1] : memref<18x18x128xf32, #tpu.memory_space<vmem>>, vector<18x18x128xf32>
    tpu.vector_store %arg5[%c0, %c0_0, %c0_1], %0 {strides = array<i32>} : memref<18x18x128xf32, #tpu.memory_space<vmem>>, vector<18x18x128xf32>,
    %c0_2 = arith.constant 0 : index
    %c0_3 = arith.constant 0 : index
    %c0_4 = arith.constant 0 : index
    %c0_5 = arith.constant 0 : index
    %2 = vector.load %arg1[%c0_2, %c0_3, %c0_4, %c0_5] : memref<1x16x16x128xf32, #tpu.memory_space<vmem>>, vector<1x16x16x128xf32>
    %3 = vector.shape_cast %2 : vector<1x16x16x128xf32> to vector<16x16x128xf32>
    %c1 = arith.constant 1 : index
    %c1_6 = arith.constant 1 : index
    %c0_7 = arith.constant 0 : index
    %4 = vector.load %arg5[%c1, %c1_6, %c0_7] : memref<18x18x128xf32, #tpu.memory_space<vmem>>, vector<16x16x128xf32>
    tpu.vector_store %arg5[%c1, %c1_6, %c0_7], %3 {strides = array<i32>} : memref<18x18x128xf32, #tpu.memory_space<vmem>>, vector<16x16x128xf32>,
    %c0_8 = arith.constant 0 : index
    %c0_9 = arith.constant 0 : index
    %c0_10 = arith.constant 0 : index
    %5 = vector.load %arg3[%c0_8, %c0_9, %c0_10] : memref<2x1x128xf32, #tpu.memory_space<vmem>>, vector<1x1x128xf32>
    %6 = vector.shape_cast %5 : vector<1x1x128xf32> to vector<1x128xf32>
    %7 = vector.shape_cast %6 : vector<1x128xf32> to vector<1x128xf32>
    %8 = vector.broadcast %7 : vector<1x128xf32> to vector<256x128xf32>
    %c0_11 = arith.constant 0 : index
    %c0_12 = arith.constant 0 : index
    %c0_13 = arith.constant 0 : index
    %9 = vector.load %arg5[%c0_11, %c0_12, %c0_13] : memref<18x18x128xf32, #tpu.memory_space<vmem>>, vector<16x16x128xf32>
    %10 = vector.shape_cast %9 : vector<16x16x128xf32> to vector<256x128xf32>
    %c0_14 = arith.constant 0 : index
    %c0_15 = arith.constant 0 : index
    %c0_16 = arith.constant 0 : index
    %11 = vector.load %arg2[%c0_14, %c0_15, %c0_16] : memref<18x128x128xf32, #tpu.memory_space<vmem>>, vector<1x128x128xf32>
    %12 = vector.shape_cast %11 : vector<1x128x128xf32> to vector<128x128xf32>
    %cst_17 = arith.constant dense<0.000000e+00> : vector<256x128xf32>
    %13 = tpu.matmul %10, %12, %cst_17 {dimension_numbers = #tpu.dot_dimension_numbers<[1], [0], [0], [1], [0, 0, 1, 1], [], []>} : vector<256x128xf32>, vector<128x128xf32>, vector<256x128xf32> -> vector<256x128xf32>
    %14 = arith.addf %8, %13 : vector<256x128xf32>
    %c0_18 = arith.constant 0 : index
    %c1_19 = arith.constant 1 : index
    %c0_20 = arith.constant 0 : index
    %15 = vector.load %arg5[%c0_18, %c1_19, %c0_20] : memref<18x18x128xf32, #tpu.memory_space<vmem>>, vector<16x16x128xf32>
    %16 = vector.shape_cast %15 : vector<16x16x128xf32> to vector<256x128xf32>
    %c1_21 = arith.constant 1 : index
    %c0_22 = arith.constant 0 : index
    %c0_23 = arith.constant 0 : index
    %17 = vector.load %arg2[%c1_21, %c0_22, %c0_23] : memref<18x128x128xf32, #tpu.memory_space<vmem>>, vector<1x128x128xf32>
    %18 = vector.shape_cast %17 : vector<1x128x128xf32> to vector<128x128xf32>
    %cst_24 = arith.constant dense<0.000000e+00> : vector<256x128xf32>
    %19 = tpu.matmul %16, %18, %cst_24 {dimension_numbers = #tpu.dot_dimension_numbers<[1], [0], [0], [1], [0, 0, 1, 1], [], []>} : vector<256x128xf32>, vector<128x128xf32>, vector<256x128xf32> -> vector<256x128xf32>
    %20 = arith.addf %14, %19 : vector<256x128xf32>
    %c0_25 = arith.constant 0 : index
    %c2 = arith.constant 2 : index
    %c0_26 = arith.constant 0 : index
    %21 = vector.load %arg5[%c0_25, %c2, %c0_26] : memref<18x18x128xf32, #tpu.memory_space<vmem>>, vector<16x16x128xf32>
    %22 = vector.shape_cast %21 : vector<16x16x128xf32> to vector<256x128xf32>
    %c2_27 = arith.constant 2 : index
    %c0_28 = arith.constant 0 : index
    %c0_29 = arith.constant 0 : index
    %23 = vector.load %arg2[%c2_27, %c0_28, %c0_29] : memref<18x128x128xf32, #tpu.memory_space<vmem>>, vector<1x128x128xf32>
    %24 = vector.shape_cast %23 : vector<1x128x128xf32> to vector<128x128xf32>
    %cst_30 = arith.constant dense<0.000000e+00> : vector<256x128xf32>
    %25 = tpu.matmul %22, %24, %cst_30 {dimension_numbers = #tpu.dot_dimension_numbers<[1], [0], [0], [1], [0, 0, 1, 1], [], []>} : vector<256x128xf32>, vector<128x128xf32>, vector<256x128xf32> -> vector<256x128xf32>
    %26 = arith.addf %20, %25 : vector<256x128xf32>
    %c1_31 = arith.constant 1 : index
    %c0_32 = arith.constant 0 : index
    %c0_33 = arith.constant 0 : index
    %27 = vector.load %arg5[%c1_31, %c0_32, %c0_33] : memref<18x18x128xf32, #tpu.memory_space<vmem>>, vector<16x16x128xf32>
    %28 = vector.shape_cast %27 : vector<16x16x128xf32> to vector<256x128xf32>
    %c3 = arith.constant 3 : index
    %c0_34 = arith.constant 0 : index
    %c0_35 = arith.constant 0 : index
    %29 = vector.load %arg2[%c3, %c0_34, %c0_35] : memref<18x128x128xf32, #tpu.memory_space<vmem>>, vector<1x128x128xf32>
    %30 = vector.shape_cast %29 : vector<1x128x128xf32> to vector<128x128xf32>
    %cst_36 = arith.constant dense<0.000000e+00> : vector<256x128xf32>
    %31 = tpu.matmul %28, %30, %cst_36 {dimension_numbers = #tpu.dot_dimension_numbers<[1], [0], [0], [1], [0, 0, 1, 1], [], []>} : vector<256x128xf32>, vector<128x128xf32>, vector<256x128xf32> -> vector<256x128xf32>
    %32 = arith.addf %26, %31 : vector<256x128xf32>
    %c1_37 = arith.constant 1 : index
    %c1_38 = arith.constant 1 : index
    %c0_39 = arith.constant 0 : index
    %33 = vector.load %arg5[%c1_37, %c1_38, %c0_39] : memref<18x18x128xf32, #tpu.memory_space<vmem>>, vector<16x16x128xf32>
    %34 = vector.shape_cast %33 : vector<16x16x128xf32> to vector<256x128xf32>
    %c4 = arith.constant 4 : index
    %c0_40 = arith.constant 0 : index
    %c0_41 = arith.constant 0 : index
    %35 = vector.load %arg2[%c4, %c0_40, %c0_41] : memref<18x128x128xf32, #tpu.memory_space<vmem>>, vector<1x128x128xf32>
    %36 = vector.shape_cast %35 : vector<1x128x128xf32> to vector<128x128xf32>
    %cst_42 = arith.constant dense<0.000000e+00> : vector<256x128xf32>
    %37 = tpu.matmul %34, %36, %cst_42 {dimension_numbers = #tpu.dot_dimension_numbers<[1], [0], [0], [1], [0, 0, 1, 1], [], []>} : vector<256x128xf32>, vector<128x128xf32>, vector<256x128xf32> -> vector<256x128xf32>
    %38 = arith.addf %32, %37 : vector<256x128xf32>
    %c1_43 = arith.constant 1 : index
    %c2_44 = arith.constant 2 : index
    %c0_45 = arith.constant 0 : index
    %39 = vector.load %arg5[%c1_43, %c2_44, %c0_45] : memref<18x18x128xf32, #tpu.memory_space<vmem>>, vector<16x16x128xf32>
    %40 = vector.shape_cast %39 : vector<16x16x128xf32> to vector<256x128xf32>
    %c5 = arith.constant 5 : index
    %c0_46 = arith.constant 0 : index
    %c0_47 = arith.constant 0 : index
    %41 = vector.load %arg2[%c5, %c0_46, %c0_47] : memref<18x128x128xf32, #tpu.memory_space<vmem>>, vector<1x128x128xf32>
    %42 = vector.shape_cast %41 : vector<1x128x128xf32> to vector<128x128xf32>
    %cst_48 = arith.constant dense<0.000000e+00> : vector<256x128xf32>
    %43 = tpu.matmul %40, %42, %cst_48 {dimension_numbers = #tpu.dot_dimension_numbers<[1], [0], [0], [1], [0, 0, 1, 1], [], []>} : vector<256x128xf32>, vector<128x128xf32>, vector<256x128xf32> -> vector<256x128xf32>
    %44 = arith.addf %38, %43 : vector<256x128xf32>
    %c2_49 = arith.constant 2 : index
    %c0_50 = arith.constant 0 : index
    %c0_51 = arith.constant 0 : index
    %45 = vector.load %arg5[%c2_49, %c0_50, %c0_51] : memref<18x18x128xf32, #tpu.memory_space<vmem>>, vector<16x16x128xf32>
    %46 = vector.shape_cast %45 : vector<16x16x128xf32> to vector<256x128xf32>
    %c6 = arith.constant 6 : index
    %c0_52 = arith.constant 0 : index
    %c0_53 = arith.constant 0 : index
    %47 = vector.load %arg2[%c6, %c0_52, %c0_53] : memref<18x128x128xf32, #tpu.memory_space<vmem>>, vector<1x128x128xf32>
    %48 = vector.shape_cast %47 : vector<1x128x128xf32> to vector<128x128xf32>
    %cst_54 = arith.constant dense<0.000000e+00> : vector<256x128xf32>
    %49 = tpu.matmul %46, %48, %cst_54 {dimension_numbers = #tpu.dot_dimension_numbers<[1], [0], [0], [1], [0, 0, 1, 1], [], []>} : vector<256x128xf32>, vector<128x128xf32>, vector<256x128xf32> -> vector<256x128xf32>
    %50 = arith.addf %44, %49 : vector<256x128xf32>
    %c2_55 = arith.constant 2 : index
    %c1_56 = arith.constant 1 : index
    %c0_57 = arith.constant 0 : index
    %51 = vector.load %arg5[%c2_55, %c1_56, %c0_57] : memref<18x18x128xf32, #tpu.memory_space<vmem>>, vector<16x16x128xf32>
    %52 = vector.shape_cast %51 : vector<16x16x128xf32> to vector<256x128xf32>
    %c7 = arith.constant 7 : index
    %c0_58 = arith.constant 0 : index
    %c0_59 = arith.constant 0 : index
    %53 = vector.load %arg2[%c7, %c0_58, %c0_59] : memref<18x128x128xf32, #tpu.memory_space<vmem>>, vector<1x128x128xf32>
    %54 = vector.shape_cast %53 : vector<1x128x128xf32> to vector<128x128xf32>
    %cst_60 = arith.constant dense<0.000000e+00> : vector<256x128xf32>
    %55 = tpu.matmul %52, %54, %cst_60 {dimension_numbers = #tpu.dot_dimension_numbers<[1], [0], [0], [1], [0, 0, 1, 1], [], []>} : vector<256x128xf32>, vector<128x128xf32>, vector<256x128xf32> -> vector<256x128xf32>
    %56 = arith.addf %50, %55 : vector<256x128xf32>
    %c2_61 = arith.constant 2 : index
    %c2_62 = arith.constant 2 : index
    %c0_63 = arith.constant 0 : index
    %57 = vector.load %arg5[%c2_61, %c2_62, %c0_63] : memref<18x18x128xf32, #tpu.memory_space<vmem>>, vector<16x16x128xf32>
    %58 = vector.shape_cast %57 : vector<16x16x128xf32> to vector<256x128xf32>
    %c8 = arith.constant 8 : index
    %c0_64 = arith.constant 0 : index
    %c0_65 = arith.constant 0 : index
    %59 = vector.load %arg2[%c8, %c0_64, %c0_65] : memref<18x128x128xf32, #tpu.memory_space<vmem>>, vector<1x128x128xf32>
    %60 = vector.shape_cast %59 : vector<1x128x128xf32> to vector<128x128xf32>
    %cst_66 = arith.constant dense<0.000000e+00> : vector<256x128xf32>
    %61 = tpu.matmul %58, %60, %cst_66 {dimension_numbers = #tpu.dot_dimension_numbers<[1], [0], [0], [1], [0, 0, 1, 1], [], []>} : vector<256x128xf32>, vector<128x128xf32>, vector<256x128xf32> -> vector<256x128xf32>
    %62 = arith.addf %56, %61 : vector<256x128xf32>
    %cst_67 = arith.constant 0.000000e+00 : f32
    %63 = vector.broadcast %cst_67 : f32 to vector<256x128xf32>
    %64 = arith.maximumf %62, %63 : vector<256x128xf32>
    %65 = vector.shape_cast %64 : vector<256x128xf32> to vector<16x16x128xf32>
    %c1_68 = arith.constant 1 : index
    %c1_69 = arith.constant 1 : index
    %c0_70 = arith.constant 0 : index
    %66 = vector.load %arg5[%c1_68, %c1_69, %c0_70] : memref<18x18x128xf32, #tpu.memory_space<vmem>>, vector<16x16x128xf32>
    tpu.vector_store %arg5[%c1_68, %c1_69, %c0_70], %65 {strides = array<i32>} : memref<18x18x128xf32, #tpu.memory_space<vmem>>, vector<16x16x128xf32>,
    %c1_71 = arith.constant 1 : index
    %c0_72 = arith.constant 0 : index
    %c0_73 = arith.constant 0 : index
    %67 = vector.load %arg3[%c1_71, %c0_72, %c0_73] : memref<2x1x128xf32, #tpu.memory_space<vmem>>, vector<1x1x128xf32>
    %68 = vector.shape_cast %67 : vector<1x1x128xf32> to vector<1x128xf32>
    %69 = vector.shape_cast %68 : vector<1x128xf32> to vector<1x128xf32>
    %70 = vector.broadcast %69 : vector<1x128xf32> to vector<256x128xf32>
    %c0_74 = arith.constant 0 : index
    %c0_75 = arith.constant 0 : index
    %c0_76 = arith.constant 0 : index
    %71 = vector.load %arg5[%c0_74, %c0_75, %c0_76] : memref<18x18x128xf32, #tpu.memory_space<vmem>>, vector<16x16x128xf32>
    %72 = vector.shape_cast %71 : vector<16x16x128xf32> to vector<256x128xf32>
    %c9 = arith.constant 9 : index
    %c0_77 = arith.constant 0 : index
    %c0_78 = arith.constant 0 : index
    %73 = vector.load %arg2[%c9, %c0_77, %c0_78] : memref<18x128x128xf32, #tpu.memory_space<vmem>>, vector<1x128x128xf32>
    %74 = vector.shape_cast %73 : vector<1x128x128xf32> to vector<128x128xf32>
    %cst_79 = arith.constant dense<0.000000e+00> : vector<256x128xf32>
    %75 = tpu.matmul %72, %74, %cst_79 {dimension_numbers = #tpu.dot_dimension_numbers<[1], [0], [0], [1], [0, 0, 1, 1], [], []>} : vector<256x128xf32>, vector<128x128xf32>, vector<256x128xf32> -> vector<256x128xf32>
    %76 = arith.addf %70, %75 : vector<256x128xf32>
    %c0_80 = arith.constant 0 : index
    %c1_81 = arith.constant 1 : index
    %c0_82 = arith.constant 0 : index
    %77 = vector.load %arg5[%c0_80, %c1_81, %c0_82] : memref<18x18x128xf32, #tpu.memory_space<vmem>>, vector<16x16x128xf32>
    %78 = vector.shape_cast %77 : vector<16x16x128xf32> to vector<256x128xf32>
    %c10 = arith.constant 10 : index
    %c0_83 = arith.constant 0 : index
    %c0_84 = arith.constant 0 : index
    %79 = vector.load %arg2[%c10, %c0_83, %c0_84] : memref<18x128x128xf32, #tpu.memory_space<vmem>>, vector<1x128x128xf32>
    %80 = vector.shape_cast %79 : vector<1x128x128xf32> to vector<128x128xf32>
    %cst_85 = arith.constant dense<0.000000e+00> : vector<256x128xf32>
    %81 = tpu.matmul %78, %80, %cst_85 {dimension_numbers = #tpu.dot_dimension_numbers<[1], [0], [0], [1], [0, 0, 1, 1], [], []>} : vector<256x128xf32>, vector<128x128xf32>, vector<256x128xf32> -> vector<256x128xf32>
    %82 = arith.addf %76, %81 : vector<256x128xf32>
    %c0_86 = arith.constant 0 : index
    %c2_87 = arith.constant 2 : index
    %c0_88 = arith.constant 0 : index
    %83 = vector.load %arg5[%c0_86, %c2_87, %c0_88] : memref<18x18x128xf32, #tpu.memory_space<vmem>>, vector<16x16x128xf32>
    %84 = vector.shape_cast %83 : vector<16x16x128xf32> to vector<256x128xf32>
    %c11 = arith.constant 11 : index
    %c0_89 = arith.constant 0 : index
    %c0_90 = arith.constant 0 : index
    %85 = vector.load %arg2[%c11, %c0_89, %c0_90] : memref<18x128x128xf32, #tpu.memory_space<vmem>>, vector<1x128x128xf32>
    %86 = vector.shape_cast %85 : vector<1x128x128xf32> to vector<128x128xf32>
    %cst_91 = arith.constant dense<0.000000e+00> : vector<256x128xf32>
    %87 = tpu.matmul %84, %86, %cst_91 {dimension_numbers = #tpu.dot_dimension_numbers<[1], [0], [0], [1], [0, 0, 1, 1], [], []>} : vector<256x128xf32>, vector<128x128xf32>, vector<256x128xf32> -> vector<256x128xf32>
    %88 = arith.addf %82, %87 : vector<256x128xf32>
    %c1_92 = arith.constant 1 : index
    %c0_93 = arith.constant 0 : index
    %c0_94 = arith.constant 0 : index
    %89 = vector.load %arg5[%c1_92, %c0_93, %c0_94] : memref<18x18x128xf32, #tpu.memory_space<vmem>>, vector<16x16x128xf32>
    %90 = vector.shape_cast %89 : vector<16x16x128xf32> to vector<256x128xf32>
    %c12 = arith.constant 12 : index
    %c0_95 = arith.constant 0 : index
    %c0_96 = arith.constant 0 : index
    %91 = vector.load %arg2[%c12, %c0_95, %c0_96] : memref<18x128x128xf32, #tpu.memory_space<vmem>>, vector<1x128x128xf32>
    %92 = vector.shape_cast %91 : vector<1x128x128xf32> to vector<128x128xf32>
    %cst_97 = arith.constant dense<0.000000e+00> : vector<256x128xf32>
    %93 = tpu.matmul %90, %92, %cst_97 {dimension_numbers = #tpu.dot_dimension_numbers<[1], [0], [0], [1], [0, 0, 1, 1], [], []>} : vector<256x128xf32>, vector<128x128xf32>, vector<256x128xf32> -> vector<256x128xf32>
    %94 = arith.addf %88, %93 : vector<256x128xf32>
    %c1_98 = arith.constant 1 : index
    %c1_99 = arith.constant 1 : index
    %c0_100 = arith.constant 0 : index
    %95 = vector.load %arg5[%c1_98, %c1_99, %c0_100] : memref<18x18x128xf32, #tpu.memory_space<vmem>>, vector<16x16x128xf32>
    %96 = vector.shape_cast %95 : vector<16x16x128xf32> to vector<256x128xf32>
    %c13 = arith.constant 13 : index
    %c0_101 = arith.constant 0 : index
    %c0_102 = arith.constant 0 : index
    %97 = vector.load %arg2[%c13, %c0_101, %c0_102] : memref<18x128x128xf32, #tpu.memory_space<vmem>>, vector<1x128x128xf32>
    %98 = vector.shape_cast %97 : vector<1x128x128xf32> to vector<128x128xf32>
    %cst_103 = arith.constant dense<0.000000e+00> : vector<256x128xf32>
    %99 = tpu.matmul %96, %98, %cst_103 {dimension_numbers = #tpu.dot_dimension_numbers<[1], [0], [0], [1], [0, 0, 1, 1], [], []>} : vector<256x128xf32>, vector<128x128xf32>, vector<256x128xf32> -> vector<256x128xf32>
    %100 = arith.addf %94, %99 : vector<256x128xf32>
    %c1_104 = arith.constant 1 : index
    %c2_105 = arith.constant 2 : index
    %c0_106 = arith.constant 0 : index
    %101 = vector.load %arg5[%c1_104, %c2_105, %c0_106] : memref<18x18x128xf32, #tpu.memory_space<vmem>>, vector<16x16x128xf32>
    %102 = vector.shape_cast %101 : vector<16x16x128xf32> to vector<256x128xf32>
    %c14 = arith.constant 14 : index
    %c0_107 = arith.constant 0 : index
    %c0_108 = arith.constant 0 : index
    %103 = vector.load %arg2[%c14, %c0_107, %c0_108] : memref<18x128x128xf32, #tpu.memory_space<vmem>>, vector<1x128x128xf32>
    %104 = vector.shape_cast %103 : vector<1x128x128xf32> to vector<128x128xf32>
    %cst_109 = arith.constant dense<0.000000e+00> : vector<256x128xf32>
    %105 = tpu.matmul %102, %104, %cst_109 {dimension_numbers = #tpu.dot_dimension_numbers<[1], [0], [0], [1], [0, 0, 1, 1], [], []>} : vector<256x128xf32>, vector<128x128xf32>, vector<256x128xf32> -> vector<256x128xf32>
    %106 = arith.addf %100, %105 : vector<256x128xf32>
    %c2_110 = arith.constant 2 : index
    %c0_111 = arith.constant 0 : index
    %c0_112 = arith.constant 0 : index
    %107 = vector.load %arg5[%c2_110, %c0_111, %c0_112] : memref<18x18x128xf32, #tpu.memory_space<vmem>>, vector<16x16x128xf32>
    %108 = vector.shape_cast %107 : vector<16x16x128xf32> to vector<256x128xf32>
    %c15 = arith.constant 15 : index
    %c0_113 = arith.constant 0 : index
    %c0_114 = arith.constant 0 : index
    %109 = vector.load %arg2[%c15, %c0_113, %c0_114] : memref<18x128x128xf32, #tpu.memory_space<vmem>>, vector<1x128x128xf32>
    %110 = vector.shape_cast %109 : vector<1x128x128xf32> to vector<128x128xf32>
    %cst_115 = arith.constant dense<0.000000e+00> : vector<256x128xf32>
    %111 = tpu.matmul %108, %110, %cst_115 {dimension_numbers = #tpu.dot_dimension_numbers<[1], [0], [0], [1], [0, 0, 1, 1], [], []>} : vector<256x128xf32>, vector<128x128xf32>, vector<256x128xf32> -> vector<256x128xf32>
    %112 = arith.addf %106, %111 : vector<256x128xf32>
    %c2_116 = arith.constant 2 : index
    %c1_117 = arith.constant 1 : index
    %c0_118 = arith.constant 0 : index
    %113 = vector.load %arg5[%c2_116, %c1_117, %c0_118] : memref<18x18x128xf32, #tpu.memory_space<vmem>>, vector<16x16x128xf32>
    %114 = vector.shape_cast %113 : vector<16x16x128xf32> to vector<256x128xf32>
    %c16 = arith.constant 16 : index
    %c0_119 = arith.constant 0 : index
    %c0_120 = arith.constant 0 : index
    %115 = vector.load %arg2[%c16, %c0_119, %c0_120] : memref<18x128x128xf32, #tpu.memory_space<vmem>>, vector<1x128x128xf32>
    %116 = vector.shape_cast %115 : vector<1x128x128xf32> to vector<128x128xf32>
    %cst_121 = arith.constant dense<0.000000e+00> : vector<256x128xf32>
    %117 = tpu.matmul %114, %116, %cst_121 {dimension_numbers = #tpu.dot_dimension_numbers<[1], [0], [0], [1], [0, 0, 1, 1], [], []>} : vector<256x128xf32>, vector<128x128xf32>, vector<256x128xf32> -> vector<256x128xf32>
    %118 = arith.addf %112, %117 : vector<256x128xf32>
    %c2_122 = arith.constant 2 : index
    %c2_123 = arith.constant 2 : index
    %c0_124 = arith.constant 0 : index
    %119 = vector.load %arg5[%c2_122, %c2_123, %c0_124] : memref<18x18x128xf32, #tpu.memory_space<vmem>>, vector<16x16x128xf32>
    %120 = vector.shape_cast %119 : vector<16x16x128xf32> to vector<256x128xf32>
    %c17 = arith.constant 17 : index
    %c0_125 = arith.constant 0 : index
    %c0_126 = arith.constant 0 : index
    %121 = vector.load %arg2[%c17, %c0_125, %c0_126] : memref<18x128x128xf32, #tpu.memory_space<vmem>>, vector<1x128x128xf32>
    %122 = vector.shape_cast %121 : vector<1x128x128xf32> to vector<128x128xf32>
    %cst_127 = arith.constant dense<0.000000e+00> : vector<256x128xf32>
    %123 = tpu.matmul %120, %122, %cst_127 {dimension_numbers = #tpu.dot_dimension_numbers<[1], [0], [0], [1], [0, 0, 1, 1], [], []>} : vector<256x128xf32>, vector<128x128xf32>, vector<256x128xf32> -> vector<256x128xf32>
    %124 = arith.addf %118, %123 : vector<256x128xf32>
    %cst_128 = arith.constant 0.000000e+00 : f32
    %125 = vector.broadcast %cst_128 : f32 to vector<256x128xf32>
    %126 = arith.maximumf %124, %125 : vector<256x128xf32>
    %c0_129 = arith.constant 0 : index
    %c0_130 = arith.constant 0 : index
    %127 = vector.load %arg6[%c0_129, %c0_130] : memref<256x128xf32, #tpu.memory_space<vmem>>, vector<256x128xf32>
    tpu.vector_store %arg6[%c0_129, %c0_130], %126 {strides = array<i32>} : memref<256x128xf32, #tpu.memory_space<vmem>>, vector<256x128xf32>,
    %c0_131 = arith.constant 0 : index
    %c0_132 = arith.constant 0 : index
    %128 = tpu.strided_load %arg6[%c0_131, %c0_132] {strides = array<i32: 2, 1>} : memref<256x128xf32, #tpu.memory_space<vmem>>, vector<128x128xf32>
    %c1_133 = arith.constant 1 : index
    %c0_134 = arith.constant 0 : index
    %129 = tpu.strided_load %arg6[%c1_133, %c0_134] {strides = array<i32: 2, 1>} : memref<256x128xf32, #tpu.memory_space<vmem>>, vector<128x128xf32>
    %130 = arith.maximumf %128, %129 : vector<128x128xf32>
    %131 = vector.shape_cast %130 : vector<128x128xf32> to vector<8x2x8x128xf32>
    %132 = vector.extract_strided_slice %131 {offsets = [0, 0, 0, 0], sizes = [8, 1, 8, 128], strides = [1, 1, 1, 1]} : vector<8x2x8x128xf32> to vector<8x1x8x128xf32>
    %133 = vector.shape_cast %132 : vector<8x1x8x128xf32> to vector<8x8x128xf32>
    %134 = vector.extract_strided_slice %131 {offsets = [0, 1, 0, 0], sizes = [8, 1, 8, 128], strides = [1, 1, 1, 1]} : vector<8x2x8x128xf32> to vector<8x1x8x128xf32>
    %135 = vector.shape_cast %134 : vector<8x1x8x128xf32> to vector<8x8x128xf32>
    %136 = arith.maximumf %133, %135 : vector<8x8x128xf32>
    %c0_135 = arith.constant 0 : index
    %c0_136 = arith.constant 0 : index
    %c0_137 = arith.constant 0 : index
    %c0_138 = arith.constant 0 : index
    %137 = vector.load %arg4[%c0_135, %c0_136, %c0_137, %c0_138] : memref<1x8x8x128xf32, #tpu.memory_space<vmem>>, vector<1x8x8x128xf32>
    %138 = vector.shape_cast %137 : vector<1x8x8x128xf32> to vector<8x8x128xf32>
    %139 = vector.shape_cast %136 : vector<8x8x128xf32> to vector<1x8x8x128xf32>
    tpu.vector_store %arg4[%c0_135, %c0_136, %c0_137, %c0_138], %139 {strides = array<i32>} : memref<1x8x8x128xf32, #tpu.memory_space<vmem>>, vector<1x8x8x128xf32>,
    return
  }
  func.func @transform_0(%arg0: i32) -> (i32, i32, i32, i32) {
    %c0_i32 = arith.constant 0 : i32
    %c0_i32_0 = arith.constant 0 : i32
    %c0_i32_1 = arith.constant 0 : i32
    %c0_i32_2 = arith.constant 0 : i32
    return %arg0, %c0_i32, %c0_i32_0, %c0_i32_1 : i32, i32, i32, i32
  }
  func.func @transform_1(%arg0: i32) -> (i32, i32, i32) {
    %c0_i32 = arith.constant 0 : i32
    %c0_i32_0 = arith.constant 0 : i32
    %c0_i32_1 = arith.constant 0 : i32
    %c0_i32_2 = arith.constant 0 : i32
    return %c0_i32, %c0_i32_0, %c0_i32_1 : i32, i32, i32
  }
  func.func @transform_2(%arg0: i32) -> (i32, i32, i32) {
    %c0_i32 = arith.constant 0 : i32
    %c0_i32_0 = arith.constant 0 : i32
    %c0_i32_1 = arith.constant 0 : i32
    %c0_i32_2 = arith.constant 0 : i32
    return %c0_i32, %c0_i32_0, %c0_i32_1 : i32, i32, i32
  }
  func.func @transform_3(%arg0: i32) -> (i32, i32, i32, i32) {
    %c0_i32 = arith.constant 0 : i32
    %c0_i32_0 = arith.constant 0 : i32
    %c0_i32_1 = arith.constant 0 : i32
    %c0_i32_2 = arith.constant 0 : i32
    return %arg0, %c0_i32, %c0_i32_0, %c0_i32_1 : i32, i32, i32, i32
  }
}

</mosaic_0001>

<llo_original>
// kernel: my_vgg_block.1
$region0: #{my_vgg_block.1}
  #allocation0 [shape = 'u32[]', space=smem, size = 0x4, offset = 0x4, fixed_abs, tag = 'smem constant byte address 0x4 - core index']
  #allocation1 [shape = 'u32[72,128]{1,0:T(1,128)}', space=vmem, size = 0x9000, scoped, tag = 'internal scratch']
  #allocation2 [shape = 'f32[18,18,128]{2,1,0:T(8,128)}', space=vmem, size = 0x36000, scoped, tag = 'scratch operand']
  #allocation3 [shape = 'f32[256,128]{1,0:T(8,128)}', space=vmem, size = 0x20000, scoped, tag = 'scratch operand']
  %s0 = inlined_call_operand.vmem [shape: f32[2,16,16,128], index: 0, kind: input, shape index: {}]
  %s1 = inlined_call_operand.vmem [shape: f32[18,128,128], index: 1, kind: input, shape index: {}]
  %s2 = inlined_call_operand.vmem [shape: f32[2,1,128], index: 2, kind: input, shape index: {}]
  %s3 = inlined_call_operand.vmem [shape: f32[2,8,8,128], index: 3, kind: output, shape index: {}]
  %s4 = sld [smem:[#allocation0]]
  $region45: #{my_vgg_block.1} parent=0
    _
  %s6 = ssub.s32 1, %s4
  %s7 = scalar_select 0, %s6, %s4
  loop: start=0, step=1, limit=4
  $region2: #{my_vgg_block.1} parent=0 // loop_pre_header
    _
  $region3: #{my_vgg_block.1} parent=0 // loop_header
    %s9 = sphi 0, %s13
    %p10 = scmp.ge.s32.totalorder %s9, 4
    %s19 = sphi 0, %s21
    %s22 = sphi 0, %s19
    %s23 = sphi 0, %s22
    %s39 = sphi 0, %s23
    %s43 = sphi 0, %s43
    %s45 = sphi 0, %s43
    %s46 = sphi 0, %s45
    %s60 = sphi 0, %s46
    %s64 = sphi 0, %s64
    %s66 = sphi 0, %s64
    %s67 = sphi 0, %s66
    %s81 = sphi 0, %s67
    %s87 = sphi 0, %s89
    %s90 = sphi 0, %s87
    %s91 = sphi 0, %s90
    %s107 = sphi 0, %s91
  $region4: #{my_vgg_block.1} parent=0 // loop_header_branch
    %12 = sbr.rel (%p10) target = $region8
  $region5: #{my_vgg_block.1} parent=0 // loop_body
    %s14 = ssub.s32 %s9, 1
    %s15 = ssub.s32 %s9, 2
    %s16 = sadd.s32 %s9, 1
    %s17 = ssub.s32 %s9, %s16
    %p18 = scmp.eq.s32.totalorder %s17, 0
    %s20 = sadd.s32 %s19, 1
    %s21 = scalar_select %p18, %s19, %s20
    %p24 = pneg %p18
    %p25 = scmp.eq.s32.totalorder %s9, 1
    %p26 = por %p24, %p25
    %p27 = scmp.ne.s32.totalorder %s19, %s22
    %p28 = scmp.eq.s32.totalorder %s9, 0
    %p29 = por %p27, %p28
    %p30 = scmp.ne.s32.totalorder %s19, %s22
    %p31 = scmp.eq.s32.totalorder %s14, 1
    %p32 = por %p30, %p31
    %p33 = scmp.ne.s32.totalorder %s22, %s23
    %p34 = scmp.eq.s32.totalorder %s14, 0
    %p35 = por %p33, %p34
    %p36 = scmp.ne.s32.totalorder %s22, %s23
    %p37 = scmp.eq.s32.totalorder %s15, 1
    %p38 = por %p36, %p37
    %p40 = scmp.ne.s32.totalorder %s23, %s39
    %p41 = scmp.eq.s32.totalorder %s15, 0
    %p42 = por %p40, %p41
    %s44 = sadd.s32 %s43, 1
    %p47 = scmp.eq.s32.totalorder %s9, 1
    %p48 = scmp.ne.s32.totalorder %s43, %s45
    %p49 = scmp.eq.s32.totalorder %s9, 0
    %p50 = por %p48, %p49
    %p51 = scmp.ne.s32.totalorder %s43, %s45
    %p52 = scmp.eq.s32.totalorder %s14, 1
    %p53 = por %p51, %p52
    %p54 = scmp.ne.s32.totalorder %s45, %s46
    %p55 = scmp.eq.s32.totalorder %s14, 0
    %p56 = por %p54, %p55
    %p57 = scmp.ne.s32.totalorder %s45, %s46
    %p58 = scmp.eq.s32.totalorder %s15, 1
    %p59 = por %p57, %p58
    %p61 = scmp.ne.s32.totalorder %s46, %s60
    %p62 = scmp.eq.s32.totalorder %s15, 0
    %p63 = por %p61, %p62
    %s65 = sadd.s32 %s64, 1
    %p68 = scmp.eq.s32.totalorder %s9, 1
    %p69 = scmp.ne.s32.totalorder %s64, %s66
    %p70 = scmp.eq.s32.totalorder %s9, 0
    %p71 = por %p69, %p70
    %p72 = scmp.ne.s32.totalorder %s64, %s66
    %p73 = scmp.eq.s32.totalorder %s14, 1
    %p74 = por %p72, %p73
    %p75 = scmp.ne.s32.totalorder %s66, %s67
    %p76 = scmp.eq.s32.totalorder %s14, 0
    %p77 = por %p75, %p76
    %p78 = scmp.ne.s32.totalorder %s66, %s67
    %p79 = scmp.eq.s32.totalorder %s15, 1
    %p80 = por %p78, %p79
    %p82 = scmp.ne.s32.totalorder %s67, %s81
    %p83 = scmp.eq.s32.totalorder %s15, 0
    %p84 = por %p82, %p83
    %s85 = ssub.s32 %s9, %s16
    %p86 = scmp.eq.s32.totalorder %s85, 0
    %s88 = sadd.s32 %s87, 1
    %s89 = scalar_select %p86, %s87, %s88
    %p92 = pneg %p86
    %p93 = scmp.eq.s32.totalorder %s9, 1
    %p94 = por %p92, %p93
    %p95 = scmp.ne.s32.totalorder %s87, %s90
    %p96 = scmp.eq.s32.totalorder %s9, 0
    %p97 = por %p95, %p96
    %p98 = scmp.ne.s32.totalorder %s87, %s90
    %p99 = scmp.eq.s32.totalorder %s14, 1
    %p100 = por %p98, %p99
    %p101 = scmp.ne.s32.totalorder %s90, %s91
    %p102 = scmp.eq.s32.totalorder %s14, 0
    %p103 = por %p101, %p102
    %p104 = scmp.ne.s32.totalorder %s90, %s91
    %p105 = scmp.eq.s32.totalorder %s15, 1
    %p106 = por %p104, %p105
    %p108 = scmp.ne.s32.totalorder %s91, %s107
    %p109 = scmp.eq.s32.totalorder %s15, 0
    %p110 = por %p108, %p109
    %p111 = scmp.le.s32.totalorder 1, %s9
    %p112 = scmp.lt.s32.totalorder %s9, 3
    %p113 = pnand %p111, %p112
    %p114 = pneg %p113
    // Predicated region
    $region9: #{my_vgg_block.1} parent=5 // pred_check
      _
    $region10: #{my_vgg_block.1} parent=5 // pred_check_branch
      %116 = sbr.rel (%p113) target = $region12
    $region11: #{my_vgg_block.1} parent=5 // pred_region
      %s117 = ssub.s32 %s9, 1
      // Predicated region
      $region13: #{my_vgg_block.1} parent=11 // pred_check
        %p118 = pneg %p56
      $region14: #{my_vgg_block.1} parent=11 // pred_check_branch
        %120 = sbr.rel (%p118) target = $region16
      $region15: #{my_vgg_block.1} parent=11 // pred_region
        _
      $region16: #{my_vgg_block.1} parent=11 // pred_fallthru
        _
      // Predicated region
      $region17: #{my_vgg_block.1} parent=11 // pred_check
        %p121 = pneg %p77
      $region18: #{my_vgg_block.1} parent=11 // pred_check_branch
        %123 = sbr.rel (%p121) target = $region20
      $region19: #{my_vgg_block.1} parent=11 // pred_region
        _
      $region20: #{my_vgg_block.1} parent=11 // pred_fallthru
        _
    $region12: #{my_vgg_block.1} parent=5 // pred_fallthru
      _
    %p124 = scmp.lt.s32.totalorder %s9, 2
    // Predicated region
    $region21: #{my_vgg_block.1} parent=5 // pred_check
      %p125 = pneg %p124
    $region22: #{my_vgg_block.1} parent=5 // pred_check_branch
      %127 = sbr.rel (%p125) target = $region24
    $region23: #{my_vgg_block.1} parent=5 // pred_region
      // Predicated region
      $region25: #{my_vgg_block.1} parent=23 // pred_check
        %p128 = pneg %p29
      $region26: #{my_vgg_block.1} parent=23 // pred_check_branch
        %130 = sbr.rel (%p128) target = $region28
      $region27: #{my_vgg_block.1} parent=23 // pred_region
        %p131 = scmp.lt.s32.totalorder %s9, 1
        %s132 = scalar_select %p131, %s9, 1
        %s133 = smul.addr %s132, 32
        %s134 = smul.addr %s133, 8
        %s135 = scalar_lea.vmem %s0, %s134
      $region28: #{my_vgg_block.1} parent=23 // pred_fallthru
        _
    $region24: #{my_vgg_block.1} parent=5 // pred_fallthru
      _
    %p136 = scmp.le.s32.totalorder 1, %s9
    %p137 = scmp.lt.s32.totalorder %s9, 3
    %p138 = pnand %p136, %p137
    %p139 = pneg %p138
    // Predicated region
    $region29: #{my_vgg_block.1} parent=5 // pred_check
      _
    $region30: #{my_vgg_block.1} parent=5 // pred_check_branch
      %141 = sbr.rel (%p138) target = $region32
    $region31: #{my_vgg_block.1} parent=5 // pred_region
      %s142 = ssub.s32 %s9, 1
      %p143 = scmp.lt.s32.totalorder %s14, 1
      %s144 = scalar_select %p143, %s14, 1
      %s145 = smul.addr %s144, 32
      %s146 = smul.addr %s145, 8
      %s147 = scalar_lea.vmem %s0, %s146
      %p148 = pneg %p35
      %p149 = pneg %p32
      %p150 = pneg %p56
      %p151 = pneg %p53
      %p152 = pneg %p77
      %p153 = pneg %p74
      %p154 = pneg %p103
      %p155 = pneg %p100
      %p156 = scmp.lt.s32.totalorder %s14, 1
      %s157 = scalar_select %p156, %s14, 1
      %s158 = smul.addr %s157, 8
      %s159 = smul.addr %s158, 8
      %s160 = scalar_lea.vmem %s3, %s159
      %p161 = scmp.lt.s32.totalorder %s14, 1
      %s162 = scalar_select %p161, %s14, 1
      %s163 = smul.addr %s162, 32
      %s164 = smul.addr %s163, 8
      %s165 = scalar_lea.vmem %s0, %s164
      %p166 = scmp.lt.s32.totalorder %s14, 1
      %s167 = scalar_select %p166, %s14, 1
      %s168 = smul.addr %s167, 8
      %s169 = smul.addr %s168, 8
      %s170 = scalar_lea.vmem %s3, %s169
      %171 = vst [vmem:[#allocation2] sm:$0xff] 0.0
      %172 = vst [vmem:[#allocation2 + $0x8] sm:$0xff] 0.0
      %173 = vst [vmem:[#allocation2 + $0x10] sm:$0x3] 0.0
      %174 = vst [vmem:[#allocation2 + $0x18] sm:$0xff] 0.0
      %175 = vst [vmem:[#allocation2 + $0x20] sm:$0xff] 0.0
      %176 = vst [vmem:[#allocation2 + $0x28] sm:$0x3] 0.0
      %177 = vst [vmem:[#allocation2 + $0x30] sm:$0xff] 0.0
      %178 = vst [vmem:[#allocation2 + $0x38] sm:$0xff] 0.0
      %179 = vst [vmem:[#allocation2 + $0x40] sm:$0x3] 0.0
      %180 = vst [vmem:[#allocation2 + $0x48] sm:$0xff] 0.0
      %181 = vst [vmem:[#allocation2 + $0x50] sm:$0xff] 0.0
      %182 = vst [vmem:[#allocation2 + $0x58] sm:$0x3] 0.0
      %183 = vst [vmem:[#allocation2 + $0x60] sm:$0xff] 0.0
      %184 = vst [vmem:[#allocation2 + $0x68] sm:$0xff] 0.0
      %185 = vst [vmem:[#allocation2 + $0x70] sm:$0x3] 0.0
      %186 = vst [vmem:[#allocation2 + $0x78] sm:$0xff] 0.0
      %187 = vst [vmem:[#allocation2 + $0x80] sm:$0xff] 0.0
      %188 = vst [vmem:[#allocation2 + $0x88] sm:$0x3] 0.0
      %189 = vst [vmem:[#allocation2 + $0x90] sm:$0xff] 0.0
      %190 = vst [vmem:[#allocation2 + $0x98] sm:$0xff] 0.0
      %191 = vst [vmem:[#allocation2 + $0xa0] sm:$0x3] 0.0
      %192 = vst [vmem:[#allocation2 + $0xa8] sm:$0xff] 0.0
      %193 = vst [vmem:[#allocation2 + $0xb0] sm:$0xff] 0.0
      %194 = vst [vmem:[#allocation2 + $0xb8] sm:$0x3] 0.0
      %195 = vst [vmem:[#allocation2 + $0xc0] sm:$0xff] 0.0
      %196 = vst [vmem:[#allocation2 + $0xc8] sm:$0xff] 0.0
      %197 = vst [vmem:[#allocation2 + $0xd0] sm:$0x3] 0.0
      %198 = vst [vmem:[#allocation2 + $0xd8] sm:$0xff] 0.0
      %199 = vst [vmem:[#allocation2 + $0xe0] sm:$0xff] 0.0
      %200 = vst [vmem:[#allocation2 + $0xe8] sm:$0x3] 0.0
      %201 = vst [vmem:[#allocation2 + $0xf0] sm:$0xff] 0.0
      %202 = vst [vmem:[#allocation2 + $0xf8] sm:$0xff] 0.0
      %203 = vst [vmem:[#allocation2 + $0x100] sm:$0x3] 0.0
      %204 = vst [vmem:[#allocation2 + $0x108] sm:$0xff] 0.0
      %205 = vst [vmem:[#allocation2 + $0x110] sm:$0xff] 0.0
      %206 = vst [vmem:[#allocation2 + $0x118] sm:$0x3] 0.0
      %207 = vst [vmem:[#allocation2 + $0x120] sm:$0xff] 0.0
      %208 = vst [vmem:[#allocation2 + $0x128] sm:$0xff] 0.0
      %209 = vst [vmem:[#allocation2 + $0x130] sm:$0x3] 0.0
      %210 = vst [vmem:[#allocation2 + $0x138] sm:$0xff] 0.0
      %211 = vst [vmem:[#allocation2 + $0x140] sm:$0xff] 0.0
      %212 = vst [vmem:[#allocation2 + $0x148] sm:$0x3] 0.0
      %213 = vst [vmem:[#allocation2 + $0x150] sm:$0xff] 0.0
      %214 = vst [vmem:[#allocation2 + $0x158] sm:$0xff] 0.0
      %215 = vst [vmem:[#allocation2 + $0x160] sm:$0x3] 0.0
      %216 = vst [vmem:[#allocation2 + $0x168] sm:$0xff] 0.0
      %217 = vst [vmem:[#allocation2 + $0x170] sm:$0xff] 0.0
      %218 = vst [vmem:[#allocation2 + $0x178] sm:$0x3] 0.0
      %219 = vst [vmem:[#allocation2 + $0x180] sm:$0xff] 0.0
      %220 = vst [vmem:[#allocation2 + $0x188] sm:$0xff] 0.0
      %221 = vst [vmem:[#allocation2 + $0x190] sm:$0x3] 0.0
      %222 = vst [vmem:[#allocation2 + $0x198] sm:$0xff] 0.0
      %223 = vst [vmem:[#allocation2 + $0x1a0] sm:$0xff] 0.0
      %224 = vst [vmem:[#allocation2 + $0x1a8] sm:$0x3] 0.0
      %v225 = vld [vmem:[%s165] sm:$0xff]
      %v226 = vld [vmem:[%s165 + $0x8] sm:$0xff]
      %v227 = vld [vmem:[%s165 + $0x10] sm:$0xff]
      %v228 = vld [vmem:[%s165 + $0x18] sm:$0xff]
      %v229 = vld [vmem:[%s165 + $0x20] sm:$0xff]
      %v230 = vld [vmem:[%s165 + $0x28] sm:$0xff]
      %v231 = vld [vmem:[%s165 + $0x30] sm:$0xff]
      %v232 = vld [vmem:[%s165 + $0x38] sm:$0xff]
      %v233 = vld [vmem:[%s165 + $0x40] sm:$0xff]
      %v234 = vld [vmem:[%s165 + $0x48] sm:$0xff]
      %v235 = vld [vmem:[%s165 + $0x50] sm:$0xff]
      %v236 = vld [vmem:[%s165 + $0x58] sm:$0xff]
      %v237 = vld [vmem:[%s165 + $0x60] sm:$0xff]
      %v238 = vld [vmem:[%s165 + $0x68] sm:$0xff]
      %v239 = vld [vmem:[%s165 + $0x70] sm:$0xff]
      %v240 = vld [vmem:[%s165 + $0x78] sm:$0xff]
      %v241 = vld [vmem:[%s165 + $0x80] sm:$0xff]
      %v242 = vld [vmem:[%s165 + $0x88] sm:$0xff]
      %v243 = vld [vmem:[%s165 + $0x90] sm:$0xff]
      %v244 = vld [vmem:[%s165 + $0x98] sm:$0xff]
      %v245 = vld [vmem:[%s165 + $0xa0] sm:$0xff]
      %v246 = vld [vmem:[%s165 + $0xa8] sm:$0xff]
      %v247 = vld [vmem:[%s165 + $0xb0] sm:$0xff]
      %v248 = vld [vmem:[%s165 + $0xb8] sm:$0xff]
      %v249 = vld [vmem:[%s165 + $0xc0] sm:$0xff]
      %v250 = vld [vmem:[%s165 + $0xc8] sm:$0xff]
      %v251 = vld [vmem:[%s165 + $0xd0] sm:$0xff]
      %v252 = vld [vmem:[%s165 + $0xd8] sm:$0xff]
      %v253 = vld [vmem:[%s165 + $0xe0] sm:$0xff]
      %v254 = vld [vmem:[%s165 + $0xe8] sm:$0xff]
      %v255 = vld [vmem:[%s165 + $0xf0] sm:$0xff]
      %v256 = vld [vmem:[%s165 + $0xf8] sm:$0xff]
      %s257 = scalar_lea.vmem [#allocation2], 24
      %258 = vst [vmem:[%s257 + $0x1] sm:$0xff] %v225
      %259 = vst [vmem:[%s257 + $0x9] sm:$0xff] %v226
      %260 = vst [vmem:[%s257 + $0x19] sm:$0xff] %v227
      %261 = vst [vmem:[%s257 + $0x21] sm:$0xff] %v228
      %262 = vst [vmem:[%s257 + $0x31] sm:$0xff] %v229
      %263 = vst [vmem:[%s257 + $0x39] sm:$0xff] %v230
      %264 = vst [vmem:[%s257 + $0x49] sm:$0xff] %v231
      %265 = vst [vmem:[%s257 + $0x51] sm:$0xff] %v232
      %266 = vst [vmem:[%s257 + $0x61] sm:$0xff] %v233
      %267 = vst [vmem:[%s257 + $0x69] sm:$0xff] %v234
      %268 = vst [vmem:[%s257 + $0x79] sm:$0xff] %v235
      %269 = vst [vmem:[%s257 + $0x81] sm:$0xff] %v236
      %270 = vst [vmem:[%s257 + $0x91] sm:$0xff] %v237
      %271 = vst [vmem:[%s257 + $0x99] sm:$0xff] %v238
      %272 = vst [vmem:[%s257 + $0xa9] sm:$0xff] %v239
      %273 = vst [vmem:[%s257 + $0xb1] sm:$0xff] %v240
      %274 = vst [vmem:[%s257 + $0xc1] sm:$0xff] %v241
      %275 = vst [vmem:[%s257 + $0xc9] sm:$0xff] %v242
      %276 = vst [vmem:[%s257 + $0xd9] sm:$0xff] %v243
      %277 = vst [vmem:[%s257 + $0xe1] sm:$0xff] %v244
      %278 = vst [vmem:[%s257 + $0xf1] sm:$0xff] %v245
      %279 = vst [vmem:[%s257 + $0xf9] sm:$0xff] %v246
      %280 = vst [vmem:[%s257 + $0x109] sm:$0xff] %v247
      %281 = vst [vmem:[%s257 + $0x111] sm:$0xff] %v248
      %282 = vst [vmem:[%s257 + $0x121] sm:$0xff] %v249
      %283 = vst [vmem:[%s257 + $0x129] sm:$0xff] %v250
      %284 = vst [vmem:[%s257 + $0x139] sm:$0xff] %v251
      %285 = vst [vmem:[%s257 + $0x141] sm:$0xff] %v252
      %286 = vst [vmem:[%s257 + $0x151] sm:$0xff] %v253
      %287 = vst [vmem:[%s257 + $0x159] sm:$0xff] %v254
      %288 = vst [vmem:[%s257 + $0x169] sm:$0xff] %v255
      %289 = vst [vmem:[%s257 + $0x171] sm:$0xff] %v256
      %v290 = vld [vmem:[%s2] sm:$0x1]
      %v292 = vperm.slane %v290, 0
      %v294 = vld [vmem:[#allocation2] sm:$0xff]
      %v295 = vld [vmem:[#allocation2 + $0x8] sm:$0xff]
      %v296 = vld [vmem:[#allocation2 + $0x18] sm:$0xff]
      %v297 = vld [vmem:[#allocation2 + $0x20] sm:$0xff]
      %v298 = vld [vmem:[#allocation2 + $0x30] sm:$0xff]
      %v299 = vld [vmem:[#allocation2 + $0x38] sm:$0xff]
      %v300 = vld [vmem:[#allocation2 + $0x48] sm:$0xff]
      %v301 = vld [vmem:[#allocation2 + $0x50] sm:$0xff]
      %v302 = vld [vmem:[#allocation2 + $0x60] sm:$0xff]
      %v303 = vld [vmem:[#allocation2 + $0x68] sm:$0xff]
      %v304 = vld [vmem:[#allocation2 + $0x78] sm:$0xff]
      %v305 = vld [vmem:[#allocation2 + $0x80] sm:$0xff]
      %v306 = vld [vmem:[#allocation2 + $0x90] sm:$0xff]
      %v307 = vld [vmem:[#allocation2 + $0x98] sm:$0xff]
      %v308 = vld [vmem:[#allocation2 + $0xa8] sm:$0xff]
      %v309 = vld [vmem:[#allocation2 + $0xb0] sm:$0xff]
      %v310 = vld [vmem:[#allocation2 + $0xc0] sm:$0xff]
      %v311 = vld [vmem:[#allocation2 + $0xc8] sm:$0xff]
      %v312 = vld [vmem:[#allocation2 + $0xd8] sm:$0xff]
      %v313 = vld [vmem:[#allocation2 + $0xe0] sm:$0xff]
      %v314 = vld [vmem:[#allocation2 + $0xf0] sm:$0xff]
      %v315 = vld [vmem:[#allocation2 + $0xf8] sm:$0xff]
      %v316 = vld [vmem:[#allocation2 + $0x108] sm:$0xff]
      %v317 = vld [vmem:[#allocation2 + $0x110] sm:$0xff]
      %v318 = vld [vmem:[#allocation2 + $0x120] sm:$0xff]
      %v319 = vld [vmem:[#allocation2 + $0x128] sm:$0xff]
      %v320 = vld [vmem:[#allocation2 + $0x138] sm:$0xff]
      %v321 = vld [vmem:[#allocation2 + $0x140] sm:$0xff]
      %v322 = vld [vmem:[#allocation2 + $0x150] sm:$0xff]
      %v323 = vld [vmem:[#allocation2 + $0x158] sm:$0xff]
      %v324 = vld [vmem:[#allocation2 + $0x168] sm:$0xff]
      %v325 = vld [vmem:[#allocation2 + $0x170] sm:$0xff]
      %v326 = vld [vmem:[%s1] sm:$0xff]
      %v327 = vld [vmem:[%s1 + $0x8] sm:$0xff]
      %v328 = vld [vmem:[%s1 + $0x10] sm:$0xff]
      %v329 = vld [vmem:[%s1 + $0x18] sm:$0xff]
      %v330 = vld [vmem:[%s1 + $0x20] sm:$0xff]
      %v331 = vld [vmem:[%s1 + $0x28] sm:$0xff]
      %v332 = vld [vmem:[%s1 + $0x30] sm:$0xff]
      %v333 = vld [vmem:[%s1 + $0x38] sm:$0xff]
      %v334 = vld [vmem:[%s1 + $0x40] sm:$0xff]
      %v335 = vld [vmem:[%s1 + $0x48] sm:$0xff]
      %v336 = vld [vmem:[%s1 + $0x50] sm:$0xff]
      %v337 = vld [vmem:[%s1 + $0x58] sm:$0xff]
      %v338 = vld [vmem:[%s1 + $0x60] sm:$0xff]
      %v339 = vld [vmem:[%s1 + $0x68] sm:$0xff]
      %v340 = vld [vmem:[%s1 + $0x70] sm:$0xff]
      %v341 = vld [vmem:[%s1 + $0x78] sm:$0xff]
      %342 = vmatpush.msra.mxu0 %v341
      %343 = vmatpush.msra.mxu0 %v340
      %344 = vmatpush.msra.mxu0 %v339
      %345 = vmatpush.msra.mxu0 %v338
      %346 = vmatpush.msra.mxu0 %v337
      %347 = vmatpush.msra.mxu0 %v336
      %348 = vmatpush.msra.mxu0 %v335
      %349 = vmatpush.msra.mxu0 %v334
      %350 = vmatpush.msra.mxu0 %v333
      %351 = vmatpush.msra.mxu0 %v332
      %352 = vmatpush.msra.mxu0 %v331
      %353 = vmatpush.msra.mxu0 %v330
      %354 = vmatpush.msra.mxu0 %v329
      %355 = vmatpush.msra.mxu0 %v328
      %356 = vmatpush.msra.mxu0 %v327
      %357 = vmatpush.msra.mxu0 %v326
      %358 = vmatmul.f32.gmra.mxu0 %v294
      %v359 = vpop.f32.mrf.mxu0
      %v360 = vadd.f32 0.0, %v359
      %361 = vmatmul.f32.gmra.mxu0 %v295
      %v362 = vpop.f32.mrf.mxu0
      %v363 = vadd.f32 0.0, %v362
      %364 = vmatmul.f32.gmra.mxu0 %v296
      %v365 = vpop.f32.mrf.mxu0
      %v366 = vadd.f32 0.0, %v365
      %367 = vmatmul.f32.gmra.mxu0 %v297
      %v368 = vpop.f32.mrf.mxu0
      %v369 = vadd.f32 0.0, %v368
      %370 = vmatmul.f32.gmra.mxu0 %v298
      %v371 = vpop.f32.mrf.mxu0
      %v372 = vadd.f32 0.0, %v371
      %373 = vmatmul.f32.gmra.mxu0 %v299
      %v374 = vpop.f32.mrf.mxu0
      %v375 = vadd.f32 0.0, %v374
      %376 = vmatmul.f32.gmra.mxu0 %v300
      %v377 = vpop.f32.mrf.mxu0
      %v378 = vadd.f32 0.0, %v377
      %379 = vmatmul.f32.gmra.mxu0 %v301
      %v380 = vpop.f32.mrf.mxu0
      %v381 = vadd.f32 0.0, %v380
      %382 = vmatmul.f32.gmra.mxu0 %v302
      %v383 = vpop.f32.mrf.mxu0
      %v384 = vadd.f32 0.0, %v383
      %385 = vmatmul.f32.gmra.mxu0 %v303
      %v386 = vpop.f32.mrf.mxu0
      %v387 = vadd.f32 0.0, %v386
      %388 = vmatmul.f32.gmra.mxu0 %v304
      %v389 = vpop.f32.mrf.mxu0
      %v390 = vadd.f32 0.0, %v389
      %391 = vmatmul.f32.gmra.mxu0 %v305
      %v392 = vpop.f32.mrf.mxu0
      %v393 = vadd.f32 0.0, %v392
      %394 = vmatmul.f32.gmra.mxu0 %v306
      %v395 = vpop.f32.mrf.mxu0
      %v396 = vadd.f32 0.0, %v395
      %397 = vmatmul.f32.gmra.mxu0 %v307
      %v398 = vpop.f32.mrf.mxu0
      %v399 = vadd.f32 0.0, %v398
      %400 = vmatmul.f32.gmra.mxu0 %v308
      %v401 = vpop.f32.mrf.mxu0
      %v402 = vadd.f32 0.0, %v401
      %403 = vmatmul.f32.gmra.mxu0 %v309
      %v404 = vpop.f32.mrf.mxu0
      %v405 = vadd.f32 0.0, %v404
      %406 = vmatmul.f32.gmra.mxu0 %v310
      %v407 = vpop.f32.mrf.mxu0
      %v408 = vadd.f32 0.0, %v407
      %409 = vmatmul.f32.gmra.mxu0 %v311
      %v410 = vpop.f32.mrf.mxu0
      %v411 = vadd.f32 0.0, %v410
      %412 = vmatmul.f32.gmra.mxu0 %v312
      %v413 = vpop.f32.mrf.mxu0
      %v414 = vadd.f32 0.0, %v413
      %415 = vmatmul.f32.gmra.mxu0 %v313
      %v416 = vpop.f32.mrf.mxu0
      %v417 = vadd.f32 0.0, %v416
      %418 = vmatmul.f32.gmra.mxu0 %v314
      %v419 = vpop.f32.mrf.mxu0
      %v420 = vadd.f32 0.0, %v419
      %421 = vmatmul.f32.gmra.mxu0 %v315
      %v422 = vpop.f32.mrf.mxu0
      %v423 = vadd.f32 0.0, %v422
      %424 = vmatmul.f32.gmra.mxu0 %v316
      %v425 = vpop.f32.mrf.mxu0
      %v426 = vadd.f32 0.0, %v425
      %427 = vmatmul.f32.gmra.mxu0 %v317
      %v428 = vpop.f32.mrf.mxu0
      %v429 = vadd.f32 0.0, %v428
      %430 = vmatmul.f32.gmra.mxu0 %v318
      %v431 = vpop.f32.mrf.mxu0
      %v432 = vadd.f32 0.0, %v431
      %433 = vmatmul.f32.gmra.mxu0 %v319
      %v434 = vpop.f32.mrf.mxu0
      %v435 = vadd.f32 0.0, %v434
      %436 = vmatmul.f32.gmra.mxu0 %v320
      %v437 = vpop.f32.mrf.mxu0
      %v438 = vadd.f32 0.0, %v437
      %439 = vmatmul.f32.gmra.mxu0 %v321
      %v440 = vpop.f32.mrf.mxu0
      %v441 = vadd.f32 0.0, %v440
      %442 = vmatmul.f32.gmra.mxu0 %v322
      %v443 = vpop.f32.mrf.mxu0
      %v444 = vadd.f32 0.0, %v443
      %445 = vmatmul.f32.gmra.mxu0 %v323
      %v446 = vpop.f32.mrf.mxu0
      %v447 = vadd.f32 0.0, %v446
      %448 = vmatmul.f32.gmra.mxu0 %v324
      %v449 = vpop.f32.mrf.mxu0
      %v450 = vadd.f32 0.0, %v449
      %451 = vmatmul.f32.gmra.mxu0 %v325
      %v452 = vpop.f32.mrf.mxu0
      %v453 = vadd.f32 0.0, %v452
      %454 = vdwg.mxu0
      %v455 = vadd.f32 %v292, %v360
      %v456 = vadd.f32 %v292, %v363
      %v457 = vadd.f32 %v292, %v366
      %v458 = vadd.f32 %v292, %v369
      %v459 = vadd.f32 %v292, %v372
      %v460 = vadd.f32 %v292, %v375
      %v461 = vadd.f32 %v292, %v378
      %v462 = vadd.f32 %v292, %v381
      %v463 = vadd.f32 %v292, %v384
      %v464 = vadd.f32 %v292, %v387
      %v465 = vadd.f32 %v292, %v390
      %v466 = vadd.f32 %v292, %v393
      %v467 = vadd.f32 %v292, %v396
      %v468 = vadd.f32 %v292, %v399
      %v469 = vadd.f32 %v292, %v402
      %v470 = vadd.f32 %v292, %v405
      %v471 = vadd.f32 %v292, %v408
      %v472 = vadd.f32 %v292, %v411
      %v473 = vadd.f32 %v292, %v414
      %v474 = vadd.f32 %v292, %v417
      %v475 = vadd.f32 %v292, %v420
      %v476 = vadd.f32 %v292, %v423
      %v477 = vadd.f32 %v292, %v426
      %v478 = vadd.f32 %v292, %v429
      %v479 = vadd.f32 %v292, %v432
      %v480 = vadd.f32 %v292, %v435
      %v481 = vadd.f32 %v292, %v438
      %v482 = vadd.f32 %v292, %v441
      %v483 = vadd.f32 %v292, %v444
      %v484 = vadd.f32 %v292, %v447
      %v485 = vadd.f32 %v292, %v450
      %v486 = vadd.f32 %v292, %v453
      %v487 = vld [vmem:[#allocation2 + $0x1] sm:$0xff]
      %v488 = vld [vmem:[#allocation2 + $0x9] sm:$0xff]
      %v489 = vld [vmem:[#allocation2 + $0x19] sm:$0xff]
      %v490 = vld [vmem:[#allocation2 + $0x21] sm:$0xff]
      %v491 = vld [vmem:[#allocation2 + $0x31] sm:$0xff]
      %v492 = vld [vmem:[#allocation2 + $0x39] sm:$0xff]
      %v493 = vld [vmem:[#allocation2 + $0x49] sm:$0xff]
      %v494 = vld [vmem:[#allocation2 + $0x51] sm:$0xff]
      %v495 = vld [vmem:[#allocation2 + $0x61] sm:$0xff]
      %v496 = vld [vmem:[#allocation2 + $0x69] sm:$0xff]
      %v497 = vld [vmem:[#allocation2 + $0x79] sm:$0xff]
      %v498 = vld [vmem:[#allocation2 + $0x81] sm:$0xff]
      %v499 = vld [vmem:[#allocation2 + $0x91] sm:$0xff]
      %v500 = vld [vmem:[#allocation2 + $0x99] sm:$0xff]
      %v501 = vld [vmem:[#allocation2 + $0xa9] sm:$0xff]
      %v502 = vld [vmem:[#allocation2 + $0xb1] sm:$0xff]
      %v503 = vld [vmem:[#allocation2 + $0xc1] sm:$0xff]
      %v504 = vld [vmem:[#allocation2 + $0xc9] sm:$0xff]
      %v505 = vld [vmem:[#allocation2 + $0xd9] sm:$0xff]
      %v506 = vld [vmem:[#allocation2 + $0xe1] sm:$0xff]
      %v507 = vld [vmem:[#allocation2 + $0xf1] sm:$0xff]
      %v508 = vld [vmem:[#allocation2 + $0xf9] sm:$0xff]
      %v509 = vld [vmem:[#allocation2 + $0x109] sm:$0xff]
      %v510 = vld [vmem:[#allocation2 + $0x111] sm:$0xff]
      %v511 = vld [vmem:[#allocation2 + $0x121] sm:$0xff]
      %v512 = vld [vmem:[#allocation2 + $0x129] sm:$0xff]
      %v513 = vld [vmem:[#allocation2 + $0x139] sm:$0xff]
      %v514 = vld [vmem:[#allocation2 + $0x141] sm:$0xff]
      %v515 = vld [vmem:[#allocation2 + $0x151] sm:$0xff]
      %v516 = vld [vmem:[#allocation2 + $0x159] sm:$0xff]
      %v517 = vld [vmem:[#allocation2 + $0x169] sm:$0xff]
      %v518 = vld [vmem:[#allocation2 + $0x171] sm:$0xff]
      %s519 = scalar_lea.vmem %s1, 128
      %v520 = vld [vmem:[%s519] sm:$0xff]
      %v521 = vld [vmem:[%s519 + $0x8] sm:$0xff]
      %v522 = vld [vmem:[%s519 + $0x10] sm:$0xff]
      %v523 = vld [vmem:[%s519 + $0x18] sm:$0xff]
      %v524 = vld [vmem:[%s519 + $0x20] sm:$0xff]
      %v525 = vld [vmem:[%s519 + $0x28] sm:$0xff]
      %v526 = vld [vmem:[%s519 + $0x30] sm:$0xff]
      %v527 = vld [vmem:[%s519 + $0x38] sm:$0xff]
      %v528 = vld [vmem:[%s519 + $0x40] sm:$0xff]
      %v529 = vld [vmem:[%s519 + $0x48] sm:$0xff]
      %v530 = vld [vmem:[%s519 + $0x50] sm:$0xff]
      %v531 = vld [vmem:[%s519 + $0x58] sm:$0xff]
      %v532 = vld [vmem:[%s519 + $0x60] sm:$0xff]
      %v533 = vld [vmem:[%s519 + $0x68] sm:$0xff]
      %v534 = vld [vmem:[%s519 + $0x70] sm:$0xff]
      %v535 = vld [vmem:[%s519 + $0x78] sm:$0xff]
      %536 = vmatpush.msra.mxu0 %v535
      %537 = vmatpush.msra.mxu0 %v534
      %538 = vmatpush.msra.mxu0 %v533
      %539 = vmatpush.msra.mxu0 %v532
      %540 = vmatpush.msra.mxu0 %v531
      %541 = vmatpush.msra.mxu0 %v530
      %542 = vmatpush.msra.mxu0 %v529
      %543 = vmatpush.msra.mxu0 %v528
      %544 = vmatpush.msra.mxu0 %v527
      %545 = vmatpush.msra.mxu0 %v526
      %546 = vmatpush.msra.mxu0 %v525
      %547 = vmatpush.msra.mxu0 %v524
      %548 = vmatpush.msra.mxu0 %v523
      %549 = vmatpush.msra.mxu0 %v522
      %550 = vmatpush.msra.mxu0 %v521
      %551 = vmatpush.msra.mxu0 %v520
      %552 = vmatmul.f32.gmra.mxu0 %v487
      %v553 = vpop.f32.mrf.mxu0
      %v554 = vadd.f32 0.0, %v553
      %555 = vmatmul.f32.gmra.mxu0 %v488
      %v556 = vpop.f32.mrf.mxu0
      %v557 = vadd.f32 0.0, %v556
      %558 = vmatmul.f32.gmra.mxu0 %v489
      %v559 = vpop.f32.mrf.mxu0
      %v560 = vadd.f32 0.0, %v559
      %561 = vmatmul.f32.gmra.mxu0 %v490
      %v562 = vpop.f32.mrf.mxu0
      %v563 = vadd.f32 0.0, %v562
      %564 = vmatmul.f32.gmra.mxu0 %v491
      %v565 = vpop.f32.mrf.mxu0
      %v566 = vadd.f32 0.0, %v565
      %567 = vmatmul.f32.gmra.mxu0 %v492
      %v568 = vpop.f32.mrf.mxu0
      %v569 = vadd.f32 0.0, %v568
      %570 = vmatmul.f32.gmra.mxu0 %v493
      %v571 = vpop.f32.mrf.mxu0
      %v572 = vadd.f32 0.0, %v571
      %573 = vmatmul.f32.gmra.mxu0 %v494
      %v574 = vpop.f32.mrf.mxu0
      %v575 = vadd.f32 0.0, %v574
      %576 = vmatmul.f32.gmra.mxu0 %v495
      %v577 = vpop.f32.mrf.mxu0
      %v578 = vadd.f32 0.0, %v577
      %579 = vmatmul.f32.gmra.mxu0 %v496
      %v580 = vpop.f32.mrf.mxu0
      %v581 = vadd.f32 0.0, %v580
      %582 = vmatmul.f32.gmra.mxu0 %v497
      %v583 = vpop.f32.mrf.mxu0
      %v584 = vadd.f32 0.0, %v583
      %585 = vmatmul.f32.gmra.mxu0 %v498
      %v586 = vpop.f32.mrf.mxu0
      %v587 = vadd.f32 0.0, %v586
      %588 = vmatmul.f32.gmra.mxu0 %v499
      %v589 = vpop.f32.mrf.mxu0
      %v590 = vadd.f32 0.0, %v589
      %591 = vmatmul.f32.gmra.mxu0 %v500
      %v592 = vpop.f32.mrf.mxu0
      %v593 = vadd.f32 0.0, %v592
      %594 = vmatmul.f32.gmra.mxu0 %v501
      %v595 = vpop.f32.mrf.mxu0
      %v596 = vadd.f32 0.0, %v595
      %597 = vmatmul.f32.gmra.mxu0 %v502
      %v598 = vpop.f32.mrf.mxu0
      %v599 = vadd.f32 0.0, %v598
      %600 = vmatmul.f32.gmra.mxu0 %v503
      %v601 = vpop.f32.mrf.mxu0
      %v602 = vadd.f32 0.0, %v601
      %603 = vmatmul.f32.gmra.mxu0 %v504
      %v604 = vpop.f32.mrf.mxu0
      %v605 = vadd.f32 0.0, %v604
      %606 = vmatmul.f32.gmra.mxu0 %v505
      %v607 = vpop.f32.mrf.mxu0
      %v608 = vadd.f32 0.0, %v607
      %609 = vmatmul.f32.gmra.mxu0 %v506
      %v610 = vpop.f32.mrf.mxu0
      %v611 = vadd.f32 0.0, %v610
      %612 = vmatmul.f32.gmra.mxu0 %v507
      %v613 = vpop.f32.mrf.mxu0
      %v614 = vadd.f32 0.0, %v613
      %615 = vmatmul.f32.gmra.mxu0 %v508
      %v616 = vpop.f32.mrf.mxu0
      %v617 = vadd.f32 0.0, %v616
      %618 = vmatmul.f32.gmra.mxu0 %v509
      %v619 = vpop.f32.mrf.mxu0
      %v620 = vadd.f32 0.0, %v619
      %621 = vmatmul.f32.gmra.mxu0 %v510
      %v622 = vpop.f32.mrf.mxu0
      %v623 = vadd.f32 0.0, %v622
      %624 = vmatmul.f32.gmra.mxu0 %v511
      %v625 = vpop.f32.mrf.mxu0
      %v626 = vadd.f32 0.0, %v625
      %627 = vmatmul.f32.gmra.mxu0 %v512
      %v628 = vpop.f32.mrf.mxu0
      %v629 = vadd.f32 0.0, %v628
      %630 = vmatmul.f32.gmra.mxu0 %v513
      %v631 = vpop.f32.mrf.mxu0
      %v632 = vadd.f32 0.0, %v631
      %633 = vmatmul.f32.gmra.mxu0 %v514
      %v634 = vpop.f32.mrf.mxu0
      %v635 = vadd.f32 0.0, %v634
      %636 = vmatmul.f32.gmra.mxu0 %v515
      %v637 = vpop.f32.mrf.mxu0
      %v638 = vadd.f32 0.0, %v637
      %639 = vmatmul.f32.gmra.mxu0 %v516
      %v640 = vpop.f32.mrf.mxu0
      %v641 = vadd.f32 0.0, %v640
      %642 = vmatmul.f32.gmra.mxu0 %v517
      %v643 = vpop.f32.mrf.mxu0
      %v644 = vadd.f32 0.0, %v643
      %645 = vmatmul.f32.gmra.mxu0 %v518
      %v646 = vpop.f32.mrf.mxu0
      %v647 = vadd.f32 0.0, %v646
      %648 = vdwg.mxu0
      %v649 = vadd.f32 %v455, %v554
      %v650 = vadd.f32 %v456, %v557
      %v651 = vadd.f32 %v457, %v560
      %v652 = vadd.f32 %v458, %v563
      %v653 = vadd.f32 %v459, %v566
      %v654 = vadd.f32 %v460, %v569
      %v655 = vadd.f32 %v461, %v572
      %v656 = vadd.f32 %v462, %v575
      %v657 = vadd.f32 %v463, %v578
      %v658 = vadd.f32 %v464, %v581
      %v659 = vadd.f32 %v465, %v584
      %v660 = vadd.f32 %v466, %v587
      %v661 = vadd.f32 %v467, %v590
      %v662 = vadd.f32 %v468, %v593
      %v663 = vadd.f32 %v469, %v596
      %v664 = vadd.f32 %v470, %v599
      %v665 = vadd.f32 %v471, %v602
      %v666 = vadd.f32 %v472, %v605
      %v667 = vadd.f32 %v473, %v608
      %v668 = vadd.f32 %v474, %v611
      %v669 = vadd.f32 %v475, %v614
      %v670 = vadd.f32 %v476, %v617
      %v671 = vadd.f32 %v477, %v620
      %v672 = vadd.f32 %v478, %v623
      %v673 = vadd.f32 %v479, %v626
      %v674 = vadd.f32 %v480, %v629
      %v675 = vadd.f32 %v481, %v632
      %v676 = vadd.f32 %v482, %v635
      %v677 = vadd.f32 %v483, %v638
      %v678 = vadd.f32 %v484, %v641
      %v679 = vadd.f32 %v485, %v644
      %v680 = vadd.f32 %v486, %v647
      %v681 = vld [vmem:[#allocation2 + $0x2] sm:$0xff]
      %v682 = vld [vmem:[#allocation2 + $0xa] sm:$0xff]
      %v683 = vld [vmem:[#allocation2 + $0x1a] sm:$0xff]
      %v684 = vld [vmem:[#allocation2 + $0x22] sm:$0xff]
      %v685 = vld [vmem:[#allocation2 + $0x32] sm:$0xff]
      %v686 = vld [vmem:[#allocation2 + $0x3a] sm:$0xff]
      %v687 = vld [vmem:[#allocation2 + $0x4a] sm:$0xff]
      %v688 = vld [vmem:[#allocation2 + $0x52] sm:$0xff]
      %v689 = vld [vmem:[#allocation2 + $0x62] sm:$0xff]
      %v690 = vld [vmem:[#allocation2 + $0x6a] sm:$0xff]
      %v691 = vld [vmem:[#allocation2 + $0x7a] sm:$0xff]
      %v692 = vld [vmem:[#allocation2 + $0x82] sm:$0xff]
      %v693 = vld [vmem:[#allocation2 + $0x92] sm:$0xff]
      %v694 = vld [vmem:[#allocation2 + $0x9a] sm:$0xff]
      %v695 = vld [vmem:[#allocation2 + $0xaa] sm:$0xff]
      %v696 = vld [vmem:[#allocation2 + $0xb2] sm:$0xff]
      %v697 = vld [vmem:[#allocation2 + $0xc2] sm:$0xff]
      %v698 = vld [vmem:[#allocation2 + $0xca] sm:$0xff]
      %v699 = vld [vmem:[#allocation2 + $0xda] sm:$0xff]
      %v700 = vld [vmem:[#allocation2 + $0xe2] sm:$0xff]
      %v701 = vld [vmem:[#allocation2 + $0xf2] sm:$0xff]
      %v702 = vld [vmem:[#allocation2 + $0xfa] sm:$0xff]
      %v703 = vld [vmem:[#allocation2 + $0x10a] sm:$0xff]
      %v704 = vld [vmem:[#allocation2 + $0x112] sm:$0xff]
      %v705 = vld [vmem:[#allocation2 + $0x122] sm:$0xff]
      %v706 = vld [vmem:[#allocation2 + $0x12a] sm:$0xff]
      %v707 = vld [vmem:[#allocation2 + $0x13a] sm:$0xff]
      %v708 = vld [vmem:[#allocation2 + $0x142] sm:$0xff]
      %v709 = vld [vmem:[#allocation2 + $0x152] sm:$0xff]
      %v710 = vld [vmem:[#allocation2 + $0x15a] sm:$0xff]
      %v711 = vld [vmem:[#allocation2 + $0x16a] sm:$0xff]
      %v712 = vld [vmem:[#allocation2 + $0x172] sm:$0xff]
      %s713 = scalar_lea.vmem %s1, 256
      %v714 = vld [vmem:[%s713] sm:$0xff]
      %v715 = vld [vmem:[%s713 + $0x8] sm:$0xff]
      %v716 = vld [vmem:[%s713 + $0x10] sm:$0xff]
      %v717 = vld [vmem:[%s713 + $0x18] sm:$0xff]
      %v718 = vld [vmem:[%s713 + $0x20] sm:$0xff]
      %v719 = vld [vmem:[%s713 + $0x28] sm:$0xff]
      %v720 = vld [vmem:[%s713 + $0x30] sm:$0xff]
      %v721 = vld [vmem:[%s713 + $0x38] sm:$0xff]
      %v722 = vld [vmem:[%s713 + $0x40] sm:$0xff]
      %v723 = vld [vmem:[%s713 + $0x48] sm:$0xff]
      %v724 = vld [vmem:[%s713 + $0x50] sm:$0xff]
      %v725 = vld [vmem:[%s713 + $0x58] sm:$0xff]
      %v726 = vld [vmem:[%s713 + $0x60] sm:$0xff]
      %v727 = vld [vmem:[%s713 + $0x68] sm:$0xff]
      %v728 = vld [vmem:[%s713 + $0x70] sm:$0xff]
      %v729 = vld [vmem:[%s713 + $0x78] sm:$0xff]
      %730 = vmatpush.msra.mxu0 %v729
      %731 = vmatpush.msra.mxu0 %v728
      %732 = vmatpush.msra.mxu0 %v727
      %733 = vmatpush.msra.mxu0 %v726
      %734 = vmatpush.msra.mxu0 %v725
      %735 = vmatpush.msra.mxu0 %v724
      %736 = vmatpush.msra.mxu0 %v723
      %737 = vmatpush.msra.mxu0 %v722
      %738 = vmatpush.msra.mxu0 %v721
      %739 = vmatpush.msra.mxu0 %v720
      %740 = vmatpush.msra.mxu0 %v719
      %741 = vmatpush.msra.mxu0 %v718
      %742 = vmatpush.msra.mxu0 %v717
      %743 = vmatpush.msra.mxu0 %v716
      %744 = vmatpush.msra.mxu0 %v715
      %745 = vmatpush.msra.mxu0 %v714
      %746 = vmatmul.f32.gmra.mxu0 %v681
      %v747 = vpop.f32.mrf.mxu0
      %v748 = vadd.f32 0.0, %v747
      %749 = vmatmul.f32.gmra.mxu0 %v682
      %v750 = vpop.f32.mrf.mxu0
      %v751 = vadd.f32 0.0, %v750
      %752 = vmatmul.f32.gmra.mxu0 %v683
      %v753 = vpop.f32.mrf.mxu0
      %v754 = vadd.f32 0.0, %v753
      %755 = vmatmul.f32.gmra.mxu0 %v684
      %v756 = vpop.f32.mrf.mxu0
      %v757 = vadd.f32 0.0, %v756
      %758 = vmatmul.f32.gmra.mxu0 %v685
      %v759 = vpop.f32.mrf.mxu0
      %v760 = vadd.f32 0.0, %v759
      %761 = vmatmul.f32.gmra.mxu0 %v686
      %v762 = vpop.f32.mrf.mxu0
      %v763 = vadd.f32 0.0, %v762
      %764 = vmatmul.f32.gmra.mxu0 %v687
      %v765 = vpop.f32.mrf.mxu0
      %v766 = vadd.f32 0.0, %v765
      %767 = vmatmul.f32.gmra.mxu0 %v688
      %v768 = vpop.f32.mrf.mxu0
      %v769 = vadd.f32 0.0, %v768
      %770 = vmatmul.f32.gmra.mxu0 %v689
      %v771 = vpop.f32.mrf.mxu0
      %v772 = vadd.f32 0.0, %v771
      %773 = vmatmul.f32.gmra.mxu0 %v690
      %v774 = vpop.f32.mrf.mxu0
      %v775 = vadd.f32 0.0, %v774
      %776 = vmatmul.f32.gmra.mxu0 %v691
      %v777 = vpop.f32.mrf.mxu0
      %v778 = vadd.f32 0.0, %v777
      %779 = vmatmul.f32.gmra.mxu0 %v692
      %v780 = vpop.f32.mrf.mxu0
      %v781 = vadd.f32 0.0, %v780
      %782 = vmatmul.f32.gmra.mxu0 %v693
      %v783 = vpop.f32.mrf.mxu0
      %v784 = vadd.f32 0.0, %v783
      %785 = vmatmul.f32.gmra.mxu0 %v694
      %v786 = vpop.f32.mrf.mxu0
      %v787 = vadd.f32 0.0, %v786
      %788 = vmatmul.f32.gmra.mxu0 %v695
      %v789 = vpop.f32.mrf.mxu0
      %v790 = vadd.f32 0.0, %v789
      %791 = vmatmul.f32.gmra.mxu0 %v696
      %v792 = vpop.f32.mrf.mxu0
      %v793 = vadd.f32 0.0, %v792
      %794 = vmatmul.f32.gmra.mxu0 %v697
      %v795 = vpop.f32.mrf.mxu0
      %v796 = vadd.f32 0.0, %v795
      %797 = vmatmul.f32.gmra.mxu0 %v698
      %v798 = vpop.f32.mrf.mxu0
      %v799 = vadd.f32 0.0, %v798
      %800 = vmatmul.f32.gmra.mxu0 %v699
      %v801 = vpop.f32.mrf.mxu0
      %v802 = vadd.f32 0.0, %v801
      %803 = vmatmul.f32.gmra.mxu0 %v700
      %v804 = vpop.f32.mrf.mxu0
      %v805 = vadd.f32 0.0, %v804
      %806 = vmatmul.f32.gmra.mxu0 %v701
      %v807 = vpop.f32.mrf.mxu0
      %v808 = vadd.f32 0.0, %v807
      %809 = vmatmul.f32.gmra.mxu0 %v702
      %v810 = vpop.f32.mrf.mxu0
      %v811 = vadd.f32 0.0, %v810
      %812 = vmatmul.f32.gmra.mxu0 %v703
      %v813 = vpop.f32.mrf.mxu0
      %v814 = vadd.f32 0.0, %v813
      %815 = vmatmul.f32.gmra.mxu0 %v704
      %v816 = vpop.f32.mrf.mxu0
      %v817 = vadd.f32 0.0, %v816
      %818 = vmatmul.f32.gmra.mxu0 %v705
      %v819 = vpop.f32.mrf.mxu0
      %v820 = vadd.f32 0.0, %v819
      %821 = vmatmul.f32.gmra.mxu0 %v706
      %v822 = vpop.f32.mrf.mxu0
      %v823 = vadd.f32 0.0, %v822
      %824 = vmatmul.f32.gmra.mxu0 %v707
      %v825 = vpop.f32.mrf.mxu0
      %v826 = vadd.f32 0.0, %v825
      %827 = vmatmul.f32.gmra.mxu0 %v708
      %v828 = vpop.f32.mrf.mxu0
      %v829 = vadd.f32 0.0, %v828
      %830 = vmatmul.f32.gmra.mxu0 %v709
      %v831 = vpop.f32.mrf.mxu0
      %v832 = vadd.f32 0.0, %v831
      %833 = vmatmul.f32.gmra.mxu0 %v710
      %v834 = vpop.f32.mrf.mxu0
      %v835 = vadd.f32 0.0, %v834
      %836 = vmatmul.f32.gmra.mxu0 %v711
      %v837 = vpop.f32.mrf.mxu0
      %v838 = vadd.f32 0.0, %v837
      %839 = vmatmul.f32.gmra.mxu0 %v712
      %v840 = vpop.f32.mrf.mxu0
      %v841 = vadd.f32 0.0, %v840
      %842 = vdwg.mxu0
      %v843 = vadd.f32 %v649, %v748
      %v844 = vadd.f32 %v650, %v751
      %v845 = vadd.f32 %v651, %v754
      %v846 = vadd.f32 %v652, %v757
      %v847 = vadd.f32 %v653, %v760
      %v848 = vadd.f32 %v654, %v763
      %v849 = vadd.f32 %v655, %v766
      %v850 = vadd.f32 %v656, %v769
      %v851 = vadd.f32 %v657, %v772
      %v852 = vadd.f32 %v658, %v775
      %v853 = vadd.f32 %v659, %v778
      %v854 = vadd.f32 %v660, %v781
      %v855 = vadd.f32 %v661, %v784
      %v856 = vadd.f32 %v662, %v787
      %v857 = vadd.f32 %v663, %v790
      %v858 = vadd.f32 %v664, %v793
      %v859 = vadd.f32 %v665, %v796
      %v860 = vadd.f32 %v666, %v799
      %v861 = vadd.f32 %v667, %v802
      %v862 = vadd.f32 %v668, %v805
      %v863 = vadd.f32 %v669, %v808
      %v864 = vadd.f32 %v670, %v811
      %v865 = vadd.f32 %v671, %v814
      %v866 = vadd.f32 %v672, %v817
      %v867 = vadd.f32 %v673, %v820
      %v868 = vadd.f32 %v674, %v823
      %v869 = vadd.f32 %v675, %v826
      %v870 = vadd.f32 %v676, %v829
      %v871 = vadd.f32 %v677, %v832
      %v872 = vadd.f32 %v678, %v835
      %v873 = vadd.f32 %v679, %v838
      %v874 = vadd.f32 %v680, %v841
      %v875 = vld [vmem:[%s257] sm:$0xff]
      %v876 = vld [vmem:[%s257 + $0x8] sm:$0xff]
      %v877 = vld [vmem:[%s257 + $0x18] sm:$0xff]
      %v878 = vld [vmem:[%s257 + $0x20] sm:$0xff]
      %v879 = vld [vmem:[%s257 + $0x30] sm:$0xff]
      %v880 = vld [vmem:[%s257 + $0x38] sm:$0xff]
      %v881 = vld [vmem:[%s257 + $0x48] sm:$0xff]
      %v882 = vld [vmem:[%s257 + $0x50] sm:$0xff]
      %v883 = vld [vmem:[%s257 + $0x60] sm:$0xff]
      %v884 = vld [vmem:[%s257 + $0x68] sm:$0xff]
      %v885 = vld [vmem:[%s257 + $0x78] sm:$0xff]
      %v886 = vld [vmem:[%s257 + $0x80] sm:$0xff]
      %v887 = vld [vmem:[%s257 + $0x90] sm:$0xff]
      %v888 = vld [vmem:[%s257 + $0x98] sm:$0xff]
      %v889 = vld [vmem:[%s257 + $0xa8] sm:$0xff]
      %v890 = vld [vmem:[%s257 + $0xb0] sm:$0xff]
      %v891 = vld [vmem:[%s257 + $0xc0] sm:$0xff]
      %v892 = vld [vmem:[%s257 + $0xc8] sm:$0xff]
      %v893 = vld [vmem:[%s257 + $0xd8] sm:$0xff]
      %v894 = vld [vmem:[%s257 + $0xe0] sm:$0xff]
      %v895 = vld [vmem:[%s257 + $0xf0] sm:$0xff]
      %v896 = vld [vmem:[%s257 + $0xf8] sm:$0xff]
      %v897 = vld [vmem:[%s257 + $0x108] sm:$0xff]
      %v898 = vld [vmem:[%s257 + $0x110] sm:$0xff]
      %v899 = vld [vmem:[%s257 + $0x120] sm:$0xff]
      %v900 = vld [vmem:[%s257 + $0x128] sm:$0xff]
      %v901 = vld [vmem:[%s257 + $0x138] sm:$0xff]
      %v902 = vld [vmem:[%s257 + $0x140] sm:$0xff]
      %v903 = vld [vmem:[%s257 + $0x150] sm:$0xff]
      %v904 = vld [vmem:[%s257 + $0x158] sm:$0xff]
      %v905 = vld [vmem:[%s257 + $0x168] sm:$0xff]
      %v906 = vld [vmem:[%s257 + $0x170] sm:$0xff]
      %s907 = scalar_lea.vmem %s1, 384
      %v908 = vld [vmem:[%s907] sm:$0xff]
      %v909 = vld [vmem:[%s907 + $0x8] sm:$0xff]
      %v910 = vld [vmem:[%s907 + $0x10] sm:$0xff]
      %v911 = vld [vmem:[%s907 + $0x18] sm:$0xff]
      %v912 = vld [vmem:[%s907 + $0x20] sm:$0xff]
      %v913 = vld [vmem:[%s907 + $0x28] sm:$0xff]
      %v914 = vld [vmem:[%s907 + $0x30] sm:$0xff]
      %v915 = vld [vmem:[%s907 + $0x38] sm:$0xff]
      %v916 = vld [vmem:[%s907 + $0x40] sm:$0xff]
      %v917 = vld [vmem:[%s907 + $0x48] sm:$0xff]
      %v918 = vld [vmem:[%s907 + $0x50] sm:$0xff]
      %v919 = vld [vmem:[%s907 + $0x58] sm:$0xff]
      %v920 = vld [vmem:[%s907 + $0x60] sm:$0xff]
      %v921 = vld [vmem:[%s907 + $0x68] sm:$0xff]
      %v922 = vld [vmem:[%s907 + $0x70] sm:$0xff]
      %v923 = vld [vmem:[%s907 + $0x78] sm:$0xff]
      %924 = vmatpush.msra.mxu0 %v923
      %925 = vmatpush.msra.mxu0 %v922
      %926 = vmatpush.msra.mxu0 %v921
      %927 = vmatpush.msra.mxu0 %v920
      %928 = vmatpush.msra.mxu0 %v919
      %929 = vmatpush.msra.mxu0 %v918
      %930 = vmatpush.msra.mxu0 %v917
      %931 = vmatpush.msra.mxu0 %v916
      %932 = vmatpush.msra.mxu0 %v915
      %933 = vmatpush.msra.mxu0 %v914
      %934 = vmatpush.msra.mxu0 %v913
      %935 = vmatpush.msra.mxu0 %v912
      %936 = vmatpush.msra.mxu0 %v911
      %937 = vmatpush.msra.mxu0 %v910
      %938 = vmatpush.msra.mxu0 %v909
      %939 = vmatpush.msra.mxu0 %v908
      %940 = vmatmul.f32.gmra.mxu0 %v875
      %v941 = vpop.f32.mrf.mxu0
      %v942 = vadd.f32 0.0, %v941
      %943 = vmatmul.f32.gmra.mxu0 %v876
      %v944 = vpop.f32.mrf.mxu0
      %v945 = vadd.f32 0.0, %v944
      %946 = vmatmul.f32.gmra.mxu0 %v877
      %v947 = vpop.f32.mrf.mxu0
      %v948 = vadd.f32 0.0, %v947
      %949 = vmatmul.f32.gmra.mxu0 %v878
      %v950 = vpop.f32.mrf.mxu0
      %v951 = vadd.f32 0.0, %v950
      %952 = vmatmul.f32.gmra.mxu0 %v879
      %v953 = vpop.f32.mrf.mxu0
      %v954 = vadd.f32 0.0, %v953
      %955 = vmatmul.f32.gmra.mxu0 %v880
      %v956 = vpop.f32.mrf.mxu0
      %v957 = vadd.f32 0.0, %v956
      %958 = vmatmul.f32.gmra.mxu0 %v881
      %v959 = vpop.f32.mrf.mxu0
      %v960 = vadd.f32 0.0, %v959
      %961 = vmatmul.f32.gmra.mxu0 %v882
      %v962 = vpop.f32.mrf.mxu0
      %v963 = vadd.f32 0.0, %v962
      %964 = vmatmul.f32.gmra.mxu0 %v883
      %v965 = vpop.f32.mrf.mxu0
      %v966 = vadd.f32 0.0, %v965
      %967 = vmatmul.f32.gmra.mxu0 %v884
      %v968 = vpop.f32.mrf.mxu0
      %v969 = vadd.f32 0.0, %v968
      %970 = vmatmul.f32.gmra.mxu0 %v885
      %v971 = vpop.f32.mrf.mxu0
      %v972 = vadd.f32 0.0, %v971
      %973 = vmatmul.f32.gmra.mxu0 %v886
      %v974 = vpop.f32.mrf.mxu0
      %v975 = vadd.f32 0.0, %v974
      %976 = vmatmul.f32.gmra.mxu0 %v887
      %v977 = vpop.f32.mrf.mxu0
      %v978 = vadd.f32 0.0, %v977
      %979 = vmatmul.f32.gmra.mxu0 %v888
      %v980 = vpop.f32.mrf.mxu0
      %v981 = vadd.f32 0.0, %v980
      %982 = vmatmul.f32.gmra.mxu0 %v889
      %v983 = vpop.f32.mrf.mxu0
      %v984 = vadd.f32 0.0, %v983
      %985 = vmatmul.f32.gmra.mxu0 %v890
      %v986 = vpop.f32.mrf.mxu0
      %v987 = vadd.f32 0.0, %v986
      %988 = vmatmul.f32.gmra.mxu0 %v891
      %v989 = vpop.f32.mrf.mxu0
      %v990 = vadd.f32 0.0, %v989
      %991 = vmatmul.f32.gmra.mxu0 %v892
      %v992 = vpop.f32.mrf.mxu0
      %v993 = vadd.f32 0.0, %v992
      %994 = vmatmul.f32.gmra.mxu0 %v893
      %v995 = vpop.f32.mrf.mxu0
      %v996 = vadd.f32 0.0, %v995
      %997 = vmatmul.f32.gmra.mxu0 %v894
      %v998 = vpop.f32.mrf.mxu0
      %v999 = vadd.f32 0.0, %v998
      %1000 = vmatmul.f32.gmra.mxu0 %v895
      %v1001 = vpop.f32.mrf.mxu0
      %v1002 = vadd.f32 0.0, %v1001
      %1003 = vmatmul.f32.gmra.mxu0 %v896
      %v1004 = vpop.f32.mrf.mxu0
      %v1005 = vadd.f32 0.0, %v1004
      %1006 = vmatmul.f32.gmra.mxu0 %v897
      %v1007 = vpop.f32.mrf.mxu0
      %v1008 = vadd.f32 0.0, %v1007
      %1009 = vmatmul.f32.gmra.mxu0 %v898
      %v1010 = vpop.f32.mrf.mxu0
      %v1011 = vadd.f32 0.0, %v1010
      %1012 = vmatmul.f32.gmra.mxu0 %v899
      %v1013 = vpop.f32.mrf.mxu0
      %v1014 = vadd.f32 0.0, %v1013
      %1015 = vmatmul.f32.gmra.mxu0 %v900
      %v1016 = vpop.f32.mrf.mxu0
      %v1017 = vadd.f32 0.0, %v1016
      %1018 = vmatmul.f32.gmra.mxu0 %v901
      %v1019 = vpop.f32.mrf.mxu0
      %v1020 = vadd.f32 0.0, %v1019
      %1021 = vmatmul.f32.gmra.mxu0 %v902
      %v1022 = vpop.f32.mrf.mxu0
      %v1023 = vadd.f32 0.0, %v1022
      %1024 = vmatmul.f32.gmra.mxu0 %v903
      %v1025 = vpop.f32.mrf.mxu0
      %v1026 = vadd.f32 0.0, %v1025
      %1027 = vmatmul.f32.gmra.mxu0 %v904
      %v1028 = vpop.f32.mrf.mxu0
      %v1029 = vadd.f32 0.0, %v1028
      %1030 = vmatmul.f32.gmra.mxu0 %v905
      %v1031 = vpop.f32.mrf.mxu0
      %v1032 = vadd.f32 0.0, %v1031
      %1033 = vmatmul.f32.gmra.mxu0 %v906
      %v1034 = vpop.f32.mrf.mxu0
      %v1035 = vadd.f32 0.0, %v1034
      %1036 = vdwg.mxu0
      %v1037 = vadd.f32 %v843, %v942
      %v1038 = vadd.f32 %v844, %v945
      %v1039 = vadd.f32 %v845, %v948
      %v1040 = vadd.f32 %v846, %v951
      %v1041 = vadd.f32 %v847, %v954
      %v1042 = vadd.f32 %v848, %v957
      %v1043 = vadd.f32 %v849, %v960
      %v1044 = vadd.f32 %v850, %v963
      %v1045 = vadd.f32 %v851, %v966
      %v1046 = vadd.f32 %v852, %v969
      %v1047 = vadd.f32 %v853, %v972
      %v1048 = vadd.f32 %v854, %v975
      %v1049 = vadd.f32 %v855, %v978
      %v1050 = vadd.f32 %v856, %v981
      %v1051 = vadd.f32 %v857, %v984
      %v1052 = vadd.f32 %v858, %v987
      %v1053 = vadd.f32 %v859, %v990
      %v1054 = vadd.f32 %v860, %v993
      %v1055 = vadd.f32 %v861, %v996
      %v1056 = vadd.f32 %v862, %v999
      %v1057 = vadd.f32 %v863, %v1002
      %v1058 = vadd.f32 %v864, %v1005
      %v1059 = vadd.f32 %v865, %v1008
      %v1060 = vadd.f32 %v866, %v1011
      %v1061 = vadd.f32 %v867, %v1014
      %v1062 = vadd.f32 %v868, %v1017
      %v1063 = vadd.f32 %v869, %v1020
      %v1064 = vadd.f32 %v870, %v1023
      %v1065 = vadd.f32 %v871, %v1026
      %v1066 = vadd.f32 %v872, %v1029
      %v1067 = vadd.f32 %v873, %v1032
      %v1068 = vadd.f32 %v874, %v1035
      %v1069 = vld [vmem:[%s257 + $0x1] sm:$0xff]
      %v1070 = vld [vmem:[%s257 + $0x9] sm:$0xff]
      %v1071 = vld [vmem:[%s257 + $0x19] sm:$0xff]
      %v1072 = vld [vmem:[%s257 + $0x21] sm:$0xff]
      %v1073 = vld [vmem:[%s257 + $0x31] sm:$0xff]
      %v1074 = vld [vmem:[%s257 + $0x39] sm:$0xff]
      %v1075 = vld [vmem:[%s257 + $0x49] sm:$0xff]
      %v1076 = vld [vmem:[%s257 + $0x51] sm:$0xff]
      %v1077 = vld [vmem:[%s257 + $0x61] sm:$0xff]
      %v1078 = vld [vmem:[%s257 + $0x69] sm:$0xff]
      %v1079 = vld [vmem:[%s257 + $0x79] sm:$0xff]
      %v1080 = vld [vmem:[%s257 + $0x81] sm:$0xff]
      %v1081 = vld [vmem:[%s257 + $0x91] sm:$0xff]
      %v1082 = vld [vmem:[%s257 + $0x99] sm:$0xff]
      %v1083 = vld [vmem:[%s257 + $0xa9] sm:$0xff]
      %v1084 = vld [vmem:[%s257 + $0xb1] sm:$0xff]
      %v1085 = vld [vmem:[%s257 + $0xc1] sm:$0xff]
      %v1086 = vld [vmem:[%s257 + $0xc9] sm:$0xff]
      %v1087 = vld [vmem:[%s257 + $0xd9] sm:$0xff]
      %v1088 = vld [vmem:[%s257 + $0xe1] sm:$0xff]
      %v1089 = vld [vmem:[%s257 + $0xf1] sm:$0xff]
      %v1090 = vld [vmem:[%s257 + $0xf9] sm:$0xff]
      %v1091 = vld [vmem:[%s257 + $0x109] sm:$0xff]
      %v1092 = vld [vmem:[%s257 + $0x111] sm:$0xff]
      %v1093 = vld [vmem:[%s257 + $0x121] sm:$0xff]
      %v1094 = vld [vmem:[%s257 + $0x129] sm:$0xff]
      %v1095 = vld [vmem:[%s257 + $0x139] sm:$0xff]
      %v1096 = vld [vmem:[%s257 + $0x141] sm:$0xff]
      %v1097 = vld [vmem:[%s257 + $0x151] sm:$0xff]
      %v1098 = vld [vmem:[%s257 + $0x159] sm:$0xff]
      %v1099 = vld [vmem:[%s257 + $0x169] sm:$0xff]
      %v1100 = vld [vmem:[%s257 + $0x171] sm:$0xff]
      %s1101 = scalar_lea.vmem %s1, 512
      %v1102 = vld [vmem:[%s1101] sm:$0xff]
      %v1103 = vld [vmem:[%s1101 + $0x8] sm:$0xff]
      %v1104 = vld [vmem:[%s1101 + $0x10] sm:$0xff]
      %v1105 = vld [vmem:[%s1101 + $0x18] sm:$0xff]
      %v1106 = vld [vmem:[%s1101 + $0x20] sm:$0xff]
      %v1107 = vld [vmem:[%s1101 + $0x28] sm:$0xff]
      %v1108 = vld [vmem:[%s1101 + $0x30] sm:$0xff]
      %v1109 = vld [vmem:[%s1101 + $0x38] sm:$0xff]
      %v1110 = vld [vmem:[%s1101 + $0x40] sm:$0xff]
      %v1111 = vld [vmem:[%s1101 + $0x48] sm:$0xff]
      %v1112 = vld [vmem:[%s1101 + $0x50] sm:$0xff]
      %v1113 = vld [vmem:[%s1101 + $0x58] sm:$0xff]
      %v1114 = vld [vmem:[%s1101 + $0x60] sm:$0xff]
      %v1115 = vld [vmem:[%s1101 + $0x68] sm:$0xff]
      %v1116 = vld [vmem:[%s1101 + $0x70] sm:$0xff]
      %v1117 = vld [vmem:[%s1101 + $0x78] sm:$0xff]
      %1118 = vmatpush.msra.mxu0 %v1117
      %1119 = vmatpush.msra.mxu0 %v1116
      %1120 = vmatpush.msra.mxu0 %v1115
      %1121 = vmatpush.msra.mxu0 %v1114
      %1122 = vmatpush.msra.mxu0 %v1113
      %1123 = vmatpush.msra.mxu0 %v1112
      %1124 = vmatpush.msra.mxu0 %v1111
      %1125 = vmatpush.msra.mxu0 %v1110
      %1126 = vmatpush.msra.mxu0 %v1109
      %1127 = vmatpush.msra.mxu0 %v1108
      %1128 = vmatpush.msra.mxu0 %v1107
      %1129 = vmatpush.msra.mxu0 %v1106
      %1130 = vmatpush.msra.mxu0 %v1105
      %1131 = vmatpush.msra.mxu0 %v1104
      %1132 = vmatpush.msra.mxu0 %v1103
      %1133 = vmatpush.msra.mxu0 %v1102
      %1134 = vmatmul.f32.gmra.mxu0 %v1069
      %v1135 = vpop.f32.mrf.mxu0
      %v1136 = vadd.f32 0.0, %v1135
      %1137 = vmatmul.f32.gmra.mxu0 %v1070
      %v1138 = vpop.f32.mrf.mxu0
      %v1139 = vadd.f32 0.0, %v1138
      %1140 = vmatmul.f32.gmra.mxu0 %v1071
      %v1141 = vpop.f32.mrf.mxu0
      %v1142 = vadd.f32 0.0, %v1141
      %1143 = vmatmul.f32.gmra.mxu0 %v1072
      %v1144 = vpop.f32.mrf.mxu0
      %v1145 = vadd.f32 0.0, %v1144
      %1146 = vmatmul.f32.gmra.mxu0 %v1073
      %v1147 = vpop.f32.mrf.mxu0
      %v1148 = vadd.f32 0.0, %v1147
      %1149 = vmatmul.f32.gmra.mxu0 %v1074
      %v1150 = vpop.f32.mrf.mxu0
      %v1151 = vadd.f32 0.0, %v1150
      %1152 = vmatmul.f32.gmra.mxu0 %v1075
      %v1153 = vpop.f32.mrf.mxu0
      %v1154 = vadd.f32 0.0, %v1153
      %1155 = vmatmul.f32.gmra.mxu0 %v1076
      %v1156 = vpop.f32.mrf.mxu0
      %v1157 = vadd.f32 0.0, %v1156
      %1158 = vmatmul.f32.gmra.mxu0 %v1077
      %v1159 = vpop.f32.mrf.mxu0
      %v1160 = vadd.f32 0.0, %v1159
      %1161 = vmatmul.f32.gmra.mxu0 %v1078
      %v1162 = vpop.f32.mrf.mxu0
      %v1163 = vadd.f32 0.0, %v1162
      %1164 = vmatmul.f32.gmra.mxu0 %v1079
      %v1165 = vpop.f32.mrf.mxu0
      %v1166 = vadd.f32 0.0, %v1165
      %1167 = vmatmul.f32.gmra.mxu0 %v1080
      %v1168 = vpop.f32.mrf.mxu0
      %v1169 = vadd.f32 0.0, %v1168
      %1170 = vmatmul.f32.gmra.mxu0 %v1081
      %v1171 = vpop.f32.mrf.mxu0
      %v1172 = vadd.f32 0.0, %v1171
      %1173 = vmatmul.f32.gmra.mxu0 %v1082
      %v1174 = vpop.f32.mrf.mxu0
      %v1175 = vadd.f32 0.0, %v1174
      %1176 = vmatmul.f32.gmra.mxu0 %v1083
      %v1177 = vpop.f32.mrf.mxu0
      %v1178 = vadd.f32 0.0, %v1177
      %1179 = vmatmul.f32.gmra.mxu0 %v1084
      %v1180 = vpop.f32.mrf.mxu0
      %v1181 = vadd.f32 0.0, %v1180
      %1182 = vmatmul.f32.gmra.mxu0 %v1085
      %v1183 = vpop.f32.mrf.mxu0
      %v1184 = vadd.f32 0.0, %v1183
      %1185 = vmatmul.f32.gmra.mxu0 %v1086
      %v1186 = vpop.f32.mrf.mxu0
      %v1187 = vadd.f32 0.0, %v1186
      %1188 = vmatmul.f32.gmra.mxu0 %v1087
      %v1189 = vpop.f32.mrf.mxu0
      %v1190 = vadd.f32 0.0, %v1189
      %1191 = vmatmul.f32.gmra.mxu0 %v1088
      %v1192 = vpop.f32.mrf.mxu0
      %v1193 = vadd.f32 0.0, %v1192
      %1194 = vmatmul.f32.gmra.mxu0 %v1089
      %v1195 = vpop.f32.mrf.mxu0
      %v1196 = vadd.f32 0.0, %v1195
      %1197 = vmatmul.f32.gmra.mxu0 %v1090
      %v1198 = vpop.f32.mrf.mxu0
      %v1199 = vadd.f32 0.0, %v1198
      %1200 = vmatmul.f32.gmra.mxu0 %v1091
      %v1201 = vpop.f32.mrf.mxu0
      %v1202 = vadd.f32 0.0, %v1201
      %1203 = vmatmul.f32.gmra.mxu0 %v1092
      %v1204 = vpop.f32.mrf.mxu0
      %v1205 = vadd.f32 0.0, %v1204
      %1206 = vmatmul.f32.gmra.mxu0 %v1093
      %v1207 = vpop.f32.mrf.mxu0
      %v1208 = vadd.f32 0.0, %v1207
      %1209 = vmatmul.f32.gmra.mxu0 %v1094
      %v1210 = vpop.f32.mrf.mxu0
      %v1211 = vadd.f32 0.0, %v1210
      %1212 = vmatmul.f32.gmra.mxu0 %v1095
      %v1213 = vpop.f32.mrf.mxu0
      %v1214 = vadd.f32 0.0, %v1213
      %1215 = vmatmul.f32.gmra.mxu0 %v1096
      %v1216 = vpop.f32.mrf.mxu0
      %v1217 = vadd.f32 0.0, %v1216
      %1218 = vmatmul.f32.gmra.mxu0 %v1097
      %v1219 = vpop.f32.mrf.mxu0
      %v1220 = vadd.f32 0.0, %v1219
      %1221 = vmatmul.f32.gmra.mxu0 %v1098
      %v1222 = vpop.f32.mrf.mxu0
      %v1223 = vadd.f32 0.0, %v1222
      %1224 = vmatmul.f32.gmra.mxu0 %v1099
      %v1225 = vpop.f32.mrf.mxu0
      %v1226 = vadd.f32 0.0, %v1225
      %1227 = vmatmul.f32.gmra.mxu0 %v1100
      %v1228 = vpop.f32.mrf.mxu0
      %v1229 = vadd.f32 0.0, %v1228
      %1230 = vdwg.mxu0
      %v1231 = vadd.f32 %v1037, %v1136
      %v1232 = vadd.f32 %v1038, %v1139
      %v1233 = vadd.f32 %v1039, %v1142
      %v1234 = vadd.f32 %v1040, %v1145
      %v1235 = vadd.f32 %v1041, %v1148
      %v1236 = vadd.f32 %v1042, %v1151
      %v1237 = vadd.f32 %v1043, %v1154
      %v1238 = vadd.f32 %v1044, %v1157
      %v1239 = vadd.f32 %v1045, %v1160
      %v1240 = vadd.f32 %v1046, %v1163
      %v1241 = vadd.f32 %v1047, %v1166
      %v1242 = vadd.f32 %v1048, %v1169
      %v1243 = vadd.f32 %v1049, %v1172
      %v1244 = vadd.f32 %v1050, %v1175
      %v1245 = vadd.f32 %v1051, %v1178
      %v1246 = vadd.f32 %v1052, %v1181
      %v1247 = vadd.f32 %v1053, %v1184
      %v1248 = vadd.f32 %v1054, %v1187
      %v1249 = vadd.f32 %v1055, %v1190
      %v1250 = vadd.f32 %v1056, %v1193
      %v1251 = vadd.f32 %v1057, %v1196
      %v1252 = vadd.f32 %v1058, %v1199
      %v1253 = vadd.f32 %v1059, %v1202
      %v1254 = vadd.f32 %v1060, %v1205
      %v1255 = vadd.f32 %v1061, %v1208
      %v1256 = vadd.f32 %v1062, %v1211
      %v1257 = vadd.f32 %v1063, %v1214
      %v1258 = vadd.f32 %v1064, %v1217
      %v1259 = vadd.f32 %v1065, %v1220
      %v1260 = vadd.f32 %v1066, %v1223
      %v1261 = vadd.f32 %v1067, %v1226
      %v1262 = vadd.f32 %v1068, %v1229
      %v1263 = vld [vmem:[%s257 + $0x2] sm:$0xff]
      %v1264 = vld [vmem:[%s257 + $0xa] sm:$0xff]
      %v1265 = vld [vmem:[%s257 + $0x1a] sm:$0xff]
      %v1266 = vld [vmem:[%s257 + $0x22] sm:$0xff]
      %v1267 = vld [vmem:[%s257 + $0x32] sm:$0xff]
      %v1268 = vld [vmem:[%s257 + $0x3a] sm:$0xff]
      %v1269 = vld [vmem:[%s257 + $0x4a] sm:$0xff]
      %v1270 = vld [vmem:[%s257 + $0x52] sm:$0xff]
      %v1271 = vld [vmem:[%s257 + $0x62] sm:$0xff]
      %v1272 = vld [vmem:[%s257 + $0x6a] sm:$0xff]
      %v1273 = vld [vmem:[%s257 + $0x7a] sm:$0xff]
      %v1274 = vld [vmem:[%s257 + $0x82] sm:$0xff]
      %v1275 = vld [vmem:[%s257 + $0x92] sm:$0xff]
      %v1276 = vld [vmem:[%s257 + $0x9a] sm:$0xff]
      %v1277 = vld [vmem:[%s257 + $0xaa] sm:$0xff]
      %v1278 = vld [vmem:[%s257 + $0xb2] sm:$0xff]
      %v1279 = vld [vmem:[%s257 + $0xc2] sm:$0xff]
      %v1280 = vld [vmem:[%s257 + $0xca] sm:$0xff]
      %v1281 = vld [vmem:[%s257 + $0xda] sm:$0xff]
      %v1282 = vld [vmem:[%s257 + $0xe2] sm:$0xff]
      %v1283 = vld [vmem:[%s257 + $0xf2] sm:$0xff]
      %v1284 = vld [vmem:[%s257 + $0xfa] sm:$0xff]
      %v1285 = vld [vmem:[%s257 + $0x10a] sm:$0xff]
      %v1286 = vld [vmem:[%s257 + $0x112] sm:$0xff]
      %v1287 = vld [vmem:[%s257 + $0x122] sm:$0xff]
      %v1288 = vld [vmem:[%s257 + $0x12a] sm:$0xff]
      %v1289 = vld [vmem:[%s257 + $0x13a] sm:$0xff]
      %v1290 = vld [vmem:[%s257 + $0x142] sm:$0xff]
      %v1291 = vld [vmem:[%s257 + $0x152] sm:$0xff]
      %v1292 = vld [vmem:[%s257 + $0x15a] sm:$0xff]
      %v1293 = vld [vmem:[%s257 + $0x16a] sm:$0xff]
      %v1294 = vld [vmem:[%s257 + $0x172] sm:$0xff]
      %s1295 = scalar_lea.vmem %s1, 640
      %v1296 = vld [vmem:[%s1295] sm:$0xff]
      %v1297 = vld [vmem:[%s1295 + $0x8] sm:$0xff]
      %v1298 = vld [vmem:[%s1295 + $0x10] sm:$0xff]
      %v1299 = vld [vmem:[%s1295 + $0x18] sm:$0xff]
      %v1300 = vld [vmem:[%s1295 + $0x20] sm:$0xff]
      %v1301 = vld [vmem:[%s1295 + $0x28] sm:$0xff]
      %v1302 = vld [vmem:[%s1295 + $0x30] sm:$0xff]
      %v1303 = vld [vmem:[%s1295 + $0x38] sm:$0xff]
      %v1304 = vld [vmem:[%s1295 + $0x40] sm:$0xff]
      %v1305 = vld [vmem:[%s1295 + $0x48] sm:$0xff]
      %v1306 = vld [vmem:[%s1295 + $0x50] sm:$0xff]
      %v1307 = vld [vmem:[%s1295 + $0x58] sm:$0xff]
      %v1308 = vld [vmem:[%s1295 + $0x60] sm:$0xff]
      %v1309 = vld [vmem:[%s1295 + $0x68] sm:$0xff]
      %v1310 = vld [vmem:[%s1295 + $0x70] sm:$0xff]
      %v1311 = vld [vmem:[%s1295 + $0x78] sm:$0xff]
      %1312 = vmatpush.msra.mxu0 %v1311
      %1313 = vmatpush.msra.mxu0 %v1310
      %1314 = vmatpush.msra.mxu0 %v1309
      %1315 = vmatpush.msra.mxu0 %v1308
      %1316 = vmatpush.msra.mxu0 %v1307
      %1317 = vmatpush.msra.mxu0 %v1306
      %1318 = vmatpush.msra.mxu0 %v1305
      %1319 = vmatpush.msra.mxu0 %v1304
      %1320 = vmatpush.msra.mxu0 %v1303
      %1321 = vmatpush.msra.mxu0 %v1302
      %1322 = vmatpush.msra.mxu0 %v1301
      %1323 = vmatpush.msra.mxu0 %v1300
      %1324 = vmatpush.msra.mxu0 %v1299
      %1325 = vmatpush.msra.mxu0 %v1298
      %1326 = vmatpush.msra.mxu0 %v1297
      %1327 = vmatpush.msra.mxu0 %v1296
      %1328 = vmatmul.f32.gmra.mxu0 %v1263
      %v1329 = vpop.f32.mrf.mxu0
      %v1330 = vadd.f32 0.0, %v1329
      %1331 = vmatmul.f32.gmra.mxu0 %v1264
      %v1332 = vpop.f32.mrf.mxu0
      %v1333 = vadd.f32 0.0, %v1332
      %1334 = vmatmul.f32.gmra.mxu0 %v1265
      %v1335 = vpop.f32.mrf.mxu0
      %v1336 = vadd.f32 0.0, %v1335
      %1337 = vmatmul.f32.gmra.mxu0 %v1266
      %v1338 = vpop.f32.mrf.mxu0
      %v1339 = vadd.f32 0.0, %v1338
      %1340 = vmatmul.f32.gmra.mxu0 %v1267
      %v1341 = vpop.f32.mrf.mxu0
      %v1342 = vadd.f32 0.0, %v1341
      %1343 = vmatmul.f32.gmra.mxu0 %v1268
      %v1344 = vpop.f32.mrf.mxu0
      %v1345 = vadd.f32 0.0, %v1344
      %1346 = vmatmul.f32.gmra.mxu0 %v1269
      %v1347 = vpop.f32.mrf.mxu0
      %v1348 = vadd.f32 0.0, %v1347
      %1349 = vmatmul.f32.gmra.mxu0 %v1270
      %v1350 = vpop.f32.mrf.mxu0
      %v1351 = vadd.f32 0.0, %v1350
      %1352 = vmatmul.f32.gmra.mxu0 %v1271
      %v1353 = vpop.f32.mrf.mxu0
      %v1354 = vadd.f32 0.0, %v1353
      %1355 = vmatmul.f32.gmra.mxu0 %v1272
      %v1356 = vpop.f32.mrf.mxu0
      %v1357 = vadd.f32 0.0, %v1356
      %1358 = vmatmul.f32.gmra.mxu0 %v1273
      %v1359 = vpop.f32.mrf.mxu0
      %v1360 = vadd.f32 0.0, %v1359
      %1361 = vmatmul.f32.gmra.mxu0 %v1274
      %v1362 = vpop.f32.mrf.mxu0
      %v1363 = vadd.f32 0.0, %v1362
      %1364 = vmatmul.f32.gmra.mxu0 %v1275
      %v1365 = vpop.f32.mrf.mxu0
      %v1366 = vadd.f32 0.0, %v1365
      %1367 = vmatmul.f32.gmra.mxu0 %v1276
      %v1368 = vpop.f32.mrf.mxu0
      %v1369 = vadd.f32 0.0, %v1368
      %1370 = vmatmul.f32.gmra.mxu0 %v1277
      %v1371 = vpop.f32.mrf.mxu0
      %v1372 = vadd.f32 0.0, %v1371
      %1373 = vmatmul.f32.gmra.mxu0 %v1278
      %v1374 = vpop.f32.mrf.mxu0
      %v1375 = vadd.f32 0.0, %v1374
      %1376 = vmatmul.f32.gmra.mxu0 %v1279
      %v1377 = vpop.f32.mrf.mxu0
      %v1378 = vadd.f32 0.0, %v1377
      %1379 = vmatmul.f32.gmra.mxu0 %v1280
      %v1380 = vpop.f32.mrf.mxu0
      %v1381 = vadd.f32 0.0, %v1380
      %1382 = vmatmul.f32.gmra.mxu0 %v1281
      %v1383 = vpop.f32.mrf.mxu0
      %v1384 = vadd.f32 0.0, %v1383
      %1385 = vmatmul.f32.gmra.mxu0 %v1282
      %v1386 = vpop.f32.mrf.mxu0
      %v1387 = vadd.f32 0.0, %v1386
      %1388 = vmatmul.f32.gmra.mxu0 %v1283
      %v1389 = vpop.f32.mrf.mxu0
      %v1390 = vadd.f32 0.0, %v1389
      %1391 = vmatmul.f32.gmra.mxu0 %v1284
      %v1392 = vpop.f32.mrf.mxu0
      %v1393 = vadd.f32 0.0, %v1392
      %1394 = vmatmul.f32.gmra.mxu0 %v1285
      %v1395 = vpop.f32.mrf.mxu0
      %v1396 = vadd.f32 0.0, %v1395
      %1397 = vmatmul.f32.gmra.mxu0 %v1286
      %v1398 = vpop.f32.mrf.mxu0
      %v1399 = vadd.f32 0.0, %v1398
      %1400 = vmatmul.f32.gmra.mxu0 %v1287
      %v1401 = vpop.f32.mrf.mxu0
      %v1402 = vadd.f32 0.0, %v1401
      %1403 = vmatmul.f32.gmra.mxu0 %v1288
      %v1404 = vpop.f32.mrf.mxu0
      %v1405 = vadd.f32 0.0, %v1404
      %1406 = vmatmul.f32.gmra.mxu0 %v1289
      %v1407 = vpop.f32.mrf.mxu0
      %v1408 = vadd.f32 0.0, %v1407
      %1409 = vmatmul.f32.gmra.mxu0 %v1290
      %v1410 = vpop.f32.mrf.mxu0
      %v1411 = vadd.f32 0.0, %v1410
      %1412 = vmatmul.f32.gmra.mxu0 %v1291
      %v1413 = vpop.f32.mrf.mxu0
      %v1414 = vadd.f32 0.0, %v1413
      %1415 = vmatmul.f32.gmra.mxu0 %v1292
      %v1416 = vpop.f32.mrf.mxu0
      %v1417 = vadd.f32 0.0, %v1416
      %1418 = vmatmul.f32.gmra.mxu0 %v1293
      %v1419 = vpop.f32.mrf.mxu0
      %v1420 = vadd.f32 0.0, %v1419
      %1421 = vmatmul.f32.gmra.mxu0 %v1294
      %v1422 = vpop.f32.mrf.mxu0
      %v1423 = vadd.f32 0.0, %v1422
      %1424 = vdwg.mxu0
      %v1425 = vadd.f32 %v1231, %v1330
      %v1426 = vadd.f32 %v1232, %v1333
      %v1427 = vadd.f32 %v1233, %v1336
      %v1428 = vadd.f32 %v1234, %v1339
      %v1429 = vadd.f32 %v1235, %v1342
      %v1430 = vadd.f32 %v1236, %v1345
      %v1431 = vadd.f32 %v1237, %v1348
      %v1432 = vadd.f32 %v1238, %v1351
      %v1433 = vadd.f32 %v1239, %v1354
      %v1434 = vadd.f32 %v1240, %v1357
      %v1435 = vadd.f32 %v1241, %v1360
      %v1436 = vadd.f32 %v1242, %v1363
      %v1437 = vadd.f32 %v1243, %v1366
      %v1438 = vadd.f32 %v1244, %v1369
      %v1439 = vadd.f32 %v1245, %v1372
      %v1440 = vadd.f32 %v1246, %v1375
      %v1441 = vadd.f32 %v1247, %v1378
      %v1442 = vadd.f32 %v1248, %v1381
      %v1443 = vadd.f32 %v1249, %v1384
      %v1444 = vadd.f32 %v1250, %v1387
      %v1445 = vadd.f32 %v1251, %v1390
      %v1446 = vadd.f32 %v1252, %v1393
      %v1447 = vadd.f32 %v1253, %v1396
      %v1448 = vadd.f32 %v1254, %v1399
      %v1449 = vadd.f32 %v1255, %v1402
      %v1450 = vadd.f32 %v1256, %v1405
      %v1451 = vadd.f32 %v1257, %v1408
      %v1452 = vadd.f32 %v1258, %v1411
      %v1453 = vadd.f32 %v1259, %v1414
      %v1454 = vadd.f32 %v1260, %v1417
      %v1455 = vadd.f32 %v1261, %v1420
      %v1456 = vadd.f32 %v1262, %v1423
      %s1457 = scalar_lea.vmem [#allocation2], 48
      %v1458 = vld [vmem:[%s1457] sm:$0xff]
      %v1459 = vld [vmem:[%s1457 + $0x8] sm:$0xff]
      %v1460 = vld [vmem:[%s1457 + $0x18] sm:$0xff]
      %v1461 = vld [vmem:[%s1457 + $0x20] sm:$0xff]
      %v1462 = vld [vmem:[%s1457 + $0x30] sm:$0xff]
      %v1463 = vld [vmem:[%s1457 + $0x38] sm:$0xff]
      %v1464 = vld [vmem:[%s1457 + $0x48] sm:$0xff]
      %v1465 = vld [vmem:[%s1457 + $0x50] sm:$0xff]
      %v1466 = vld [vmem:[%s1457 + $0x60] sm:$0xff]
      %v1467 = vld [vmem:[%s1457 + $0x68] sm:$0xff]
      %v1468 = vld [vmem:[%s1457 + $0x78] sm:$0xff]
      %v1469 = vld [vmem:[%s1457 + $0x80] sm:$0xff]
      %v1470 = vld [vmem:[%s1457 + $0x90] sm:$0xff]
      %v1471 = vld [vmem:[%s1457 + $0x98] sm:$0xff]
      %v1472 = vld [vmem:[%s1457 + $0xa8] sm:$0xff]
      %v1473 = vld [vmem:[%s1457 + $0xb0] sm:$0xff]
      %v1474 = vld [vmem:[%s1457 + $0xc0] sm:$0xff]
      %v1475 = vld [vmem:[%s1457 + $0xc8] sm:$0xff]
      %v1476 = vld [vmem:[%s1457 + $0xd8] sm:$0xff]
      %v1477 = vld [vmem:[%s1457 + $0xe0] sm:$0xff]
      %v1478 = vld [vmem:[%s1457 + $0xf0] sm:$0xff]
      %v1479 = vld [vmem:[%s1457 + $0xf8] sm:$0xff]
      %v1480 = vld [vmem:[%s1457 + $0x108] sm:$0xff]
      %v1481 = vld [vmem:[%s1457 + $0x110] sm:$0xff]
      %v1482 = vld [vmem:[%s1457 + $0x120] sm:$0xff]
      %v1483 = vld [vmem:[%s1457 + $0x128] sm:$0xff]
      %v1484 = vld [vmem:[%s1457 + $0x138] sm:$0xff]
      %v1485 = vld [vmem:[%s1457 + $0x140] sm:$0xff]
      %v1486 = vld [vmem:[%s1457 + $0x150] sm:$0xff]
      %v1487 = vld [vmem:[%s1457 + $0x158] sm:$0xff]
      %v1488 = vld [vmem:[%s1457 + $0x168] sm:$0xff]
      %v1489 = vld [vmem:[%s1457 + $0x170] sm:$0xff]
      %s1490 = scalar_lea.vmem %s1, 768
      %v1491 = vld [vmem:[%s1490] sm:$0xff]
      %v1492 = vld [vmem:[%s1490 + $0x8] sm:$0xff]
      %v1493 = vld [vmem:[%s1490 + $0x10] sm:$0xff]
      %v1494 = vld [vmem:[%s1490 + $0x18] sm:$0xff]
      %v1495 = vld [vmem:[%s1490 + $0x20] sm:$0xff]
      %v1496 = vld [vmem:[%s1490 + $0x28] sm:$0xff]
      %v1497 = vld [vmem:[%s1490 + $0x30] sm:$0xff]
      %v1498 = vld [vmem:[%s1490 + $0x38] sm:$0xff]
      %v1499 = vld [vmem:[%s1490 + $0x40] sm:$0xff]
      %v1500 = vld [vmem:[%s1490 + $0x48] sm:$0xff]
      %v1501 = vld [vmem:[%s1490 + $0x50] sm:$0xff]
      %v1502 = vld [vmem:[%s1490 + $0x58] sm:$0xff]
      %v1503 = vld [vmem:[%s1490 + $0x60] sm:$0xff]
      %v1504 = vld [vmem:[%s1490 + $0x68] sm:$0xff]
      %v1505 = vld [vmem:[%s1490 + $0x70] sm:$0xff]
      %v1506 = vld [vmem:[%s1490 + $0x78] sm:$0xff]
      %1507 = vmatpush.msra.mxu0 %v1506
      %1508 = vmatpush.msra.mxu0 %v1505
      %1509 = vmatpush.msra.mxu0 %v1504
      %1510 = vmatpush.msra.mxu0 %v1503
      %1511 = vmatpush.msra.mxu0 %v1502
      %1512 = vmatpush.msra.mxu0 %v1501
      %1513 = vmatpush.msra.mxu0 %v1500
      %1514 = vmatpush.msra.mxu0 %v1499
      %1515 = vmatpush.msra.mxu0 %v1498
      %1516 = vmatpush.msra.mxu0 %v1497
      %1517 = vmatpush.msra.mxu0 %v1496
      %1518 = vmatpush.msra.mxu0 %v1495
      %1519 = vmatpush.msra.mxu0 %v1494
      %1520 = vmatpush.msra.mxu0 %v1493
      %1521 = vmatpush.msra.mxu0 %v1492
      %1522 = vmatpush.msra.mxu0 %v1491
      %1523 = vmatmul.f32.gmra.mxu0 %v1458
      %v1524 = vpop.f32.mrf.mxu0
      %v1525 = vadd.f32 0.0, %v1524
      %1526 = vmatmul.f32.gmra.mxu0 %v1459
      %v1527 = vpop.f32.mrf.mxu0
      %v1528 = vadd.f32 0.0, %v1527
      %1529 = vmatmul.f32.gmra.mxu0 %v1460
      %v1530 = vpop.f32.mrf.mxu0
      %v1531 = vadd.f32 0.0, %v1530
      %1532 = vmatmul.f32.gmra.mxu0 %v1461
      %v1533 = vpop.f32.mrf.mxu0
      %v1534 = vadd.f32 0.0, %v1533
      %1535 = vmatmul.f32.gmra.mxu0 %v1462
      %v1536 = vpop.f32.mrf.mxu0
      %v1537 = vadd.f32 0.0, %v1536
      %1538 = vmatmul.f32.gmra.mxu0 %v1463
      %v1539 = vpop.f32.mrf.mxu0
      %v1540 = vadd.f32 0.0, %v1539
      %1541 = vmatmul.f32.gmra.mxu0 %v1464
      %v1542 = vpop.f32.mrf.mxu0
      %v1543 = vadd.f32 0.0, %v1542
      %1544 = vmatmul.f32.gmra.mxu0 %v1465
      %v1545 = vpop.f32.mrf.mxu0
      %v1546 = vadd.f32 0.0, %v1545
      %1547 = vmatmul.f32.gmra.mxu0 %v1466
      %v1548 = vpop.f32.mrf.mxu0
      %v1549 = vadd.f32 0.0, %v1548
      %1550 = vmatmul.f32.gmra.mxu0 %v1467
      %v1551 = vpop.f32.mrf.mxu0
      %v1552 = vadd.f32 0.0, %v1551
      %1553 = vmatmul.f32.gmra.mxu0 %v1468
      %v1554 = vpop.f32.mrf.mxu0
      %v1555 = vadd.f32 0.0, %v1554
      %1556 = vmatmul.f32.gmra.mxu0 %v1469
      %v1557 = vpop.f32.mrf.mxu0
      %v1558 = vadd.f32 0.0, %v1557
      %1559 = vmatmul.f32.gmra.mxu0 %v1470
      %v1560 = vpop.f32.mrf.mxu0
      %v1561 = vadd.f32 0.0, %v1560
      %1562 = vmatmul.f32.gmra.mxu0 %v1471
      %v1563 = vpop.f32.mrf.mxu0
      %v1564 = vadd.f32 0.0, %v1563
      %1565 = vmatmul.f32.gmra.mxu0 %v1472
      %v1566 = vpop.f32.mrf.mxu0
      %v1567 = vadd.f32 0.0, %v1566
      %1568 = vmatmul.f32.gmra.mxu0 %v1473
      %v1569 = vpop.f32.mrf.mxu0
      %v1570 = vadd.f32 0.0, %v1569
      %1571 = vmatmul.f32.gmra.mxu0 %v1474
      %v1572 = vpop.f32.mrf.mxu0
      %v1573 = vadd.f32 0.0, %v1572
      %1574 = vmatmul.f32.gmra.mxu0 %v1475
      %v1575 = vpop.f32.mrf.mxu0
      %v1576 = vadd.f32 0.0, %v1575
      %1577 = vmatmul.f32.gmra.mxu0 %v1476
      %v1578 = vpop.f32.mrf.mxu0
      %v1579 = vadd.f32 0.0, %v1578
      %1580 = vmatmul.f32.gmra.mxu0 %v1477
      %v1581 = vpop.f32.mrf.mxu0
      %v1582 = vadd.f32 0.0, %v1581
      %1583 = vmatmul.f32.gmra.mxu0 %v1478
      %v1584 = vpop.f32.mrf.mxu0
      %v1585 = vadd.f32 0.0, %v1584
      %1586 = vmatmul.f32.gmra.mxu0 %v1479
      %v1587 = vpop.f32.mrf.mxu0
      %v1588 = vadd.f32 0.0, %v1587
      %1589 = vmatmul.f32.gmra.mxu0 %v1480
      %v1590 = vpop.f32.mrf.mxu0
      %v1591 = vadd.f32 0.0, %v1590
      %1592 = vmatmul.f32.gmra.mxu0 %v1481
      %v1593 = vpop.f32.mrf.mxu0
      %v1594 = vadd.f32 0.0, %v1593
      %1595 = vmatmul.f32.gmra.mxu0 %v1482
      %v1596 = vpop.f32.mrf.mxu0
      %v1597 = vadd.f32 0.0, %v1596
      %1598 = vmatmul.f32.gmra.mxu0 %v1483
      %v1599 = vpop.f32.mrf.mxu0
      %v1600 = vadd.f32 0.0, %v1599
      %1601 = vmatmul.f32.gmra.mxu0 %v1484
      %v1602 = vpop.f32.mrf.mxu0
      %v1603 = vadd.f32 0.0, %v1602
      %1604 = vmatmul.f32.gmra.mxu0 %v1485
      %v1605 = vpop.f32.mrf.mxu0
      %v1606 = vadd.f32 0.0, %v1605
      %1607 = vmatmul.f32.gmra.mxu0 %v1486
      %v1608 = vpop.f32.mrf.mxu0
      %v1609 = vadd.f32 0.0, %v1608
      %1610 = vmatmul.f32.gmra.mxu0 %v1487
      %v1611 = vpop.f32.mrf.mxu0
      %v1612 = vadd.f32 0.0, %v1611
      %1613 = vmatmul.f32.gmra.mxu0 %v1488
      %v1614 = vpop.f32.mrf.mxu0
      %v1615 = vadd.f32 0.0, %v1614
      %1616 = vmatmul.f32.gmra.mxu0 %v1489
      %v1617 = vpop.f32.mrf.mxu0
      %v1618 = vadd.f32 0.0, %v1617
      %1619 = vdwg.mxu0
      %v1620 = vadd.f32 %v1425, %v1525
      %v1621 = vadd.f32 %v1426, %v1528
      %v1622 = vadd.f32 %v1427, %v1531
      %v1623 = vadd.f32 %v1428, %v1534
      %v1624 = vadd.f32 %v1429, %v1537
      %v1625 = vadd.f32 %v1430, %v1540
      %v1626 = vadd.f32 %v1431, %v1543
      %v1627 = vadd.f32 %v1432, %v1546
      %v1628 = vadd.f32 %v1433, %v1549
      %v1629 = vadd.f32 %v1434, %v1552
      %v1630 = vadd.f32 %v1435, %v1555
      %v1631 = vadd.f32 %v1436, %v1558
      %v1632 = vadd.f32 %v1437, %v1561
      %v1633 = vadd.f32 %v1438, %v1564
      %v1634 = vadd.f32 %v1439, %v1567
      %v1635 = vadd.f32 %v1440, %v1570
      %v1636 = vadd.f32 %v1441, %v1573
      %v1637 = vadd.f32 %v1442, %v1576
      %v1638 = vadd.f32 %v1443, %v1579
      %v1639 = vadd.f32 %v1444, %v1582
      %v1640 = vadd.f32 %v1445, %v1585
      %v1641 = vadd.f32 %v1446, %v1588
      %v1642 = vadd.f32 %v1447, %v1591
      %v1643 = vadd.f32 %v1448, %v1594
      %v1644 = vadd.f32 %v1449, %v1597
      %v1645 = vadd.f32 %v1450, %v1600
      %v1646 = vadd.f32 %v1451, %v1603
      %v1647 = vadd.f32 %v1452, %v1606
      %v1648 = vadd.f32 %v1453, %v1609
      %v1649 = vadd.f32 %v1454, %v1612
      %v1650 = vadd.f32 %v1455, %v1615
      %v1651 = vadd.f32 %v1456, %v1618
      %v1652 = vld [vmem:[%s1457 + $0x1] sm:$0xff]
      %v1653 = vld [vmem:[%s1457 + $0x9] sm:$0xff]
      %v1654 = vld [vmem:[%s1457 + $0x19] sm:$0xff]
      %v1655 = vld [vmem:[%s1457 + $0x21] sm:$0xff]
      %v1656 = vld [vmem:[%s1457 + $0x31] sm:$0xff]
      %v1657 = vld [vmem:[%s1457 + $0x39] sm:$0xff]
      %v1658 = vld [vmem:[%s1457 + $0x49] sm:$0xff]
      %v1659 = vld [vmem:[%s1457 + $0x51] sm:$0xff]
      %v1660 = vld [vmem:[%s1457 + $0x61] sm:$0xff]
      %v1661 = vld [vmem:[%s1457 + $0x69] sm:$0xff]
      %v1662 = vld [vmem:[%s1457 + $0x79] sm:$0xff]
      %v1663 = vld [vmem:[%s1457 + $0x81] sm:$0xff]
      %v1664 = vld [vmem:[%s1457 + $0x91] sm:$0xff]
      %v1665 = vld [vmem:[%s1457 + $0x99] sm:$0xff]
      %v1666 = vld [vmem:[%s1457 + $0xa9] sm:$0xff]
      %v1667 = vld [vmem:[%s1457 + $0xb1] sm:$0xff]
      %v1668 = vld [vmem:[%s1457 + $0xc1] sm:$0xff]
      %v1669 = vld [vmem:[%s1457 + $0xc9] sm:$0xff]
      %v1670 = vld [vmem:[%s1457 + $0xd9] sm:$0xff]
      %v1671 = vld [vmem:[%s1457 + $0xe1] sm:$0xff]
      %v1672 = vld [vmem:[%s1457 + $0xf1] sm:$0xff]
      %v1673 = vld [vmem:[%s1457 + $0xf9] sm:$0xff]
      %v1674 = vld [vmem:[%s1457 + $0x109] sm:$0xff]
      %v1675 = vld [vmem:[%s1457 + $0x111] sm:$0xff]
      %v1676 = vld [vmem:[%s1457 + $0x121] sm:$0xff]
      %v1677 = vld [vmem:[%s1457 + $0x129] sm:$0xff]
      %v1678 = vld [vmem:[%s1457 + $0x139] sm:$0xff]
      %v1679 = vld [vmem:[%s1457 + $0x141] sm:$0xff]
      %v1680 = vld [vmem:[%s1457 + $0x151] sm:$0xff]
      %v1681 = vld [vmem:[%s1457 + $0x159] sm:$0xff]
      %v1682 = vld [vmem:[%s1457 + $0x169] sm:$0xff]
      %v1683 = vld [vmem:[%s1457 + $0x171] sm:$0xff]
      %s1684 = scalar_lea.vmem %s1, 896
      %v1685 = vld [vmem:[%s1684] sm:$0xff]
      %v1686 = vld [vmem:[%s1684 + $0x8] sm:$0xff]
      %v1687 = vld [vmem:[%s1684 + $0x10] sm:$0xff]
      %v1688 = vld [vmem:[%s1684 + $0x18] sm:$0xff]
      %v1689 = vld [vmem:[%s1684 + $0x20] sm:$0xff]
      %v1690 = vld [vmem:[%s1684 + $0x28] sm:$0xff]
      %v1691 = vld [vmem:[%s1684 + $0x30] sm:$0xff]
      %v1692 = vld [vmem:[%s1684 + $0x38] sm:$0xff]
      %v1693 = vld [vmem:[%s1684 + $0x40] sm:$0xff]
      %v1694 = vld [vmem:[%s1684 + $0x48] sm:$0xff]
      %v1695 = vld [vmem:[%s1684 + $0x50] sm:$0xff]
      %v1696 = vld [vmem:[%s1684 + $0x58] sm:$0xff]
      %v1697 = vld [vmem:[%s1684 + $0x60] sm:$0xff]
      %v1698 = vld [vmem:[%s1684 + $0x68] sm:$0xff]
      %v1699 = vld [vmem:[%s1684 + $0x70] sm:$0xff]
      %v1700 = vld [vmem:[%s1684 + $0x78] sm:$0xff]
      %1701 = vmatpush.msra.mxu0 %v1700
      %1702 = vmatpush.msra.mxu0 %v1699
      %1703 = vmatpush.msra.mxu0 %v1698
      %1704 = vmatpush.msra.mxu0 %v1697
      %1705 = vmatpush.msra.mxu0 %v1696
      %1706 = vmatpush.msra.mxu0 %v1695
      %1707 = vmatpush.msra.mxu0 %v1694
      %1708 = vmatpush.msra.mxu0 %v1693
      %1709 = vmatpush.msra.mxu0 %v1692
      %1710 = vmatpush.msra.mxu0 %v1691
      %1711 = vmatpush.msra.mxu0 %v1690
      %1712 = vmatpush.msra.mxu0 %v1689
      %1713 = vmatpush.msra.mxu0 %v1688
      %1714 = vmatpush.msra.mxu0 %v1687
      %1715 = vmatpush.msra.mxu0 %v1686
      %1716 = vmatpush.msra.mxu0 %v1685
      %1717 = vmatmul.f32.gmra.mxu0 %v1652
      %v1718 = vpop.f32.mrf.mxu0
      %v1719 = vadd.f32 0.0, %v1718
      %1720 = vmatmul.f32.gmra.mxu0 %v1653
      %v1721 = vpop.f32.mrf.mxu0
      %v1722 = vadd.f32 0.0, %v1721
      %1723 = vmatmul.f32.gmra.mxu0 %v1654
      %v1724 = vpop.f32.mrf.mxu0
      %v1725 = vadd.f32 0.0, %v1724
      %1726 = vmatmul.f32.gmra.mxu0 %v1655
      %v1727 = vpop.f32.mrf.mxu0
      %v1728 = vadd.f32 0.0, %v1727
      %1729 = vmatmul.f32.gmra.mxu0 %v1656
      %v1730 = vpop.f32.mrf.mxu0
      %v1731 = vadd.f32 0.0, %v1730
      %1732 = vmatmul.f32.gmra.mxu0 %v1657
      %v1733 = vpop.f32.mrf.mxu0
      %v1734 = vadd.f32 0.0, %v1733
      %1735 = vmatmul.f32.gmra.mxu0 %v1658
      %v1736 = vpop.f32.mrf.mxu0
      %v1737 = vadd.f32 0.0, %v1736
      %1738 = vmatmul.f32.gmra.mxu0 %v1659
      %v1739 = vpop.f32.mrf.mxu0
      %v1740 = vadd.f32 0.0, %v1739
      %1741 = vmatmul.f32.gmra.mxu0 %v1660
      %v1742 = vpop.f32.mrf.mxu0
      %v1743 = vadd.f32 0.0, %v1742
      %1744 = vmatmul.f32.gmra.mxu0 %v1661
      %v1745 = vpop.f32.mrf.mxu0
      %v1746 = vadd.f32 0.0, %v1745
      %1747 = vmatmul.f32.gmra.mxu0 %v1662
      %v1748 = vpop.f32.mrf.mxu0
      %v1749 = vadd.f32 0.0, %v1748
      %1750 = vmatmul.f32.gmra.mxu0 %v1663
      %v1751 = vpop.f32.mrf.mxu0
      %v1752 = vadd.f32 0.0, %v1751
      %1753 = vmatmul.f32.gmra.mxu0 %v1664
      %v1754 = vpop.f32.mrf.mxu0
      %v1755 = vadd.f32 0.0, %v1754
      %1756 = vmatmul.f32.gmra.mxu0 %v1665
      %v1757 = vpop.f32.mrf.mxu0
      %v1758 = vadd.f32 0.0, %v1757
      %1759 = vmatmul.f32.gmra.mxu0 %v1666
      %v1760 = vpop.f32.mrf.mxu0
      %v1761 = vadd.f32 0.0, %v1760
      %1762 = vmatmul.f32.gmra.mxu0 %v1667
      %v1763 = vpop.f32.mrf.mxu0
      %v1764 = vadd.f32 0.0, %v1763
      %1765 = vmatmul.f32.gmra.mxu0 %v1668
      %v1766 = vpop.f32.mrf.mxu0
      %v1767 = vadd.f32 0.0, %v1766
      %1768 = vmatmul.f32.gmra.mxu0 %v1669
      %v1769 = vpop.f32.mrf.mxu0
      %v1770 = vadd.f32 0.0, %v1769
      %1771 = vmatmul.f32.gmra.mxu0 %v1670
      %v1772 = vpop.f32.mrf.mxu0
      %v1773 = vadd.f32 0.0, %v1772
      %1774 = vmatmul.f32.gmra.mxu0 %v1671
      %v1775 = vpop.f32.mrf.mxu0
      %v1776 = vadd.f32 0.0, %v1775
      %1777 = vmatmul.f32.gmra.mxu0 %v1672
      %v1778 = vpop.f32.mrf.mxu0
      %v1779 = vadd.f32 0.0, %v1778
      %1780 = vmatmul.f32.gmra.mxu0 %v1673
      %v1781 = vpop.f32.mrf.mxu0
      %v1782 = vadd.f32 0.0, %v1781
      %1783 = vmatmul.f32.gmra.mxu0 %v1674
      %v1784 = vpop.f32.mrf.mxu0
      %v1785 = vadd.f32 0.0, %v1784
      %1786 = vmatmul.f32.gmra.mxu0 %v1675
      %v1787 = vpop.f32.mrf.mxu0
      %v1788 = vadd.f32 0.0, %v1787
      %1789 = vmatmul.f32.gmra.mxu0 %v1676
      %v1790 = vpop.f32.mrf.mxu0
      %v1791 = vadd.f32 0.0, %v1790
      %1792 = vmatmul.f32.gmra.mxu0 %v1677
      %v1793 = vpop.f32.mrf.mxu0
      %v1794 = vadd.f32 0.0, %v1793
      %1795 = vmatmul.f32.gmra.mxu0 %v1678
      %v1796 = vpop.f32.mrf.mxu0
      %v1797 = vadd.f32 0.0, %v1796
      %1798 = vmatmul.f32.gmra.mxu0 %v1679
      %v1799 = vpop.f32.mrf.mxu0
      %v1800 = vadd.f32 0.0, %v1799
      %1801 = vmatmul.f32.gmra.mxu0 %v1680
      %v1802 = vpop.f32.mrf.mxu0
      %v1803 = vadd.f32 0.0, %v1802
      %1804 = vmatmul.f32.gmra.mxu0 %v1681
      %v1805 = vpop.f32.mrf.mxu0
      %v1806 = vadd.f32 0.0, %v1805
      %1807 = vmatmul.f32.gmra.mxu0 %v1682
      %v1808 = vpop.f32.mrf.mxu0
      %v1809 = vadd.f32 0.0, %v1808
      %1810 = vmatmul.f32.gmra.mxu0 %v1683
      %v1811 = vpop.f32.mrf.mxu0
      %v1812 = vadd.f32 0.0, %v1811
      %1813 = vdwg.mxu0
      %v1814 = vadd.f32 %v1620, %v1719
      %v1815 = vadd.f32 %v1621, %v1722
      %v1816 = vadd.f32 %v1622, %v1725
      %v1817 = vadd.f32 %v1623, %v1728
      %v1818 = vadd.f32 %v1624, %v1731
      %v1819 = vadd.f32 %v1625, %v1734
      %v1820 = vadd.f32 %v1626, %v1737
      %v1821 = vadd.f32 %v1627, %v1740
      %v1822 = vadd.f32 %v1628, %v1743
      %v1823 = vadd.f32 %v1629, %v1746
      %v1824 = vadd.f32 %v1630, %v1749
      %v1825 = vadd.f32 %v1631, %v1752
      %v1826 = vadd.f32 %v1632, %v1755
      %v1827 = vadd.f32 %v1633, %v1758
      %v1828 = vadd.f32 %v1634, %v1761
      %v1829 = vadd.f32 %v1635, %v1764
      %v1830 = vadd.f32 %v1636, %v1767
      %v1831 = vadd.f32 %v1637, %v1770
      %v1832 = vadd.f32 %v1638, %v1773
      %v1833 = vadd.f32 %v1639, %v1776
      %v1834 = vadd.f32 %v1640, %v1779
      %v1835 = vadd.f32 %v1641, %v1782
      %v1836 = vadd.f32 %v1642, %v1785
      %v1837 = vadd.f32 %v1643, %v1788
      %v1838 = vadd.f32 %v1644, %v1791
      %v1839 = vadd.f32 %v1645, %v1794
      %v1840 = vadd.f32 %v1646, %v1797
      %v1841 = vadd.f32 %v1647, %v1800
      %v1842 = vadd.f32 %v1648, %v1803
      %v1843 = vadd.f32 %v1649, %v1806
      %v1844 = vadd.f32 %v1650, %v1809
      %v1845 = vadd.f32 %v1651, %v1812
      %v1846 = vld [vmem:[%s1457 + $0x2] sm:$0xff]
      %v1847 = vld [vmem:[%s1457 + $0xa] sm:$0xff]
      %v1848 = vld [vmem:[%s1457 + $0x1a] sm:$0xff]
      %v1849 = vld [vmem:[%s1457 + $0x22] sm:$0xff]
      %v1850 = vld [vmem:[%s1457 + $0x32] sm:$0xff]
      %v1851 = vld [vmem:[%s1457 + $0x3a] sm:$0xff]
      %v1852 = vld [vmem:[%s1457 + $0x4a] sm:$0xff]
      %v1853 = vld [vmem:[%s1457 + $0x52] sm:$0xff]
      %v1854 = vld [vmem:[%s1457 + $0x62] sm:$0xff]
      %v1855 = vld [vmem:[%s1457 + $0x6a] sm:$0xff]
      %v1856 = vld [vmem:[%s1457 + $0x7a] sm:$0xff]
      %v1857 = vld [vmem:[%s1457 + $0x82] sm:$0xff]
      %v1858 = vld [vmem:[%s1457 + $0x92] sm:$0xff]
      %v1859 = vld [vmem:[%s1457 + $0x9a] sm:$0xff]
      %v1860 = vld [vmem:[%s1457 + $0xaa] sm:$0xff]
      %v1861 = vld [vmem:[%s1457 + $0xb2] sm:$0xff]
      %v1862 = vld [vmem:[%s1457 + $0xc2] sm:$0xff]
      %v1863 = vld [vmem:[%s1457 + $0xca] sm:$0xff]
      %v1864 = vld [vmem:[%s1457 + $0xda] sm:$0xff]
      %v1865 = vld [vmem:[%s1457 + $0xe2] sm:$0xff]
      %v1866 = vld [vmem:[%s1457 + $0xf2] sm:$0xff]
      %v1867 = vld [vmem:[%s1457 + $0xfa] sm:$0xff]
      %v1868 = vld [vmem:[%s1457 + $0x10a] sm:$0xff]
      %v1869 = vld [vmem:[%s1457 + $0x112] sm:$0xff]
      %v1870 = vld [vmem:[%s1457 + $0x122] sm:$0xff]
      %v1871 = vld [vmem:[%s1457 + $0x12a] sm:$0xff]
      %v1872 = vld [vmem:[%s1457 + $0x13a] sm:$0xff]
      %v1873 = vld [vmem:[%s1457 + $0x142] sm:$0xff]
      %v1874 = vld [vmem:[%s1457 + $0x152] sm:$0xff]
      %v1875 = vld [vmem:[%s1457 + $0x15a] sm:$0xff]
      %v1876 = vld [vmem:[%s1457 + $0x16a] sm:$0xff]
      %v1877 = vld [vmem:[%s1457 + $0x172] sm:$0xff]
      %s1878 = scalar_lea.vmem %s1, 1024
      %v1879 = vld [vmem:[%s1878] sm:$0xff]
      %v1880 = vld [vmem:[%s1878 + $0x8] sm:$0xff]
      %v1881 = vld [vmem:[%s1878 + $0x10] sm:$0xff]
      %v1882 = vld [vmem:[%s1878 + $0x18] sm:$0xff]
      %v1883 = vld [vmem:[%s1878 + $0x20] sm:$0xff]
      %v1884 = vld [vmem:[%s1878 + $0x28] sm:$0xff]
      %v1885 = vld [vmem:[%s1878 + $0x30] sm:$0xff]
      %v1886 = vld [vmem:[%s1878 + $0x38] sm:$0xff]
      %v1887 = vld [vmem:[%s1878 + $0x40] sm:$0xff]
      %v1888 = vld [vmem:[%s1878 + $0x48] sm:$0xff]
      %v1889 = vld [vmem:[%s1878 + $0x50] sm:$0xff]
      %v1890 = vld [vmem:[%s1878 + $0x58] sm:$0xff]
      %v1891 = vld [vmem:[%s1878 + $0x60] sm:$0xff]
      %v1892 = vld [vmem:[%s1878 + $0x68] sm:$0xff]
      %v1893 = vld [vmem:[%s1878 + $0x70] sm:$0xff]
      %v1894 = vld [vmem:[%s1878 + $0x78] sm:$0xff]
      %1895 = vmatpush.msra.mxu0 %v1894
      %1896 = vmatpush.msra.mxu0 %v1893
      %1897 = vmatpush.msra.mxu0 %v1892
      %1898 = vmatpush.msra.mxu0 %v1891
      %1899 = vmatpush.msra.mxu0 %v1890
      %1900 = vmatpush.msra.mxu0 %v1889
      %1901 = vmatpush.msra.mxu0 %v1888
      %1902 = vmatpush.msra.mxu0 %v1887
      %1903 = vmatpush.msra.mxu0 %v1886
      %1904 = vmatpush.msra.mxu0 %v1885
      %1905 = vmatpush.msra.mxu0 %v1884
      %1906 = vmatpush.msra.mxu0 %v1883
      %1907 = vmatpush.msra.mxu0 %v1882
      %1908 = vmatpush.msra.mxu0 %v1881
      %1909 = vmatpush.msra.mxu0 %v1880
      %1910 = vmatpush.msra.mxu0 %v1879
      %1911 = vmatmul.f32.gmra.mxu0 %v1846
      %v1912 = vpop.f32.mrf.mxu0
      %v1913 = vadd.f32 0.0, %v1912
      %1914 = vmatmul.f32.gmra.mxu0 %v1847
      %v1915 = vpop.f32.mrf.mxu0
      %v1916 = vadd.f32 0.0, %v1915
      %1917 = vmatmul.f32.gmra.mxu0 %v1848
      %v1918 = vpop.f32.mrf.mxu0
      %v1919 = vadd.f32 0.0, %v1918
      %1920 = vmatmul.f32.gmra.mxu0 %v1849
      %v1921 = vpop.f32.mrf.mxu0
      %v1922 = vadd.f32 0.0, %v1921
      %1923 = vmatmul.f32.gmra.mxu0 %v1850
      %v1924 = vpop.f32.mrf.mxu0
      %v1925 = vadd.f32 0.0, %v1924
      %1926 = vmatmul.f32.gmra.mxu0 %v1851
      %v1927 = vpop.f32.mrf.mxu0
      %v1928 = vadd.f32 0.0, %v1927
      %1929 = vmatmul.f32.gmra.mxu0 %v1852
      %v1930 = vpop.f32.mrf.mxu0
      %v1931 = vadd.f32 0.0, %v1930
      %1932 = vmatmul.f32.gmra.mxu0 %v1853
      %v1933 = vpop.f32.mrf.mxu0
      %v1934 = vadd.f32 0.0, %v1933
      %1935 = vmatmul.f32.gmra.mxu0 %v1854
      %v1936 = vpop.f32.mrf.mxu0
      %v1937 = vadd.f32 0.0, %v1936
      %1938 = vmatmul.f32.gmra.mxu0 %v1855
      %v1939 = vpop.f32.mrf.mxu0
      %v1940 = vadd.f32 0.0, %v1939
      %1941 = vmatmul.f32.gmra.mxu0 %v1856
      %v1942 = vpop.f32.mrf.mxu0
      %v1943 = vadd.f32 0.0, %v1942
      %1944 = vmatmul.f32.gmra.mxu0 %v1857
      %v1945 = vpop.f32.mrf.mxu0
      %v1946 = vadd.f32 0.0, %v1945
      %1947 = vmatmul.f32.gmra.mxu0 %v1858
      %v1948 = vpop.f32.mrf.mxu0
      %v1949 = vadd.f32 0.0, %v1948
      %1950 = vmatmul.f32.gmra.mxu0 %v1859
      %v1951 = vpop.f32.mrf.mxu0
      %v1952 = vadd.f32 0.0, %v1951
      %1953 = vmatmul.f32.gmra.mxu0 %v1860
      %v1954 = vpop.f32.mrf.mxu0
      %v1955 = vadd.f32 0.0, %v1954
      %1956 = vmatmul.f32.gmra.mxu0 %v1861
      %v1957 = vpop.f32.mrf.mxu0
      %v1958 = vadd.f32 0.0, %v1957
      %1959 = vmatmul.f32.gmra.mxu0 %v1862
      %v1960 = vpop.f32.mrf.mxu0
      %v1961 = vadd.f32 0.0, %v1960
      %1962 = vmatmul.f32.gmra.mxu0 %v1863
      %v1963 = vpop.f32.mrf.mxu0
      %v1964 = vadd.f32 0.0, %v1963
      %1965 = vmatmul.f32.gmra.mxu0 %v1864
      %v1966 = vpop.f32.mrf.mxu0
      %v1967 = vadd.f32 0.0, %v1966
      %1968 = vmatmul.f32.gmra.mxu0 %v1865
      %v1969 = vpop.f32.mrf.mxu0
      %v1970 = vadd.f32 0.0, %v1969
      %1971 = vmatmul.f32.gmra.mxu0 %v1866
      %v1972 = vpop.f32.mrf.mxu0
      %v1973 = vadd.f32 0.0, %v1972
      %1974 = vmatmul.f32.gmra.mxu0 %v1867
      %v1975 = vpop.f32.mrf.mxu0
      %v1976 = vadd.f32 0.0, %v1975
      %1977 = vmatmul.f32.gmra.mxu0 %v1868
      %v1978 = vpop.f32.mrf.mxu0
      %v1979 = vadd.f32 0.0, %v1978
      %1980 = vmatmul.f32.gmra.mxu0 %v1869
      %v1981 = vpop.f32.mrf.mxu0
      %v1982 = vadd.f32 0.0, %v1981
      %1983 = vmatmul.f32.gmra.mxu0 %v1870
      %v1984 = vpop.f32.mrf.mxu0
      %v1985 = vadd.f32 0.0, %v1984
      %1986 = vmatmul.f32.gmra.mxu0 %v1871
      %v1987 = vpop.f32.mrf.mxu0
      %v1988 = vadd.f32 0.0, %v1987
      %1989 = vmatmul.f32.gmra.mxu0 %v1872
      %v1990 = vpop.f32.mrf.mxu0
      %v1991 = vadd.f32 0.0, %v1990
      %1992 = vmatmul.f32.gmra.mxu0 %v1873
      %v1993 = vpop.f32.mrf.mxu0
      %v1994 = vadd.f32 0.0, %v1993
      %1995 = vmatmul.f32.gmra.mxu0 %v1874
      %v1996 = vpop.f32.mrf.mxu0
      %v1997 = vadd.f32 0.0, %v1996
      %1998 = vmatmul.f32.gmra.mxu0 %v1875
      %v1999 = vpop.f32.mrf.mxu0
      %v2000 = vadd.f32 0.0, %v1999
      %2001 = vmatmul.f32.gmra.mxu0 %v1876
      %v2002 = vpop.f32.mrf.mxu0
      %v2003 = vadd.f32 0.0, %v2002
      %2004 = vmatmul.f32.gmra.mxu0 %v1877
      %v2005 = vpop.f32.mrf.mxu0
      %v2006 = vadd.f32 0.0, %v2005
      %2007 = vdwg.mxu0
      %v2008 = vadd.f32 %v1814, %v1913
      %v2009 = vadd.f32 %v1815, %v1916
      %v2010 = vadd.f32 %v1816, %v1919
      %v2011 = vadd.f32 %v1817, %v1922
      %v2012 = vadd.f32 %v1818, %v1925
      %v2013 = vadd.f32 %v1819, %v1928
      %v2014 = vadd.f32 %v1820, %v1931
      %v2015 = vadd.f32 %v1821, %v1934
      %v2016 = vadd.f32 %v1822, %v1937
      %v2017 = vadd.f32 %v1823, %v1940
      %v2018 = vadd.f32 %v1824, %v1943
      %v2019 = vadd.f32 %v1825, %v1946
      %v2020 = vadd.f32 %v1826, %v1949
      %v2021 = vadd.f32 %v1827, %v1952
      %v2022 = vadd.f32 %v1828, %v1955
      %v2023 = vadd.f32 %v1829, %v1958
      %v2024 = vadd.f32 %v1830, %v1961
      %v2025 = vadd.f32 %v1831, %v1964
      %v2026 = vadd.f32 %v1832, %v1967
      %v2027 = vadd.f32 %v1833, %v1970
      %v2028 = vadd.f32 %v1834, %v1973
      %v2029 = vadd.f32 %v1835, %v1976
      %v2030 = vadd.f32 %v1836, %v1979
      %v2031 = vadd.f32 %v1837, %v1982
      %v2032 = vadd.f32 %v1838, %v1985
      %v2033 = vadd.f32 %v1839, %v1988
      %v2034 = vadd.f32 %v1840, %v1991
      %v2035 = vadd.f32 %v1841, %v1994
      %v2036 = vadd.f32 %v1842, %v1997
      %v2037 = vadd.f32 %v1843, %v2000
      %v2038 = vadd.f32 %v1844, %v2003
      %v2039 = vadd.f32 %v1845, %v2006
      %v2040 = vmax.f32 %v2008, 0.0
      %v2041 = vmax.f32 %v2009, 0.0
      %v2042 = vmax.f32 %v2010, 0.0
      %v2043 = vmax.f32 %v2011, 0.0
      %v2044 = vmax.f32 %v2012, 0.0
      %v2045 = vmax.f32 %v2013, 0.0
      %v2046 = vmax.f32 %v2014, 0.0
      %v2047 = vmax.f32 %v2015, 0.0
      %v2048 = vmax.f32 %v2016, 0.0
      %v2049 = vmax.f32 %v2017, 0.0
      %v2050 = vmax.f32 %v2018, 0.0
      %v2051 = vmax.f32 %v2019, 0.0
      %v2052 = vmax.f32 %v2020, 0.0
      %v2053 = vmax.f32 %v2021, 0.0
      %v2054 = vmax.f32 %v2022, 0.0
      %v2055 = vmax.f32 %v2023, 0.0
      %v2056 = vmax.f32 %v2024, 0.0
      %v2057 = vmax.f32 %v2025, 0.0
      %v2058 = vmax.f32 %v2026, 0.0
      %v2059 = vmax.f32 %v2027, 0.0
      %v2060 = vmax.f32 %v2028, 0.0
      %v2061 = vmax.f32 %v2029, 0.0
      %v2062 = vmax.f32 %v2030, 0.0
      %v2063 = vmax.f32 %v2031, 0.0
      %v2064 = vmax.f32 %v2032, 0.0
      %v2065 = vmax.f32 %v2033, 0.0
      %v2066 = vmax.f32 %v2034, 0.0
      %v2067 = vmax.f32 %v2035, 0.0
      %v2068 = vmax.f32 %v2036, 0.0
      %v2069 = vmax.f32 %v2037, 0.0
      %v2070 = vmax.f32 %v2038, 0.0
      %v2071 = vmax.f32 %v2039, 0.0
      %2072 = vst [vmem:[%s257 + $0x1] sm:$0xff] %v2040
      %2073 = vst [vmem:[%s257 + $0x9] sm:$0xff] %v2041
      %2074 = vst [vmem:[%s257 + $0x19] sm:$0xff] %v2042
      %2075 = vst [vmem:[%s257 + $0x21] sm:$0xff] %v2043
      %2076 = vst [vmem:[%s257 + $0x31] sm:$0xff] %v2044
      %2077 = vst [vmem:[%s257 + $0x39] sm:$0xff] %v2045
      %2078 = vst [vmem:[%s257 + $0x49] sm:$0xff] %v2046
      %2079 = vst [vmem:[%s257 + $0x51] sm:$0xff] %v2047
      %2080 = vst [vmem:[%s257 + $0x61] sm:$0xff] %v2048
      %2081 = vst [vmem:[%s257 + $0x69] sm:$0xff] %v2049
      %2082 = vst [vmem:[%s257 + $0x79] sm:$0xff] %v2050
      %2083 = vst [vmem:[%s257 + $0x81] sm:$0xff] %v2051
      %2084 = vst [vmem:[%s257 + $0x91] sm:$0xff] %v2052
      %2085 = vst [vmem:[%s257 + $0x99] sm:$0xff] %v2053
      %2086 = vst [vmem:[%s257 + $0xa9] sm:$0xff] %v2054
      %2087 = vst [vmem:[%s257 + $0xb1] sm:$0xff] %v2055
      %2088 = vst [vmem:[%s257 + $0xc1] sm:$0xff] %v2056
      %2089 = vst [vmem:[%s257 + $0xc9] sm:$0xff] %v2057
      %2090 = vst [vmem:[%s257 + $0xd9] sm:$0xff] %v2058
      %2091 = vst [vmem:[%s257 + $0xe1] sm:$0xff] %v2059
      %2092 = vst [vmem:[%s257 + $0xf1] sm:$0xff] %v2060
      %2093 = vst [vmem:[%s257 + $0xf9] sm:$0xff] %v2061
      %2094 = vst [vmem:[%s257 + $0x109] sm:$0xff] %v2062
      %2095 = vst [vmem:[%s257 + $0x111] sm:$0xff] %v2063
      %2096 = vst [vmem:[%s257 + $0x121] sm:$0xff] %v2064
      %2097 = vst [vmem:[%s257 + $0x129] sm:$0xff] %v2065
      %2098 = vst [vmem:[%s257 + $0x139] sm:$0xff] %v2066
      %2099 = vst [vmem:[%s257 + $0x141] sm:$0xff] %v2067
      %2100 = vst [vmem:[%s257 + $0x151] sm:$0xff] %v2068
      %2101 = vst [vmem:[%s257 + $0x159] sm:$0xff] %v2069
      %2102 = vst [vmem:[%s257 + $0x169] sm:$0xff] %v2070
      %2103 = vst [vmem:[%s257 + $0x171] sm:$0xff] %v2071
      %s2104 = scalar_lea.vmem %s2, 1
      %v2105 = vld [vmem:[%s2104] sm:$0x1]
      %v2107 = vperm.slane %v2105, 0
      %v2109 = vld [vmem:[#allocation2] sm:$0xff]
      %v2110 = vld [vmem:[#allocation2 + $0x8] sm:$0xff]
      %v2111 = vld [vmem:[#allocation2 + $0x18] sm:$0xff]
      %v2112 = vld [vmem:[#allocation2 + $0x20] sm:$0xff]
      %v2113 = vld [vmem:[#allocation2 + $0x30] sm:$0xff]
      %v2114 = vld [vmem:[#allocation2 + $0x38] sm:$0xff]
      %v2115 = vld [vmem:[#allocation2 + $0x48] sm:$0xff]
      %v2116 = vld [vmem:[#allocation2 + $0x50] sm:$0xff]
      %v2117 = vld [vmem:[#allocation2 + $0x60] sm:$0xff]
      %v2118 = vld [vmem:[#allocation2 + $0x68] sm:$0xff]
      %v2119 = vld [vmem:[#allocation2 + $0x78] sm:$0xff]
      %v2120 = vld [vmem:[#allocation2 + $0x80] sm:$0xff]
      %v2121 = vld [vmem:[#allocation2 + $0x90] sm:$0xff]
      %v2122 = vld [vmem:[#allocation2 + $0x98] sm:$0xff]
      %v2123 = vld [vmem:[#allocation2 + $0xa8] sm:$0xff]
      %v2124 = vld [vmem:[#allocation2 + $0xb0] sm:$0xff]
      %v2125 = vld [vmem:[#allocation2 + $0xc0] sm:$0xff]
      %v2126 = vld [vmem:[#allocation2 + $0xc8] sm:$0xff]
      %v2127 = vld [vmem:[#allocation2 + $0xd8] sm:$0xff]
      %v2128 = vld [vmem:[#allocation2 + $0xe0] sm:$0xff]
      %v2129 = vld [vmem:[#allocation2 + $0xf0] sm:$0xff]
      %v2130 = vld [vmem:[#allocation2 + $0xf8] sm:$0xff]
      %v2131 = vld [vmem:[#allocation2 + $0x108] sm:$0xff]
      %v2132 = vld [vmem:[#allocation2 + $0x110] sm:$0xff]
      %v2133 = vld [vmem:[#allocation2 + $0x120] sm:$0xff]
      %v2134 = vld [vmem:[#allocation2 + $0x128] sm:$0xff]
      %v2135 = vld [vmem:[#allocation2 + $0x138] sm:$0xff]
      %v2136 = vld [vmem:[#allocation2 + $0x140] sm:$0xff]
      %v2137 = vld [vmem:[#allocation2 + $0x150] sm:$0xff]
      %v2138 = vld [vmem:[#allocation2 + $0x158] sm:$0xff]
      %v2139 = vld [vmem:[#allocation2 + $0x168] sm:$0xff]
      %v2140 = vld [vmem:[#allocation2 + $0x170] sm:$0xff]
      %s2141 = scalar_lea.vmem %s1, 1152
      %v2142 = vld [vmem:[%s2141] sm:$0xff]
      %v2143 = vld [vmem:[%s2141 + $0x8] sm:$0xff]
      %v2144 = vld [vmem:[%s2141 + $0x10] sm:$0xff]
      %v2145 = vld [vmem:[%s2141 + $0x18] sm:$0xff]
      %v2146 = vld [vmem:[%s2141 + $0x20] sm:$0xff]
      %v2147 = vld [vmem:[%s2141 + $0x28] sm:$0xff]
      %v2148 = vld [vmem:[%s2141 + $0x30] sm:$0xff]
      %v2149 = vld [vmem:[%s2141 + $0x38] sm:$0xff]
      %v2150 = vld [vmem:[%s2141 + $0x40] sm:$0xff]
      %v2151 = vld [vmem:[%s2141 + $0x48] sm:$0xff]
      %v2152 = vld [vmem:[%s2141 + $0x50] sm:$0xff]
      %v2153 = vld [vmem:[%s2141 + $0x58] sm:$0xff]
      %v2154 = vld [vmem:[%s2141 + $0x60] sm:$0xff]
      %v2155 = vld [vmem:[%s2141 + $0x68] sm:$0xff]
      %v2156 = vld [vmem:[%s2141 + $0x70] sm:$0xff]
      %v2157 = vld [vmem:[%s2141 + $0x78] sm:$0xff]
      %2158 = vmatpush.msra.mxu0 %v2157
      %2159 = vmatpush.msra.mxu0 %v2156
      %2160 = vmatpush.msra.mxu0 %v2155
      %2161 = vmatpush.msra.mxu0 %v2154
      %2162 = vmatpush.msra.mxu0 %v2153
      %2163 = vmatpush.msra.mxu0 %v2152
      %2164 = vmatpush.msra.mxu0 %v2151
      %2165 = vmatpush.msra.mxu0 %v2150
      %2166 = vmatpush.msra.mxu0 %v2149
      %2167 = vmatpush.msra.mxu0 %v2148
      %2168 = vmatpush.msra.mxu0 %v2147
      %2169 = vmatpush.msra.mxu0 %v2146
      %2170 = vmatpush.msra.mxu0 %v2145
      %2171 = vmatpush.msra.mxu0 %v2144
      %2172 = vmatpush.msra.mxu0 %v2143
      %2173 = vmatpush.msra.mxu0 %v2142
      %2174 = vmatmul.f32.gmra.mxu0 %v2109
      %v2175 = vpop.f32.mrf.mxu0
      %v2176 = vadd.f32 0.0, %v2175
      %2177 = vmatmul.f32.gmra.mxu0 %v2110
      %v2178 = vpop.f32.mrf.mxu0
      %v2179 = vadd.f32 0.0, %v2178
      %2180 = vmatmul.f32.gmra.mxu0 %v2111
      %v2181 = vpop.f32.mrf.mxu0
      %v2182 = vadd.f32 0.0, %v2181
      %2183 = vmatmul.f32.gmra.mxu0 %v2112
      %v2184 = vpop.f32.mrf.mxu0
      %v2185 = vadd.f32 0.0, %v2184
      %2186 = vmatmul.f32.gmra.mxu0 %v2113
      %v2187 = vpop.f32.mrf.mxu0
      %v2188 = vadd.f32 0.0, %v2187
      %2189 = vmatmul.f32.gmra.mxu0 %v2114
      %v2190 = vpop.f32.mrf.mxu0
      %v2191 = vadd.f32 0.0, %v2190
      %2192 = vmatmul.f32.gmra.mxu0 %v2115
      %v2193 = vpop.f32.mrf.mxu0
      %v2194 = vadd.f32 0.0, %v2193
      %2195 = vmatmul.f32.gmra.mxu0 %v2116
      %v2196 = vpop.f32.mrf.mxu0
      %v2197 = vadd.f32 0.0, %v2196
      %2198 = vmatmul.f32.gmra.mxu0 %v2117
      %v2199 = vpop.f32.mrf.mxu0
      %v2200 = vadd.f32 0.0, %v2199
      %2201 = vmatmul.f32.gmra.mxu0 %v2118
      %v2202 = vpop.f32.mrf.mxu0
      %v2203 = vadd.f32 0.0, %v2202
      %2204 = vmatmul.f32.gmra.mxu0 %v2119
      %v2205 = vpop.f32.mrf.mxu0
      %v2206 = vadd.f32 0.0, %v2205
      %2207 = vmatmul.f32.gmra.mxu0 %v2120
      %v2208 = vpop.f32.mrf.mxu0
      %v2209 = vadd.f32 0.0, %v2208
      %2210 = vmatmul.f32.gmra.mxu0 %v2121
      %v2211 = vpop.f32.mrf.mxu0
      %v2212 = vadd.f32 0.0, %v2211
      %2213 = vmatmul.f32.gmra.mxu0 %v2122
      %v2214 = vpop.f32.mrf.mxu0
      %v2215 = vadd.f32 0.0, %v2214
      %2216 = vmatmul.f32.gmra.mxu0 %v2123
      %v2217 = vpop.f32.mrf.mxu0
      %v2218 = vadd.f32 0.0, %v2217
      %2219 = vmatmul.f32.gmra.mxu0 %v2124
      %v2220 = vpop.f32.mrf.mxu0
      %v2221 = vadd.f32 0.0, %v2220
      %2222 = vmatmul.f32.gmra.mxu0 %v2125
      %v2223 = vpop.f32.mrf.mxu0
      %v2224 = vadd.f32 0.0, %v2223
      %2225 = vmatmul.f32.gmra.mxu0 %v2126
      %v2226 = vpop.f32.mrf.mxu0
      %v2227 = vadd.f32 0.0, %v2226
      %2228 = vmatmul.f32.gmra.mxu0 %v2127
      %v2229 = vpop.f32.mrf.mxu0
      %v2230 = vadd.f32 0.0, %v2229
      %2231 = vmatmul.f32.gmra.mxu0 %v2128
      %v2232 = vpop.f32.mrf.mxu0
      %v2233 = vadd.f32 0.0, %v2232
      %2234 = vmatmul.f32.gmra.mxu0 %v2129
      %v2235 = vpop.f32.mrf.mxu0
      %v2236 = vadd.f32 0.0, %v2235
      %2237 = vmatmul.f32.gmra.mxu0 %v2130
      %v2238 = vpop.f32.mrf.mxu0
      %v2239 = vadd.f32 0.0, %v2238
      %2240 = vmatmul.f32.gmra.mxu0 %v2131
      %v2241 = vpop.f32.mrf.mxu0
      %v2242 = vadd.f32 0.0, %v2241
      %2243 = vmatmul.f32.gmra.mxu0 %v2132
      %v2244 = vpop.f32.mrf.mxu0
      %v2245 = vadd.f32 0.0, %v2244
      %2246 = vmatmul.f32.gmra.mxu0 %v2133
      %v2247 = vpop.f32.mrf.mxu0
      %v2248 = vadd.f32 0.0, %v2247
      %2249 = vmatmul.f32.gmra.mxu0 %v2134
      %v2250 = vpop.f32.mrf.mxu0
      %v2251 = vadd.f32 0.0, %v2250
      %2252 = vmatmul.f32.gmra.mxu0 %v2135
      %v2253 = vpop.f32.mrf.mxu0
      %v2254 = vadd.f32 0.0, %v2253
      %2255 = vmatmul.f32.gmra.mxu0 %v2136
      %v2256 = vpop.f32.mrf.mxu0
      %v2257 = vadd.f32 0.0, %v2256
      %2258 = vmatmul.f32.gmra.mxu0 %v2137
      %v2259 = vpop.f32.mrf.mxu0
      %v2260 = vadd.f32 0.0, %v2259
      %2261 = vmatmul.f32.gmra.mxu0 %v2138
      %v2262 = vpop.f32.mrf.mxu0
      %v2263 = vadd.f32 0.0, %v2262
      %2264 = vmatmul.f32.gmra.mxu0 %v2139
      %v2265 = vpop.f32.mrf.mxu0
      %v2266 = vadd.f32 0.0, %v2265
      %2267 = vmatmul.f32.gmra.mxu0 %v2140
      %v2268 = vpop.f32.mrf.mxu0
      %v2269 = vadd.f32 0.0, %v2268
      %2270 = vdwg.mxu0
      %v2271 = vadd.f32 %v2107, %v2176
      %v2272 = vadd.f32 %v2107, %v2179
      %v2273 = vadd.f32 %v2107, %v2182
      %v2274 = vadd.f32 %v2107, %v2185
      %v2275 = vadd.f32 %v2107, %v2188
      %v2276 = vadd.f32 %v2107, %v2191
      %v2277 = vadd.f32 %v2107, %v2194
      %v2278 = vadd.f32 %v2107, %v2197
      %v2279 = vadd.f32 %v2107, %v2200
      %v2280 = vadd.f32 %v2107, %v2203
      %v2281 = vadd.f32 %v2107, %v2206
      %v2282 = vadd.f32 %v2107, %v2209
      %v2283 = vadd.f32 %v2107, %v2212
      %v2284 = vadd.f32 %v2107, %v2215
      %v2285 = vadd.f32 %v2107, %v2218
      %v2286 = vadd.f32 %v2107, %v2221
      %v2287 = vadd.f32 %v2107, %v2224
      %v2288 = vadd.f32 %v2107, %v2227
      %v2289 = vadd.f32 %v2107, %v2230
      %v2290 = vadd.f32 %v2107, %v2233
      %v2291 = vadd.f32 %v2107, %v2236
      %v2292 = vadd.f32 %v2107, %v2239
      %v2293 = vadd.f32 %v2107, %v2242
      %v2294 = vadd.f32 %v2107, %v2245
      %v2295 = vadd.f32 %v2107, %v2248
      %v2296 = vadd.f32 %v2107, %v2251
      %v2297 = vadd.f32 %v2107, %v2254
      %v2298 = vadd.f32 %v2107, %v2257
      %v2299 = vadd.f32 %v2107, %v2260
      %v2300 = vadd.f32 %v2107, %v2263
      %v2301 = vadd.f32 %v2107, %v2266
      %v2302 = vadd.f32 %v2107, %v2269
      %v2303 = vld [vmem:[#allocation2 + $0x1] sm:$0xff]
      %v2304 = vld [vmem:[#allocation2 + $0x9] sm:$0xff]
      %v2305 = vld [vmem:[#allocation2 + $0x19] sm:$0xff]
      %v2306 = vld [vmem:[#allocation2 + $0x21] sm:$0xff]
      %v2307 = vld [vmem:[#allocation2 + $0x31] sm:$0xff]
      %v2308 = vld [vmem:[#allocation2 + $0x39] sm:$0xff]
      %v2309 = vld [vmem:[#allocation2 + $0x49] sm:$0xff]
      %v2310 = vld [vmem:[#allocation2 + $0x51] sm:$0xff]
      %v2311 = vld [vmem:[#allocation2 + $0x61] sm:$0xff]
      %v2312 = vld [vmem:[#allocation2 + $0x69] sm:$0xff]
      %v2313 = vld [vmem:[#allocation2 + $0x79] sm:$0xff]
      %v2314 = vld [vmem:[#allocation2 + $0x81] sm:$0xff]
      %v2315 = vld [vmem:[#allocation2 + $0x91] sm:$0xff]
      %v2316 = vld [vmem:[#allocation2 + $0x99] sm:$0xff]
      %v2317 = vld [vmem:[#allocation2 + $0xa9] sm:$0xff]
      %v2318 = vld [vmem:[#allocation2 + $0xb1] sm:$0xff]
      %v2319 = vld [vmem:[#allocation2 + $0xc1] sm:$0xff]
      %v2320 = vld [vmem:[#allocation2 + $0xc9] sm:$0xff]
      %v2321 = vld [vmem:[#allocation2 + $0xd9] sm:$0xff]
      %v2322 = vld [vmem:[#allocation2 + $0xe1] sm:$0xff]
      %v2323 = vld [vmem:[#allocation2 + $0xf1] sm:$0xff]
      %v2324 = vld [vmem:[#allocation2 + $0xf9] sm:$0xff]
      %v2325 = vld [vmem:[#allocation2 + $0x109] sm:$0xff]
      %v2326 = vld [vmem:[#allocation2 + $0x111] sm:$0xff]
      %v2327 = vld [vmem:[#allocation2 + $0x121] sm:$0xff]
      %v2328 = vld [vmem:[#allocation2 + $0x129] sm:$0xff]
      %v2329 = vld [vmem:[#allocation2 + $0x139] sm:$0xff]
      %v2330 = vld [vmem:[#allocation2 + $0x141] sm:$0xff]
      %v2331 = vld [vmem:[#allocation2 + $0x151] sm:$0xff]
      %v2332 = vld [vmem:[#allocation2 + $0x159] sm:$0xff]
      %v2333 = vld [vmem:[#allocation2 + $0x169] sm:$0xff]
      %v2334 = vld [vmem:[#allocation2 + $0x171] sm:$0xff]
      %s2335 = scalar_lea.vmem %s1, 1280
      %v2336 = vld [vmem:[%s2335] sm:$0xff]
      %v2337 = vld [vmem:[%s2335 + $0x8] sm:$0xff]
      %v2338 = vld [vmem:[%s2335 + $0x10] sm:$0xff]
      %v2339 = vld [vmem:[%s2335 + $0x18] sm:$0xff]
      %v2340 = vld [vmem:[%s2335 + $0x20] sm:$0xff]
      %v2341 = vld [vmem:[%s2335 + $0x28] sm:$0xff]
      %v2342 = vld [vmem:[%s2335 + $0x30] sm:$0xff]
      %v2343 = vld [vmem:[%s2335 + $0x38] sm:$0xff]
      %v2344 = vld [vmem:[%s2335 + $0x40] sm:$0xff]
      %v2345 = vld [vmem:[%s2335 + $0x48] sm:$0xff]
      %v2346 = vld [vmem:[%s2335 + $0x50] sm:$0xff]
      %v2347 = vld [vmem:[%s2335 + $0x58] sm:$0xff]
      %v2348 = vld [vmem:[%s2335 + $0x60] sm:$0xff]
      %v2349 = vld [vmem:[%s2335 + $0x68] sm:$0xff]
      %v2350 = vld [vmem:[%s2335 + $0x70] sm:$0xff]
      %v2351 = vld [vmem:[%s2335 + $0x78] sm:$0xff]
      %2352 = vmatpush.msra.mxu0 %v2351
      %2353 = vmatpush.msra.mxu0 %v2350
      %2354 = vmatpush.msra.mxu0 %v2349
      %2355 = vmatpush.msra.mxu0 %v2348
      %2356 = vmatpush.msra.mxu0 %v2347
      %2357 = vmatpush.msra.mxu0 %v2346
      %2358 = vmatpush.msra.mxu0 %v2345
      %2359 = vmatpush.msra.mxu0 %v2344
      %2360 = vmatpush.msra.mxu0 %v2343
      %2361 = vmatpush.msra.mxu0 %v2342
      %2362 = vmatpush.msra.mxu0 %v2341
      %2363 = vmatpush.msra.mxu0 %v2340
      %2364 = vmatpush.msra.mxu0 %v2339
      %2365 = vmatpush.msra.mxu0 %v2338
      %2366 = vmatpush.msra.mxu0 %v2337
      %2367 = vmatpush.msra.mxu0 %v2336
      %2368 = vmatmul.f32.gmra.mxu0 %v2303
      %v2369 = vpop.f32.mrf.mxu0
      %v2370 = vadd.f32 0.0, %v2369
      %2371 = vmatmul.f32.gmra.mxu0 %v2304
      %v2372 = vpop.f32.mrf.mxu0
      %v2373 = vadd.f32 0.0, %v2372
      %2374 = vmatmul.f32.gmra.mxu0 %v2305
      %v2375 = vpop.f32.mrf.mxu0
      %v2376 = vadd.f32 0.0, %v2375
      %2377 = vmatmul.f32.gmra.mxu0 %v2306
      %v2378 = vpop.f32.mrf.mxu0
      %v2379 = vadd.f32 0.0, %v2378
      %2380 = vmatmul.f32.gmra.mxu0 %v2307
      %v2381 = vpop.f32.mrf.mxu0
      %v2382 = vadd.f32 0.0, %v2381
      %2383 = vmatmul.f32.gmra.mxu0 %v2308
      %v2384 = vpop.f32.mrf.mxu0
      %v2385 = vadd.f32 0.0, %v2384
      %2386 = vmatmul.f32.gmra.mxu0 %v2309
      %v2387 = vpop.f32.mrf.mxu0
      %v2388 = vadd.f32 0.0, %v2387
      %2389 = vmatmul.f32.gmra.mxu0 %v2310
      %v2390 = vpop.f32.mrf.mxu0
      %v2391 = vadd.f32 0.0, %v2390
      %2392 = vmatmul.f32.gmra.mxu0 %v2311
      %v2393 = vpop.f32.mrf.mxu0
      %v2394 = vadd.f32 0.0, %v2393
      %2395 = vmatmul.f32.gmra.mxu0 %v2312
      %v2396 = vpop.f32.mrf.mxu0
      %v2397 = vadd.f32 0.0, %v2396
      %2398 = vmatmul.f32.gmra.mxu0 %v2313
      %v2399 = vpop.f32.mrf.mxu0
      %v2400 = vadd.f32 0.0, %v2399
      %2401 = vmatmul.f32.gmra.mxu0 %v2314
      %v2402 = vpop.f32.mrf.mxu0
      %v2403 = vadd.f32 0.0, %v2402
      %2404 = vmatmul.f32.gmra.mxu0 %v2315
      %v2405 = vpop.f32.mrf.mxu0
      %v2406 = vadd.f32 0.0, %v2405
      %2407 = vmatmul.f32.gmra.mxu0 %v2316
      %v2408 = vpop.f32.mrf.mxu0
      %v2409 = vadd.f32 0.0, %v2408
      %2410 = vmatmul.f32.gmra.mxu0 %v2317
      %v2411 = vpop.f32.mrf.mxu0
      %v2412 = vadd.f32 0.0, %v2411
      %2413 = vmatmul.f32.gmra.mxu0 %v2318
      %v2414 = vpop.f32.mrf.mxu0
      %v2415 = vadd.f32 0.0, %v2414
      %2416 = vmatmul.f32.gmra.mxu0 %v2319
      %v2417 = vpop.f32.mrf.mxu0
      %v2418 = vadd.f32 0.0, %v2417
      %2419 = vmatmul.f32.gmra.mxu0 %v2320
      %v2420 = vpop.f32.mrf.mxu0
      %v2421 = vadd.f32 0.0, %v2420
      %2422 = vmatmul.f32.gmra.mxu0 %v2321
      %v2423 = vpop.f32.mrf.mxu0
      %v2424 = vadd.f32 0.0, %v2423
      %2425 = vmatmul.f32.gmra.mxu0 %v2322
      %v2426 = vpop.f32.mrf.mxu0
      %v2427 = vadd.f32 0.0, %v2426
      %2428 = vmatmul.f32.gmra.mxu0 %v2323
      %v2429 = vpop.f32.mrf.mxu0
      %v2430 = vadd.f32 0.0, %v2429
      %2431 = vmatmul.f32.gmra.mxu0 %v2324
      %v2432 = vpop.f32.mrf.mxu0
      %v2433 = vadd.f32 0.0, %v2432
      %2434 = vmatmul.f32.gmra.mxu0 %v2325
      %v2435 = vpop.f32.mrf.mxu0
      %v2436 = vadd.f32 0.0, %v2435
      %2437 = vmatmul.f32.gmra.mxu0 %v2326
      %v2438 = vpop.f32.mrf.mxu0
      %v2439 = vadd.f32 0.0, %v2438
      %2440 = vmatmul.f32.gmra.mxu0 %v2327
      %v2441 = vpop.f32.mrf.mxu0
      %v2442 = vadd.f32 0.0, %v2441
      %2443 = vmatmul.f32.gmra.mxu0 %v2328
      %v2444 = vpop.f32.mrf.mxu0
      %v2445 = vadd.f32 0.0, %v2444
      %2446 = vmatmul.f32.gmra.mxu0 %v2329
      %v2447 = vpop.f32.mrf.mxu0
      %v2448 = vadd.f32 0.0, %v2447
      %2449 = vmatmul.f32.gmra.mxu0 %v2330
      %v2450 = vpop.f32.mrf.mxu0
      %v2451 = vadd.f32 0.0, %v2450
      %2452 = vmatmul.f32.gmra.mxu0 %v2331
      %v2453 = vpop.f32.mrf.mxu0
      %v2454 = vadd.f32 0.0, %v2453
      %2455 = vmatmul.f32.gmra.mxu0 %v2332
      %v2456 = vpop.f32.mrf.mxu0
      %v2457 = vadd.f32 0.0, %v2456
      %2458 = vmatmul.f32.gmra.mxu0 %v2333
      %v2459 = vpop.f32.mrf.mxu0
      %v2460 = vadd.f32 0.0, %v2459
      %2461 = vmatmul.f32.gmra.mxu0 %v2334
      %v2462 = vpop.f32.mrf.mxu0
      %v2463 = vadd.f32 0.0, %v2462
      %2464 = vdwg.mxu0
      %v2465 = vadd.f32 %v2271, %v2370
      %v2466 = vadd.f32 %v2272, %v2373
      %v2467 = vadd.f32 %v2273, %v2376
      %v2468 = vadd.f32 %v2274, %v2379
      %v2469 = vadd.f32 %v2275, %v2382
      %v2470 = vadd.f32 %v2276, %v2385
      %v2471 = vadd.f32 %v2277, %v2388
      %v2472 = vadd.f32 %v2278, %v2391
      %v2473 = vadd.f32 %v2279, %v2394
      %v2474 = vadd.f32 %v2280, %v2397
      %v2475 = vadd.f32 %v2281, %v2400
      %v2476 = vadd.f32 %v2282, %v2403
      %v2477 = vadd.f32 %v2283, %v2406
      %v2478 = vadd.f32 %v2284, %v2409
      %v2479 = vadd.f32 %v2285, %v2412
      %v2480 = vadd.f32 %v2286, %v2415
      %v2481 = vadd.f32 %v2287, %v2418
      %v2482 = vadd.f32 %v2288, %v2421
      %v2483 = vadd.f32 %v2289, %v2424
      %v2484 = vadd.f32 %v2290, %v2427
      %v2485 = vadd.f32 %v2291, %v2430
      %v2486 = vadd.f32 %v2292, %v2433
      %v2487 = vadd.f32 %v2293, %v2436
      %v2488 = vadd.f32 %v2294, %v2439
      %v2489 = vadd.f32 %v2295, %v2442
      %v2490 = vadd.f32 %v2296, %v2445
      %v2491 = vadd.f32 %v2297, %v2448
      %v2492 = vadd.f32 %v2298, %v2451
      %v2493 = vadd.f32 %v2299, %v2454
      %v2494 = vadd.f32 %v2300, %v2457
      %v2495 = vadd.f32 %v2301, %v2460
      %v2496 = vadd.f32 %v2302, %v2463
      %v2497 = vld [vmem:[#allocation2 + $0x2] sm:$0xff]
      %v2498 = vld [vmem:[#allocation2 + $0xa] sm:$0xff]
      %v2499 = vld [vmem:[#allocation2 + $0x1a] sm:$0xff]
      %v2500 = vld [vmem:[#allocation2 + $0x22] sm:$0xff]
      %v2501 = vld [vmem:[#allocation2 + $0x32] sm:$0xff]
      %v2502 = vld [vmem:[#allocation2 + $0x3a] sm:$0xff]
      %v2503 = vld [vmem:[#allocation2 + $0x4a] sm:$0xff]
      %v2504 = vld [vmem:[#allocation2 + $0x52] sm:$0xff]
      %v2505 = vld [vmem:[#allocation2 + $0x62] sm:$0xff]
      %v2506 = vld [vmem:[#allocation2 + $0x6a] sm:$0xff]
      %v2507 = vld [vmem:[#allocation2 + $0x7a] sm:$0xff]
      %v2508 = vld [vmem:[#allocation2 + $0x82] sm:$0xff]
      %v2509 = vld [vmem:[#allocation2 + $0x92] sm:$0xff]
      %v2510 = vld [vmem:[#allocation2 + $0x9a] sm:$0xff]
      %v2511 = vld [vmem:[#allocation2 + $0xaa] sm:$0xff]
      %v2512 = vld [vmem:[#allocation2 + $0xb2] sm:$0xff]
      %v2513 = vld [vmem:[#allocation2 + $0xc2] sm:$0xff]
      %v2514 = vld [vmem:[#allocation2 + $0xca] sm:$0xff]
      %v2515 = vld [vmem:[#allocation2 + $0xda] sm:$0xff]
      %v2516 = vld [vmem:[#allocation2 + $0xe2] sm:$0xff]
      %v2517 = vld [vmem:[#allocation2 + $0xf2] sm:$0xff]
      %v2518 = vld [vmem:[#allocation2 + $0xfa] sm:$0xff]
      %v2519 = vld [vmem:[#allocation2 + $0x10a] sm:$0xff]
      %v2520 = vld [vmem:[#allocation2 + $0x112] sm:$0xff]
      %v2521 = vld [vmem:[#allocation2 + $0x122] sm:$0xff]
      %v2522 = vld [vmem:[#allocation2 + $0x12a] sm:$0xff]
      %v2523 = vld [vmem:[#allocation2 + $0x13a] sm:$0xff]
      %v2524 = vld [vmem:[#allocation2 + $0x142] sm:$0xff]
      %v2525 = vld [vmem:[#allocation2 + $0x152] sm:$0xff]
      %v2526 = vld [vmem:[#allocation2 + $0x15a] sm:$0xff]
      %v2527 = vld [vmem:[#allocation2 + $0x16a] sm:$0xff]
      %v2528 = vld [vmem:[#allocation2 + $0x172] sm:$0xff]
      %s2529 = scalar_lea.vmem %s1, 1408
      %v2530 = vld [vmem:[%s2529] sm:$0xff]
      %v2531 = vld [vmem:[%s2529 + $0x8] sm:$0xff]
      %v2532 = vld [vmem:[%s2529 + $0x10] sm:$0xff]
      %v2533 = vld [vmem:[%s2529 + $0x18] sm:$0xff]
      %v2534 = vld [vmem:[%s2529 + $0x20] sm:$0xff]
      %v2535 = vld [vmem:[%s2529 + $0x28] sm:$0xff]
      %v2536 = vld [vmem:[%s2529 + $0x30] sm:$0xff]
      %v2537 = vld [vmem:[%s2529 + $0x38] sm:$0xff]
      %v2538 = vld [vmem:[%s2529 + $0x40] sm:$0xff]
      %v2539 = vld [vmem:[%s2529 + $0x48] sm:$0xff]
      %v2540 = vld [vmem:[%s2529 + $0x50] sm:$0xff]
      %v2541 = vld [vmem:[%s2529 + $0x58] sm:$0xff]
      %v2542 = vld [vmem:[%s2529 + $0x60] sm:$0xff]
      %v2543 = vld [vmem:[%s2529 + $0x68] sm:$0xff]
      %v2544 = vld [vmem:[%s2529 + $0x70] sm:$0xff]
      %v2545 = vld [vmem:[%s2529 + $0x78] sm:$0xff]
      %2546 = vmatpush.msra.mxu0 %v2545
      %2547 = vmatpush.msra.mxu0 %v2544
      %2548 = vmatpush.msra.mxu0 %v2543
      %2549 = vmatpush.msra.mxu0 %v2542
      %2550 = vmatpush.msra.mxu0 %v2541
      %2551 = vmatpush.msra.mxu0 %v2540
      %2552 = vmatpush.msra.mxu0 %v2539
      %2553 = vmatpush.msra.mxu0 %v2538
      %2554 = vmatpush.msra.mxu0 %v2537
      %2555 = vmatpush.msra.mxu0 %v2536
      %2556 = vmatpush.msra.mxu0 %v2535
      %2557 = vmatpush.msra.mxu0 %v2534
      %2558 = vmatpush.msra.mxu0 %v2533
      %2559 = vmatpush.msra.mxu0 %v2532
      %2560 = vmatpush.msra.mxu0 %v2531
      %2561 = vmatpush.msra.mxu0 %v2530
      %2562 = vmatmul.f32.gmra.mxu0 %v2497
      %v2563 = vpop.f32.mrf.mxu0
      %v2564 = vadd.f32 0.0, %v2563
      %2565 = vmatmul.f32.gmra.mxu0 %v2498
      %v2566 = vpop.f32.mrf.mxu0
      %v2567 = vadd.f32 0.0, %v2566
      %2568 = vmatmul.f32.gmra.mxu0 %v2499
      %v2569 = vpop.f32.mrf.mxu0
      %v2570 = vadd.f32 0.0, %v2569
      %2571 = vmatmul.f32.gmra.mxu0 %v2500
      %v2572 = vpop.f32.mrf.mxu0
      %v2573 = vadd.f32 0.0, %v2572
      %2574 = vmatmul.f32.gmra.mxu0 %v2501
      %v2575 = vpop.f32.mrf.mxu0
      %v2576 = vadd.f32 0.0, %v2575
      %2577 = vmatmul.f32.gmra.mxu0 %v2502
      %v2578 = vpop.f32.mrf.mxu0
      %v2579 = vadd.f32 0.0, %v2578
      %2580 = vmatmul.f32.gmra.mxu0 %v2503
      %v2581 = vpop.f32.mrf.mxu0
      %v2582 = vadd.f32 0.0, %v2581
      %2583 = vmatmul.f32.gmra.mxu0 %v2504
      %v2584 = vpop.f32.mrf.mxu0
      %v2585 = vadd.f32 0.0, %v2584
      %2586 = vmatmul.f32.gmra.mxu0 %v2505
      %v2587 = vpop.f32.mrf.mxu0
      %v2588 = vadd.f32 0.0, %v2587
      %2589 = vmatmul.f32.gmra.mxu0 %v2506
      %v2590 = vpop.f32.mrf.mxu0
      %v2591 = vadd.f32 0.0, %v2590
      %2592 = vmatmul.f32.gmra.mxu0 %v2507
      %v2593 = vpop.f32.mrf.mxu0
      %v2594 = vadd.f32 0.0, %v2593
      %2595 = vmatmul.f32.gmra.mxu0 %v2508
      %v2596 = vpop.f32.mrf.mxu0
      %v2597 = vadd.f32 0.0, %v2596
      %2598 = vmatmul.f32.gmra.mxu0 %v2509
      %v2599 = vpop.f32.mrf.mxu0
      %v2600 = vadd.f32 0.0, %v2599
      %2601 = vmatmul.f32.gmra.mxu0 %v2510
      %v2602 = vpop.f32.mrf.mxu0
      %v2603 = vadd.f32 0.0, %v2602
      %2604 = vmatmul.f32.gmra.mxu0 %v2511
      %v2605 = vpop.f32.mrf.mxu0
      %v2606 = vadd.f32 0.0, %v2605
      %2607 = vmatmul.f32.gmra.mxu0 %v2512
      %v2608 = vpop.f32.mrf.mxu0
      %v2609 = vadd.f32 0.0, %v2608
      %2610 = vmatmul.f32.gmra.mxu0 %v2513
      %v2611 = vpop.f32.mrf.mxu0
      %v2612 = vadd.f32 0.0, %v2611
      %2613 = vmatmul.f32.gmra.mxu0 %v2514
      %v2614 = vpop.f32.mrf.mxu0
      %v2615 = vadd.f32 0.0, %v2614
      %2616 = vmatmul.f32.gmra.mxu0 %v2515
      %v2617 = vpop.f32.mrf.mxu0
      %v2618 = vadd.f32 0.0, %v2617
      %2619 = vmatmul.f32.gmra.mxu0 %v2516
      %v2620 = vpop.f32.mrf.mxu0
      %v2621 = vadd.f32 0.0, %v2620
      %2622 = vmatmul.f32.gmra.mxu0 %v2517
      %v2623 = vpop.f32.mrf.mxu0
      %v2624 = vadd.f32 0.0, %v2623
      %2625 = vmatmul.f32.gmra.mxu0 %v2518
      %v2626 = vpop.f32.mrf.mxu0
      %v2627 = vadd.f32 0.0, %v2626
      %2628 = vmatmul.f32.gmra.mxu0 %v2519
      %v2629 = vpop.f32.mrf.mxu0
      %v2630 = vadd.f32 0.0, %v2629
      %2631 = vmatmul.f32.gmra.mxu0 %v2520
      %v2632 = vpop.f32.mrf.mxu0
      %v2633 = vadd.f32 0.0, %v2632
      %2634 = vmatmul.f32.gmra.mxu0 %v2521
      %v2635 = vpop.f32.mrf.mxu0
      %v2636 = vadd.f32 0.0, %v2635
      %2637 = vmatmul.f32.gmra.mxu0 %v2522
      %v2638 = vpop.f32.mrf.mxu0
      %v2639 = vadd.f32 0.0, %v2638
      %2640 = vmatmul.f32.gmra.mxu0 %v2523
      %v2641 = vpop.f32.mrf.mxu0
      %v2642 = vadd.f32 0.0, %v2641
      %2643 = vmatmul.f32.gmra.mxu0 %v2524
      %v2644 = vpop.f32.mrf.mxu0
      %v2645 = vadd.f32 0.0, %v2644
      %2646 = vmatmul.f32.gmra.mxu0 %v2525
      %v2647 = vpop.f32.mrf.mxu0
      %v2648 = vadd.f32 0.0, %v2647
      %2649 = vmatmul.f32.gmra.mxu0 %v2526
      %v2650 = vpop.f32.mrf.mxu0
      %v2651 = vadd.f32 0.0, %v2650
      %2652 = vmatmul.f32.gmra.mxu0 %v2527
      %v2653 = vpop.f32.mrf.mxu0
      %v2654 = vadd.f32 0.0, %v2653
      %2655 = vmatmul.f32.gmra.mxu0 %v2528
      %v2656 = vpop.f32.mrf.mxu0
      %v2657 = vadd.f32 0.0, %v2656
      %2658 = vdwg.mxu0
      %v2659 = vadd.f32 %v2465, %v2564
      %v2660 = vadd.f32 %v2466, %v2567
      %v2661 = vadd.f32 %v2467, %v2570
      %v2662 = vadd.f32 %v2468, %v2573
      %v2663 = vadd.f32 %v2469, %v2576
      %v2664 = vadd.f32 %v2470, %v2579
      %v2665 = vadd.f32 %v2471, %v2582
      %v2666 = vadd.f32 %v2472, %v2585
      %v2667 = vadd.f32 %v2473, %v2588
      %v2668 = vadd.f32 %v2474, %v2591
      %v2669 = vadd.f32 %v2475, %v2594
      %v2670 = vadd.f32 %v2476, %v2597
      %v2671 = vadd.f32 %v2477, %v2600
      %v2672 = vadd.f32 %v2478, %v2603
      %v2673 = vadd.f32 %v2479, %v2606
      %v2674 = vadd.f32 %v2480, %v2609
      %v2675 = vadd.f32 %v2481, %v2612
      %v2676 = vadd.f32 %v2482, %v2615
      %v2677 = vadd.f32 %v2483, %v2618
      %v2678 = vadd.f32 %v2484, %v2621
      %v2679 = vadd.f32 %v2485, %v2624
      %v2680 = vadd.f32 %v2486, %v2627
      %v2681 = vadd.f32 %v2487, %v2630
      %v2682 = vadd.f32 %v2488, %v2633
      %v2683 = vadd.f32 %v2489, %v2636
      %v2684 = vadd.f32 %v2490, %v2639
      %v2685 = vadd.f32 %v2491, %v2642
      %v2686 = vadd.f32 %v2492, %v2645
      %v2687 = vadd.f32 %v2493, %v2648
      %v2688 = vadd.f32 %v2494, %v2651
      %v2689 = vadd.f32 %v2495, %v2654
      %v2690 = vadd.f32 %v2496, %v2657
      %v2691 = vld [vmem:[%s257] sm:$0xff]
      %v2692 = vld [vmem:[%s257 + $0x8] sm:$0xff]
      %v2693 = vld [vmem:[%s257 + $0x18] sm:$0xff]
      %v2694 = vld [vmem:[%s257 + $0x20] sm:$0xff]
      %v2695 = vld [vmem:[%s257 + $0x30] sm:$0xff]
      %v2696 = vld [vmem:[%s257 + $0x38] sm:$0xff]
      %v2697 = vld [vmem:[%s257 + $0x48] sm:$0xff]
      %v2698 = vld [vmem:[%s257 + $0x50] sm:$0xff]
      %v2699 = vld [vmem:[%s257 + $0x60] sm:$0xff]
      %v2700 = vld [vmem:[%s257 + $0x68] sm:$0xff]
      %v2701 = vld [vmem:[%s257 + $0x78] sm:$0xff]
      %v2702 = vld [vmem:[%s257 + $0x80] sm:$0xff]
      %v2703 = vld [vmem:[%s257 + $0x90] sm:$0xff]
      %v2704 = vld [vmem:[%s257 + $0x98] sm:$0xff]
      %v2705 = vld [vmem:[%s257 + $0xa8] sm:$0xff]
      %v2706 = vld [vmem:[%s257 + $0xb0] sm:$0xff]
      %v2707 = vld [vmem:[%s257 + $0xc0] sm:$0xff]
      %v2708 = vld [vmem:[%s257 + $0xc8] sm:$0xff]
      %v2709 = vld [vmem:[%s257 + $0xd8] sm:$0xff]
      %v2710 = vld [vmem:[%s257 + $0xe0] sm:$0xff]
      %v2711 = vld [vmem:[%s257 + $0xf0] sm:$0xff]
      %v2712 = vld [vmem:[%s257 + $0xf8] sm:$0xff]
      %v2713 = vld [vmem:[%s257 + $0x108] sm:$0xff]
      %v2714 = vld [vmem:[%s257 + $0x110] sm:$0xff]
      %v2715 = vld [vmem:[%s257 + $0x120] sm:$0xff]
      %v2716 = vld [vmem:[%s257 + $0x128] sm:$0xff]
      %v2717 = vld [vmem:[%s257 + $0x138] sm:$0xff]
      %v2718 = vld [vmem:[%s257 + $0x140] sm:$0xff]
      %v2719 = vld [vmem:[%s257 + $0x150] sm:$0xff]
      %v2720 = vld [vmem:[%s257 + $0x158] sm:$0xff]
      %v2721 = vld [vmem:[%s257 + $0x168] sm:$0xff]
      %v2722 = vld [vmem:[%s257 + $0x170] sm:$0xff]
      %s2723 = scalar_lea.vmem %s1, 1536
      %v2724 = vld [vmem:[%s2723] sm:$0xff]
      %v2725 = vld [vmem:[%s2723 + $0x8] sm:$0xff]
      %v2726 = vld [vmem:[%s2723 + $0x10] sm:$0xff]
      %v2727 = vld [vmem:[%s2723 + $0x18] sm:$0xff]
      %v2728 = vld [vmem:[%s2723 + $0x20] sm:$0xff]
      %v2729 = vld [vmem:[%s2723 + $0x28] sm:$0xff]
      %v2730 = vld [vmem:[%s2723 + $0x30] sm:$0xff]
      %v2731 = vld [vmem:[%s2723 + $0x38] sm:$0xff]
      %v2732 = vld [vmem:[%s2723 + $0x40] sm:$0xff]
      %v2733 = vld [vmem:[%s2723 + $0x48] sm:$0xff]
      %v2734 = vld [vmem:[%s2723 + $0x50] sm:$0xff]
      %v2735 = vld [vmem:[%s2723 + $0x58] sm:$0xff]
      %v2736 = vld [vmem:[%s2723 + $0x60] sm:$0xff]
      %v2737 = vld [vmem:[%s2723 + $0x68] sm:$0xff]
      %v2738 = vld [vmem:[%s2723 + $0x70] sm:$0xff]
      %v2739 = vld [vmem:[%s2723 + $0x78] sm:$0xff]
      %2740 = vmatpush.msra.mxu0 %v2739
      %2741 = vmatpush.msra.mxu0 %v2738
      %2742 = vmatpush.msra.mxu0 %v2737
      %2743 = vmatpush.msra.mxu0 %v2736
      %2744 = vmatpush.msra.mxu0 %v2735
      %2745 = vmatpush.msra.mxu0 %v2734
      %2746 = vmatpush.msra.mxu0 %v2733
      %2747 = vmatpush.msra.mxu0 %v2732
      %2748 = vmatpush.msra.mxu0 %v2731
      %2749 = vmatpush.msra.mxu0 %v2730
      %2750 = vmatpush.msra.mxu0 %v2729
      %2751 = vmatpush.msra.mxu0 %v2728
      %2752 = vmatpush.msra.mxu0 %v2727
      %2753 = vmatpush.msra.mxu0 %v2726
      %2754 = vmatpush.msra.mxu0 %v2725
      %2755 = vmatpush.msra.mxu0 %v2724
      %2756 = vmatmul.f32.gmra.mxu0 %v2691
      %v2757 = vpop.f32.mrf.mxu0
      %v2758 = vadd.f32 0.0, %v2757
      %2759 = vmatmul.f32.gmra.mxu0 %v2692
      %v2760 = vpop.f32.mrf.mxu0
      %v2761 = vadd.f32 0.0, %v2760
      %2762 = vmatmul.f32.gmra.mxu0 %v2693
      %v2763 = vpop.f32.mrf.mxu0
      %v2764 = vadd.f32 0.0, %v2763
      %2765 = vmatmul.f32.gmra.mxu0 %v2694
      %v2766 = vpop.f32.mrf.mxu0
      %v2767 = vadd.f32 0.0, %v2766
      %2768 = vmatmul.f32.gmra.mxu0 %v2695
      %v2769 = vpop.f32.mrf.mxu0
      %v2770 = vadd.f32 0.0, %v2769
      %2771 = vmatmul.f32.gmra.mxu0 %v2696
      %v2772 = vpop.f32.mrf.mxu0
      %v2773 = vadd.f32 0.0, %v2772
      %2774 = vmatmul.f32.gmra.mxu0 %v2697
      %v2775 = vpop.f32.mrf.mxu0
      %v2776 = vadd.f32 0.0, %v2775
      %2777 = vmatmul.f32.gmra.mxu0 %v2698
      %v2778 = vpop.f32.mrf.mxu0
      %v2779 = vadd.f32 0.0, %v2778
      %2780 = vmatmul.f32.gmra.mxu0 %v2699
      %v2781 = vpop.f32.mrf.mxu0
      %v2782 = vadd.f32 0.0, %v2781
      %2783 = vmatmul.f32.gmra.mxu0 %v2700
      %v2784 = vpop.f32.mrf.mxu0
      %v2785 = vadd.f32 0.0, %v2784
      %2786 = vmatmul.f32.gmra.mxu0 %v2701
      %v2787 = vpop.f32.mrf.mxu0
      %v2788 = vadd.f32 0.0, %v2787
      %2789 = vmatmul.f32.gmra.mxu0 %v2702
      %v2790 = vpop.f32.mrf.mxu0
      %v2791 = vadd.f32 0.0, %v2790
      %2792 = vmatmul.f32.gmra.mxu0 %v2703
      %v2793 = vpop.f32.mrf.mxu0
      %v2794 = vadd.f32 0.0, %v2793
      %2795 = vmatmul.f32.gmra.mxu0 %v2704
      %v2796 = vpop.f32.mrf.mxu0
      %v2797 = vadd.f32 0.0, %v2796
      %2798 = vmatmul.f32.gmra.mxu0 %v2705
      %v2799 = vpop.f32.mrf.mxu0
      %v2800 = vadd.f32 0.0, %v2799
      %2801 = vmatmul.f32.gmra.mxu0 %v2706
      %v2802 = vpop.f32.mrf.mxu0
      %v2803 = vadd.f32 0.0, %v2802
      %2804 = vmatmul.f32.gmra.mxu0 %v2707
      %v2805 = vpop.f32.mrf.mxu0
      %v2806 = vadd.f32 0.0, %v2805
      %2807 = vmatmul.f32.gmra.mxu0 %v2708
      %v2808 = vpop.f32.mrf.mxu0
      %v2809 = vadd.f32 0.0, %v2808
      %2810 = vmatmul.f32.gmra.mxu0 %v2709
      %v2811 = vpop.f32.mrf.mxu0
      %v2812 = vadd.f32 0.0, %v2811
      %2813 = vmatmul.f32.gmra.mxu0 %v2710
      %v2814 = vpop.f32.mrf.mxu0
      %v2815 = vadd.f32 0.0, %v2814
      %2816 = vmatmul.f32.gmra.mxu0 %v2711
      %v2817 = vpop.f32.mrf.mxu0
      %v2818 = vadd.f32 0.0, %v2817
      %2819 = vmatmul.f32.gmra.mxu0 %v2712
      %v2820 = vpop.f32.mrf.mxu0
      %v2821 = vadd.f32 0.0, %v2820
      %2822 = vmatmul.f32.gmra.mxu0 %v2713
      %v2823 = vpop.f32.mrf.mxu0
      %v2824 = vadd.f32 0.0, %v2823
      %2825 = vmatmul.f32.gmra.mxu0 %v2714
      %v2826 = vpop.f32.mrf.mxu0
      %v2827 = vadd.f32 0.0, %v2826
      %2828 = vmatmul.f32.gmra.mxu0 %v2715
      %v2829 = vpop.f32.mrf.mxu0
      %v2830 = vadd.f32 0.0, %v2829
      %2831 = vmatmul.f32.gmra.mxu0 %v2716
      %v2832 = vpop.f32.mrf.mxu0
      %v2833 = vadd.f32 0.0, %v2832
      %2834 = vmatmul.f32.gmra.mxu0 %v2717
      %v2835 = vpop.f32.mrf.mxu0
      %v2836 = vadd.f32 0.0, %v2835
      %2837 = vmatmul.f32.gmra.mxu0 %v2718
      %v2838 = vpop.f32.mrf.mxu0
      %v2839 = vadd.f32 0.0, %v2838
      %2840 = vmatmul.f32.gmra.mxu0 %v2719
      %v2841 = vpop.f32.mrf.mxu0
      %v2842 = vadd.f32 0.0, %v2841
      %2843 = vmatmul.f32.gmra.mxu0 %v2720
      %v2844 = vpop.f32.mrf.mxu0
      %v2845 = vadd.f32 0.0, %v2844
      %2846 = vmatmul.f32.gmra.mxu0 %v2721
      %v2847 = vpop.f32.mrf.mxu0
      %v2848 = vadd.f32 0.0, %v2847
      %2849 = vmatmul.f32.gmra.mxu0 %v2722
      %v2850 = vpop.f32.mrf.mxu0
      %v2851 = vadd.f32 0.0, %v2850
      %2852 = vdwg.mxu0
      %v2853 = vadd.f32 %v2659, %v2758
      %v2854 = vadd.f32 %v2660, %v2761
      %v2855 = vadd.f32 %v2661, %v2764
      %v2856 = vadd.f32 %v2662, %v2767
      %v2857 = vadd.f32 %v2663, %v2770
      %v2858 = vadd.f32 %v2664, %v2773
      %v2859 = vadd.f32 %v2665, %v2776
      %v2860 = vadd.f32 %v2666, %v2779
      %v2861 = vadd.f32 %v2667, %v2782
      %v2862 = vadd.f32 %v2668, %v2785
      %v2863 = vadd.f32 %v2669, %v2788
      %v2864 = vadd.f32 %v2670, %v2791
      %v2865 = vadd.f32 %v2671, %v2794
      %v2866 = vadd.f32 %v2672, %v2797
      %v2867 = vadd.f32 %v2673, %v2800
      %v2868 = vadd.f32 %v2674, %v2803
      %v2869 = vadd.f32 %v2675, %v2806
      %v2870 = vadd.f32 %v2676, %v2809
      %v2871 = vadd.f32 %v2677, %v2812
      %v2872 = vadd.f32 %v2678, %v2815
      %v2873 = vadd.f32 %v2679, %v2818
      %v2874 = vadd.f32 %v2680, %v2821
      %v2875 = vadd.f32 %v2681, %v2824
      %v2876 = vadd.f32 %v2682, %v2827
      %v2877 = vadd.f32 %v2683, %v2830
      %v2878 = vadd.f32 %v2684, %v2833
      %v2879 = vadd.f32 %v2685, %v2836
      %v2880 = vadd.f32 %v2686, %v2839
      %v2881 = vadd.f32 %v2687, %v2842
      %v2882 = vadd.f32 %v2688, %v2845
      %v2883 = vadd.f32 %v2689, %v2848
      %v2884 = vadd.f32 %v2690, %v2851
      %v2885 = vld [vmem:[%s257 + $0x1] sm:$0xff]
      %v2886 = vld [vmem:[%s257 + $0x9] sm:$0xff]
      %v2887 = vld [vmem:[%s257 + $0x19] sm:$0xff]
      %v2888 = vld [vmem:[%s257 + $0x21] sm:$0xff]
      %v2889 = vld [vmem:[%s257 + $0x31] sm:$0xff]
      %v2890 = vld [vmem:[%s257 + $0x39] sm:$0xff]
      %v2891 = vld [vmem:[%s257 + $0x49] sm:$0xff]
      %v2892 = vld [vmem:[%s257 + $0x51] sm:$0xff]
      %v2893 = vld [vmem:[%s257 + $0x61] sm:$0xff]
      %v2894 = vld [vmem:[%s257 + $0x69] sm:$0xff]
      %v2895 = vld [vmem:[%s257 + $0x79] sm:$0xff]
      %v2896 = vld [vmem:[%s257 + $0x81] sm:$0xff]
      %v2897 = vld [vmem:[%s257 + $0x91] sm:$0xff]
      %v2898 = vld [vmem:[%s257 + $0x99] sm:$0xff]
      %v2899 = vld [vmem:[%s257 + $0xa9] sm:$0xff]
      %v2900 = vld [vmem:[%s257 + $0xb1] sm:$0xff]
      %v2901 = vld [vmem:[%s257 + $0xc1] sm:$0xff]
      %v2902 = vld [vmem:[%s257 + $0xc9] sm:$0xff]
      %v2903 = vld [vmem:[%s257 + $0xd9] sm:$0xff]
      %v2904 = vld [vmem:[%s257 + $0xe1] sm:$0xff]
      %v2905 = vld [vmem:[%s257 + $0xf1] sm:$0xff]
      %v2906 = vld [vmem:[%s257 + $0xf9] sm:$0xff]
      %v2907 = vld [vmem:[%s257 + $0x109] sm:$0xff]
      %v2908 = vld [vmem:[%s257 + $0x111] sm:$0xff]
      %v2909 = vld [vmem:[%s257 + $0x121] sm:$0xff]
      %v2910 = vld [vmem:[%s257 + $0x129] sm:$0xff]
      %v2911 = vld [vmem:[%s257 + $0x139] sm:$0xff]
      %v2912 = vld [vmem:[%s257 + $0x141] sm:$0xff]
      %v2913 = vld [vmem:[%s257 + $0x151] sm:$0xff]
      %v2914 = vld [vmem:[%s257 + $0x159] sm:$0xff]
      %v2915 = vld [vmem:[%s257 + $0x169] sm:$0xff]
      %v2916 = vld [vmem:[%s257 + $0x171] sm:$0xff]
      %s2917 = scalar_lea.vmem %s1, 1664
      %v2918 = vld [vmem:[%s2917] sm:$0xff]
      %v2919 = vld [vmem:[%s2917 + $0x8] sm:$0xff]
      %v2920 = vld [vmem:[%s2917 + $0x10] sm:$0xff]
      %v2921 = vld [vmem:[%s2917 + $0x18] sm:$0xff]
      %v2922 = vld [vmem:[%s2917 + $0x20] sm:$0xff]
      %v2923 = vld [vmem:[%s2917 + $0x28] sm:$0xff]
      %v2924 = vld [vmem:[%s2917 + $0x30] sm:$0xff]
      %v2925 = vld [vmem:[%s2917 + $0x38] sm:$0xff]
      %v2926 = vld [vmem:[%s2917 + $0x40] sm:$0xff]
      %v2927 = vld [vmem:[%s2917 + $0x48] sm:$0xff]
      %v2928 = vld [vmem:[%s2917 + $0x50] sm:$0xff]
      %v2929 = vld [vmem:[%s2917 + $0x58] sm:$0xff]
      %v2930 = vld [vmem:[%s2917 + $0x60] sm:$0xff]
      %v2931 = vld [vmem:[%s2917 + $0x68] sm:$0xff]
      %v2932 = vld [vmem:[%s2917 + $0x70] sm:$0xff]
      %v2933 = vld [vmem:[%s2917 + $0x78] sm:$0xff]
      %2934 = vmatpush.msra.mxu0 %v2933
      %2935 = vmatpush.msra.mxu0 %v2932
      %2936 = vmatpush.msra.mxu0 %v2931
      %2937 = vmatpush.msra.mxu0 %v2930
      %2938 = vmatpush.msra.mxu0 %v2929
      %2939 = vmatpush.msra.mxu0 %v2928
      %2940 = vmatpush.msra.mxu0 %v2927
      %2941 = vmatpush.msra.mxu0 %v2926
      %2942 = vmatpush.msra.mxu0 %v2925
      %2943 = vmatpush.msra.mxu0 %v2924
      %2944 = vmatpush.msra.mxu0 %v2923
      %2945 = vmatpush.msra.mxu0 %v2922
      %2946 = vmatpush.msra.mxu0 %v2921
      %2947 = vmatpush.msra.mxu0 %v2920
      %2948 = vmatpush.msra.mxu0 %v2919
      %2949 = vmatpush.msra.mxu0 %v2918
      %2950 = vmatmul.f32.gmra.mxu0 %v2885
      %v2951 = vpop.f32.mrf.mxu0
      %v2952 = vadd.f32 0.0, %v2951
      %2953 = vmatmul.f32.gmra.mxu0 %v2886
      %v2954 = vpop.f32.mrf.mxu0
      %v2955 = vadd.f32 0.0, %v2954
      %2956 = vmatmul.f32.gmra.mxu0 %v2887
      %v2957 = vpop.f32.mrf.mxu0
      %v2958 = vadd.f32 0.0, %v2957
      %2959 = vmatmul.f32.gmra.mxu0 %v2888
      %v2960 = vpop.f32.mrf.mxu0
      %v2961 = vadd.f32 0.0, %v2960
      %2962 = vmatmul.f32.gmra.mxu0 %v2889
      %v2963 = vpop.f32.mrf.mxu0
      %v2964 = vadd.f32 0.0, %v2963
      %2965 = vmatmul.f32.gmra.mxu0 %v2890
      %v2966 = vpop.f32.mrf.mxu0
      %v2967 = vadd.f32 0.0, %v2966
      %2968 = vmatmul.f32.gmra.mxu0 %v2891
      %v2969 = vpop.f32.mrf.mxu0
      %v2970 = vadd.f32 0.0, %v2969
      %2971 = vmatmul.f32.gmra.mxu0 %v2892
      %v2972 = vpop.f32.mrf.mxu0
      %v2973 = vadd.f32 0.0, %v2972
      %2974 = vmatmul.f32.gmra.mxu0 %v2893
      %v2975 = vpop.f32.mrf.mxu0
      %v2976 = vadd.f32 0.0, %v2975
      %2977 = vmatmul.f32.gmra.mxu0 %v2894
      %v2978 = vpop.f32.mrf.mxu0
      %v2979 = vadd.f32 0.0, %v2978
      %2980 = vmatmul.f32.gmra.mxu0 %v2895
      %v2981 = vpop.f32.mrf.mxu0
      %v2982 = vadd.f32 0.0, %v2981
      %2983 = vmatmul.f32.gmra.mxu0 %v2896
      %v2984 = vpop.f32.mrf.mxu0
      %v2985 = vadd.f32 0.0, %v2984
      %2986 = vmatmul.f32.gmra.mxu0 %v2897
      %v2987 = vpop.f32.mrf.mxu0
      %v2988 = vadd.f32 0.0, %v2987
      %2989 = vmatmul.f32.gmra.mxu0 %v2898
      %v2990 = vpop.f32.mrf.mxu0
      %v2991 = vadd.f32 0.0, %v2990
      %2992 = vmatmul.f32.gmra.mxu0 %v2899
      %v2993 = vpop.f32.mrf.mxu0
      %v2994 = vadd.f32 0.0, %v2993
      %2995 = vmatmul.f32.gmra.mxu0 %v2900
      %v2996 = vpop.f32.mrf.mxu0
      %v2997 = vadd.f32 0.0, %v2996
      %2998 = vmatmul.f32.gmra.mxu0 %v2901
      %v2999 = vpop.f32.mrf.mxu0
      %v3000 = vadd.f32 0.0, %v2999
      %3001 = vmatmul.f32.gmra.mxu0 %v2902
      %v3002 = vpop.f32.mrf.mxu0
      %v3003 = vadd.f32 0.0, %v3002
      %3004 = vmatmul.f32.gmra.mxu0 %v2903
      %v3005 = vpop.f32.mrf.mxu0
      %v3006 = vadd.f32 0.0, %v3005
      %3007 = vmatmul.f32.gmra.mxu0 %v2904
      %v3008 = vpop.f32.mrf.mxu0
      %v3009 = vadd.f32 0.0, %v3008
      %3010 = vmatmul.f32.gmra.mxu0 %v2905
      %v3011 = vpop.f32.mrf.mxu0
      %v3012 = vadd.f32 0.0, %v3011
      %3013 = vmatmul.f32.gmra.mxu0 %v2906
      %v3014 = vpop.f32.mrf.mxu0
      %v3015 = vadd.f32 0.0, %v3014
      %3016 = vmatmul.f32.gmra.mxu0 %v2907
      %v3017 = vpop.f32.mrf.mxu0
      %v3018 = vadd.f32 0.0, %v3017
      %3019 = vmatmul.f32.gmra.mxu0 %v2908
      %v3020 = vpop.f32.mrf.mxu0
      %v3021 = vadd.f32 0.0, %v3020
      %3022 = vmatmul.f32.gmra.mxu0 %v2909
      %v3023 = vpop.f32.mrf.mxu0
      %v3024 = vadd.f32 0.0, %v3023
      %3025 = vmatmul.f32.gmra.mxu0 %v2910
      %v3026 = vpop.f32.mrf.mxu0
      %v3027 = vadd.f32 0.0, %v3026
      %3028 = vmatmul.f32.gmra.mxu0 %v2911
      %v3029 = vpop.f32.mrf.mxu0
      %v3030 = vadd.f32 0.0, %v3029
      %3031 = vmatmul.f32.gmra.mxu0 %v2912
      %v3032 = vpop.f32.mrf.mxu0
      %v3033 = vadd.f32 0.0, %v3032
      %3034 = vmatmul.f32.gmra.mxu0 %v2913
      %v3035 = vpop.f32.mrf.mxu0
      %v3036 = vadd.f32 0.0, %v3035
      %3037 = vmatmul.f32.gmra.mxu0 %v2914
      %v3038 = vpop.f32.mrf.mxu0
      %v3039 = vadd.f32 0.0, %v3038
      %3040 = vmatmul.f32.gmra.mxu0 %v2915
      %v3041 = vpop.f32.mrf.mxu0
      %v3042 = vadd.f32 0.0, %v3041
      %3043 = vmatmul.f32.gmra.mxu0 %v2916
      %v3044 = vpop.f32.mrf.mxu0
      %v3045 = vadd.f32 0.0, %v3044
      %3046 = vdwg.mxu0
      %v3047 = vadd.f32 %v2853, %v2952
      %v3048 = vadd.f32 %v2854, %v2955
      %v3049 = vadd.f32 %v2855, %v2958
      %v3050 = vadd.f32 %v2856, %v2961
      %v3051 = vadd.f32 %v2857, %v2964
      %v3052 = vadd.f32 %v2858, %v2967
      %v3053 = vadd.f32 %v2859, %v2970
      %v3054 = vadd.f32 %v2860, %v2973
      %v3055 = vadd.f32 %v2861, %v2976
      %v3056 = vadd.f32 %v2862, %v2979
      %v3057 = vadd.f32 %v2863, %v2982
      %v3058 = vadd.f32 %v2864, %v2985
      %v3059 = vadd.f32 %v2865, %v2988
      %v3060 = vadd.f32 %v2866, %v2991
      %v3061 = vadd.f32 %v2867, %v2994
      %v3062 = vadd.f32 %v2868, %v2997
      %v3063 = vadd.f32 %v2869, %v3000
      %v3064 = vadd.f32 %v2870, %v3003
      %v3065 = vadd.f32 %v2871, %v3006
      %v3066 = vadd.f32 %v2872, %v3009
      %v3067 = vadd.f32 %v2873, %v3012
      %v3068 = vadd.f32 %v2874, %v3015
      %v3069 = vadd.f32 %v2875, %v3018
      %v3070 = vadd.f32 %v2876, %v3021
      %v3071 = vadd.f32 %v2877, %v3024
      %v3072 = vadd.f32 %v2878, %v3027
      %v3073 = vadd.f32 %v2879, %v3030
      %v3074 = vadd.f32 %v2880, %v3033
      %v3075 = vadd.f32 %v2881, %v3036
      %v3076 = vadd.f32 %v2882, %v3039
      %v3077 = vadd.f32 %v2883, %v3042
      %v3078 = vadd.f32 %v2884, %v3045
      %v3079 = vld [vmem:[%s257 + $0x2] sm:$0xff]
      %v3080 = vld [vmem:[%s257 + $0xa] sm:$0xff]
      %v3081 = vld [vmem:[%s257 + $0x1a] sm:$0xff]
      %v3082 = vld [vmem:[%s257 + $0x22] sm:$0xff]
      %v3083 = vld [vmem:[%s257 + $0x32] sm:$0xff]
      %v3084 = vld [vmem:[%s257 + $0x3a] sm:$0xff]
      %v3085 = vld [vmem:[%s257 + $0x4a] sm:$0xff]
      %v3086 = vld [vmem:[%s257 + $0x52] sm:$0xff]
      %v3087 = vld [vmem:[%s257 + $0x62] sm:$0xff]
      %v3088 = vld [vmem:[%s257 + $0x6a] sm:$0xff]
      %v3089 = vld [vmem:[%s257 + $0x7a] sm:$0xff]
      %v3090 = vld [vmem:[%s257 + $0x82] sm:$0xff]
      %v3091 = vld [vmem:[%s257 + $0x92] sm:$0xff]
      %v3092 = vld [vmem:[%s257 + $0x9a] sm:$0xff]
      %v3093 = vld [vmem:[%s257 + $0xaa] sm:$0xff]
      %v3094 = vld [vmem:[%s257 + $0xb2] sm:$0xff]
      %v3095 = vld [vmem:[%s257 + $0xc2] sm:$0xff]
      %v3096 = vld [vmem:[%s257 + $0xca] sm:$0xff]
      %v3097 = vld [vmem:[%s257 + $0xda] sm:$0xff]
      %v3098 = vld [vmem:[%s257 + $0xe2] sm:$0xff]
      %v3099 = vld [vmem:[%s257 + $0xf2] sm:$0xff]
      %v3100 = vld [vmem:[%s257 + $0xfa] sm:$0xff]
      %v3101 = vld [vmem:[%s257 + $0x10a] sm:$0xff]
      %v3102 = vld [vmem:[%s257 + $0x112] sm:$0xff]
      %v3103 = vld [vmem:[%s257 + $0x122] sm:$0xff]
      %v3104 = vld [vmem:[%s257 + $0x12a] sm:$0xff]
      %v3105 = vld [vmem:[%s257 + $0x13a] sm:$0xff]
      %v3106 = vld [vmem:[%s257 + $0x142] sm:$0xff]
      %v3107 = vld [vmem:[%s257 + $0x152] sm:$0xff]
      %v3108 = vld [vmem:[%s257 + $0x15a] sm:$0xff]
      %v3109 = vld [vmem:[%s257 + $0x16a] sm:$0xff]
      %v3110 = vld [vmem:[%s257 + $0x172] sm:$0xff]
      %s3111 = scalar_lea.vmem %s1, 1792
      %v3112 = vld [vmem:[%s3111] sm:$0xff]
      %v3113 = vld [vmem:[%s3111 + $0x8] sm:$0xff]
      %v3114 = vld [vmem:[%s3111 + $0x10] sm:$0xff]
      %v3115 = vld [vmem:[%s3111 + $0x18] sm:$0xff]
      %v3116 = vld [vmem:[%s3111 + $0x20] sm:$0xff]
      %v3117 = vld [vmem:[%s3111 + $0x28] sm:$0xff]
      %v3118 = vld [vmem:[%s3111 + $0x30] sm:$0xff]
      %v3119 = vld [vmem:[%s3111 + $0x38] sm:$0xff]
      %v3120 = vld [vmem:[%s3111 + $0x40] sm:$0xff]
      %v3121 = vld [vmem:[%s3111 + $0x48] sm:$0xff]
      %v3122 = vld [vmem:[%s3111 + $0x50] sm:$0xff]
      %v3123 = vld [vmem:[%s3111 + $0x58] sm:$0xff]
      %v3124 = vld [vmem:[%s3111 + $0x60] sm:$0xff]
      %v3125 = vld [vmem:[%s3111 + $0x68] sm:$0xff]
      %v3126 = vld [vmem:[%s3111 + $0x70] sm:$0xff]
      %v3127 = vld [vmem:[%s3111 + $0x78] sm:$0xff]
      %3128 = vmatpush.msra.mxu0 %v3127
      %3129 = vmatpush.msra.mxu0 %v3126
      %3130 = vmatpush.msra.mxu0 %v3125
      %3131 = vmatpush.msra.mxu0 %v3124
      %3132 = vmatpush.msra.mxu0 %v3123
      %3133 = vmatpush.msra.mxu0 %v3122
      %3134 = vmatpush.msra.mxu0 %v3121
      %3135 = vmatpush.msra.mxu0 %v3120
      %3136 = vmatpush.msra.mxu0 %v3119
      %3137 = vmatpush.msra.mxu0 %v3118
      %3138 = vmatpush.msra.mxu0 %v3117
      %3139 = vmatpush.msra.mxu0 %v3116
      %3140 = vmatpush.msra.mxu0 %v3115
      %3141 = vmatpush.msra.mxu0 %v3114
      %3142 = vmatpush.msra.mxu0 %v3113
      %3143 = vmatpush.msra.mxu0 %v3112
      %3144 = vmatmul.f32.gmra.mxu0 %v3079
      %v3145 = vpop.f32.mrf.mxu0
      %v3146 = vadd.f32 0.0, %v3145
      %3147 = vmatmul.f32.gmra.mxu0 %v3080
      %v3148 = vpop.f32.mrf.mxu0
      %v3149 = vadd.f32 0.0, %v3148
      %3150 = vmatmul.f32.gmra.mxu0 %v3081
      %v3151 = vpop.f32.mrf.mxu0
      %v3152 = vadd.f32 0.0, %v3151
      %3153 = vmatmul.f32.gmra.mxu0 %v3082
      %v3154 = vpop.f32.mrf.mxu0
      %v3155 = vadd.f32 0.0, %v3154
      %3156 = vmatmul.f32.gmra.mxu0 %v3083
      %v3157 = vpop.f32.mrf.mxu0
      %v3158 = vadd.f32 0.0, %v3157
      %3159 = vmatmul.f32.gmra.mxu0 %v3084
      %v3160 = vpop.f32.mrf.mxu0
      %v3161 = vadd.f32 0.0, %v3160
      %3162 = vmatmul.f32.gmra.mxu0 %v3085
      %v3163 = vpop.f32.mrf.mxu0
      %v3164 = vadd.f32 0.0, %v3163
      %3165 = vmatmul.f32.gmra.mxu0 %v3086
      %v3166 = vpop.f32.mrf.mxu0
      %v3167 = vadd.f32 0.0, %v3166
      %3168 = vmatmul.f32.gmra.mxu0 %v3087
      %v3169 = vpop.f32.mrf.mxu0
      %v3170 = vadd.f32 0.0, %v3169
      %3171 = vmatmul.f32.gmra.mxu0 %v3088
      %v3172 = vpop.f32.mrf.mxu0
      %v3173 = vadd.f32 0.0, %v3172
      %3174 = vmatmul.f32.gmra.mxu0 %v3089
      %v3175 = vpop.f32.mrf.mxu0
      %v3176 = vadd.f32 0.0, %v3175
      %3177 = vmatmul.f32.gmra.mxu0 %v3090
      %v3178 = vpop.f32.mrf.mxu0
      %v3179 = vadd.f32 0.0, %v3178
      %3180 = vmatmul.f32.gmra.mxu0 %v3091
      %v3181 = vpop.f32.mrf.mxu0
      %v3182 = vadd.f32 0.0, %v3181
      %3183 = vmatmul.f32.gmra.mxu0 %v3092
      %v3184 = vpop.f32.mrf.mxu0
      %v3185 = vadd.f32 0.0, %v3184
      %3186 = vmatmul.f32.gmra.mxu0 %v3093
      %v3187 = vpop.f32.mrf.mxu0
      %v3188 = vadd.f32 0.0, %v3187
      %3189 = vmatmul.f32.gmra.mxu0 %v3094
      %v3190 = vpop.f32.mrf.mxu0
      %v3191 = vadd.f32 0.0, %v3190
      %3192 = vmatmul.f32.gmra.mxu0 %v3095
      %v3193 = vpop.f32.mrf.mxu0
      %v3194 = vadd.f32 0.0, %v3193
      %3195 = vmatmul.f32.gmra.mxu0 %v3096
      %v3196 = vpop.f32.mrf.mxu0
      %v3197 = vadd.f32 0.0, %v3196
      %3198 = vmatmul.f32.gmra.mxu0 %v3097
      %v3199 = vpop.f32.mrf.mxu0
      %v3200 = vadd.f32 0.0, %v3199
      %3201 = vmatmul.f32.gmra.mxu0 %v3098
      %v3202 = vpop.f32.mrf.mxu0
      %v3203 = vadd.f32 0.0, %v3202
      %3204 = vmatmul.f32.gmra.mxu0 %v3099
      %v3205 = vpop.f32.mrf.mxu0
      %v3206 = vadd.f32 0.0, %v3205
      %3207 = vmatmul.f32.gmra.mxu0 %v3100
      %v3208 = vpop.f32.mrf.mxu0
      %v3209 = vadd.f32 0.0, %v3208
      %3210 = vmatmul.f32.gmra.mxu0 %v3101
      %v3211 = vpop.f32.mrf.mxu0
      %v3212 = vadd.f32 0.0, %v3211
      %3213 = vmatmul.f32.gmra.mxu0 %v3102
      %v3214 = vpop.f32.mrf.mxu0
      %v3215 = vadd.f32 0.0, %v3214
      %3216 = vmatmul.f32.gmra.mxu0 %v3103
      %v3217 = vpop.f32.mrf.mxu0
      %v3218 = vadd.f32 0.0, %v3217
      %3219 = vmatmul.f32.gmra.mxu0 %v3104
      %v3220 = vpop.f32.mrf.mxu0
      %v3221 = vadd.f32 0.0, %v3220
      %3222 = vmatmul.f32.gmra.mxu0 %v3105
      %v3223 = vpop.f32.mrf.mxu0
      %v3224 = vadd.f32 0.0, %v3223
      %3225 = vmatmul.f32.gmra.mxu0 %v3106
      %v3226 = vpop.f32.mrf.mxu0
      %v3227 = vadd.f32 0.0, %v3226
      %3228 = vmatmul.f32.gmra.mxu0 %v3107
      %v3229 = vpop.f32.mrf.mxu0
      %v3230 = vadd.f32 0.0, %v3229
      %3231 = vmatmul.f32.gmra.mxu0 %v3108
      %v3232 = vpop.f32.mrf.mxu0
      %v3233 = vadd.f32 0.0, %v3232
      %3234 = vmatmul.f32.gmra.mxu0 %v3109
      %v3235 = vpop.f32.mrf.mxu0
      %v3236 = vadd.f32 0.0, %v3235
      %3237 = vmatmul.f32.gmra.mxu0 %v3110
      %v3238 = vpop.f32.mrf.mxu0
      %v3239 = vadd.f32 0.0, %v3238
      %3240 = vdwg.mxu0
      %v3241 = vadd.f32 %v3047, %v3146
      %v3242 = vadd.f32 %v3048, %v3149
      %v3243 = vadd.f32 %v3049, %v3152
      %v3244 = vadd.f32 %v3050, %v3155
      %v3245 = vadd.f32 %v3051, %v3158
      %v3246 = vadd.f32 %v3052, %v3161
      %v3247 = vadd.f32 %v3053, %v3164
      %v3248 = vadd.f32 %v3054, %v3167
      %v3249 = vadd.f32 %v3055, %v3170
      %v3250 = vadd.f32 %v3056, %v3173
      %v3251 = vadd.f32 %v3057, %v3176
      %v3252 = vadd.f32 %v3058, %v3179
      %v3253 = vadd.f32 %v3059, %v3182
      %v3254 = vadd.f32 %v3060, %v3185
      %v3255 = vadd.f32 %v3061, %v3188
      %v3256 = vadd.f32 %v3062, %v3191
      %v3257 = vadd.f32 %v3063, %v3194
      %v3258 = vadd.f32 %v3064, %v3197
      %v3259 = vadd.f32 %v3065, %v3200
      %v3260 = vadd.f32 %v3066, %v3203
      %v3261 = vadd.f32 %v3067, %v3206
      %v3262 = vadd.f32 %v3068, %v3209
      %v3263 = vadd.f32 %v3069, %v3212
      %v3264 = vadd.f32 %v3070, %v3215
      %v3265 = vadd.f32 %v3071, %v3218
      %v3266 = vadd.f32 %v3072, %v3221
      %v3267 = vadd.f32 %v3073, %v3224
      %v3268 = vadd.f32 %v3074, %v3227
      %v3269 = vadd.f32 %v3075, %v3230
      %v3270 = vadd.f32 %v3076, %v3233
      %v3271 = vadd.f32 %v3077, %v3236
      %v3272 = vadd.f32 %v3078, %v3239
      %v3273 = vld [vmem:[%s1457] sm:$0xff]
      %v3274 = vld [vmem:[%s1457 + $0x8] sm:$0xff]
      %v3275 = vld [vmem:[%s1457 + $0x18] sm:$0xff]
      %v3276 = vld [vmem:[%s1457 + $0x20] sm:$0xff]
      %v3277 = vld [vmem:[%s1457 + $0x30] sm:$0xff]
      %v3278 = vld [vmem:[%s1457 + $0x38] sm:$0xff]
      %v3279 = vld [vmem:[%s1457 + $0x48] sm:$0xff]
      %v3280 = vld [vmem:[%s1457 + $0x50] sm:$0xff]
      %v3281 = vld [vmem:[%s1457 + $0x60] sm:$0xff]
      %v3282 = vld [vmem:[%s1457 + $0x68] sm:$0xff]
      %v3283 = vld [vmem:[%s1457 + $0x78] sm:$0xff]
      %v3284 = vld [vmem:[%s1457 + $0x80] sm:$0xff]
      %v3285 = vld [vmem:[%s1457 + $0x90] sm:$0xff]
      %v3286 = vld [vmem:[%s1457 + $0x98] sm:$0xff]
      %v3287 = vld [vmem:[%s1457 + $0xa8] sm:$0xff]
      %v3288 = vld [vmem:[%s1457 + $0xb0] sm:$0xff]
      %v3289 = vld [vmem:[%s1457 + $0xc0] sm:$0xff]
      %v3290 = vld [vmem:[%s1457 + $0xc8] sm:$0xff]
      %v3291 = vld [vmem:[%s1457 + $0xd8] sm:$0xff]
      %v3292 = vld [vmem:[%s1457 + $0xe0] sm:$0xff]
      %v3293 = vld [vmem:[%s1457 + $0xf0] sm:$0xff]
      %v3294 = vld [vmem:[%s1457 + $0xf8] sm:$0xff]
      %v3295 = vld [vmem:[%s1457 + $0x108] sm:$0xff]
      %v3296 = vld [vmem:[%s1457 + $0x110] sm:$0xff]
      %v3297 = vld [vmem:[%s1457 + $0x120] sm:$0xff]
      %v3298 = vld [vmem:[%s1457 + $0x128] sm:$0xff]
      %v3299 = vld [vmem:[%s1457 + $0x138] sm:$0xff]
      %v3300 = vld [vmem:[%s1457 + $0x140] sm:$0xff]
      %v3301 = vld [vmem:[%s1457 + $0x150] sm:$0xff]
      %v3302 = vld [vmem:[%s1457 + $0x158] sm:$0xff]
      %v3303 = vld [vmem:[%s1457 + $0x168] sm:$0xff]
      %v3304 = vld [vmem:[%s1457 + $0x170] sm:$0xff]
      %s3305 = scalar_lea.vmem %s1, 1920
      %v3306 = vld [vmem:[%s3305] sm:$0xff]
      %v3307 = vld [vmem:[%s3305 + $0x8] sm:$0xff]
      %v3308 = vld [vmem:[%s3305 + $0x10] sm:$0xff]
      %v3309 = vld [vmem:[%s3305 + $0x18] sm:$0xff]
      %v3310 = vld [vmem:[%s3305 + $0x20] sm:$0xff]
      %v3311 = vld [vmem:[%s3305 + $0x28] sm:$0xff]
      %v3312 = vld [vmem:[%s3305 + $0x30] sm:$0xff]
      %v3313 = vld [vmem:[%s3305 + $0x38] sm:$0xff]
      %v3314 = vld [vmem:[%s3305 + $0x40] sm:$0xff]
      %v3315 = vld [vmem:[%s3305 + $0x48] sm:$0xff]
      %v3316 = vld [vmem:[%s3305 + $0x50] sm:$0xff]
      %v3317 = vld [vmem:[%s3305 + $0x58] sm:$0xff]
      %v3318 = vld [vmem:[%s3305 + $0x60] sm:$0xff]
      %v3319 = vld [vmem:[%s3305 + $0x68] sm:$0xff]
      %v3320 = vld [vmem:[%s3305 + $0x70] sm:$0xff]
      %v3321 = vld [vmem:[%s3305 + $0x78] sm:$0xff]
      %3322 = vmatpush.msra.mxu0 %v3321
      %3323 = vmatpush.msra.mxu0 %v3320
      %3324 = vmatpush.msra.mxu0 %v3319
      %3325 = vmatpush.msra.mxu0 %v3318
      %3326 = vmatpush.msra.mxu0 %v3317
      %3327 = vmatpush.msra.mxu0 %v3316
      %3328 = vmatpush.msra.mxu0 %v3315
      %3329 = vmatpush.msra.mxu0 %v3314
      %3330 = vmatpush.msra.mxu0 %v3313
      %3331 = vmatpush.msra.mxu0 %v3312
      %3332 = vmatpush.msra.mxu0 %v3311
      %3333 = vmatpush.msra.mxu0 %v3310
      %3334 = vmatpush.msra.mxu0 %v3309
      %3335 = vmatpush.msra.mxu0 %v3308
      %3336 = vmatpush.msra.mxu0 %v3307
      %3337 = vmatpush.msra.mxu0 %v3306
      %3338 = vmatmul.f32.gmra.mxu0 %v3273
      %v3339 = vpop.f32.mrf.mxu0
      %v3340 = vadd.f32 0.0, %v3339
      %3341 = vmatmul.f32.gmra.mxu0 %v3274
      %v3342 = vpop.f32.mrf.mxu0
      %v3343 = vadd.f32 0.0, %v3342
      %3344 = vmatmul.f32.gmra.mxu0 %v3275
      %v3345 = vpop.f32.mrf.mxu0
      %v3346 = vadd.f32 0.0, %v3345
      %3347 = vmatmul.f32.gmra.mxu0 %v3276
      %v3348 = vpop.f32.mrf.mxu0
      %v3349 = vadd.f32 0.0, %v3348
      %3350 = vmatmul.f32.gmra.mxu0 %v3277
      %v3351 = vpop.f32.mrf.mxu0
      %v3352 = vadd.f32 0.0, %v3351
      %3353 = vmatmul.f32.gmra.mxu0 %v3278
      %v3354 = vpop.f32.mrf.mxu0
      %v3355 = vadd.f32 0.0, %v3354
      %3356 = vmatmul.f32.gmra.mxu0 %v3279
      %v3357 = vpop.f32.mrf.mxu0
      %v3358 = vadd.f32 0.0, %v3357
      %3359 = vmatmul.f32.gmra.mxu0 %v3280
      %v3360 = vpop.f32.mrf.mxu0
      %v3361 = vadd.f32 0.0, %v3360
      %3362 = vmatmul.f32.gmra.mxu0 %v3281
      %v3363 = vpop.f32.mrf.mxu0
      %v3364 = vadd.f32 0.0, %v3363
      %3365 = vmatmul.f32.gmra.mxu0 %v3282
      %v3366 = vpop.f32.mrf.mxu0
      %v3367 = vadd.f32 0.0, %v3366
      %3368 = vmatmul.f32.gmra.mxu0 %v3283
      %v3369 = vpop.f32.mrf.mxu0
      %v3370 = vadd.f32 0.0, %v3369
      %3371 = vmatmul.f32.gmra.mxu0 %v3284
      %v3372 = vpop.f32.mrf.mxu0
      %v3373 = vadd.f32 0.0, %v3372
      %3374 = vmatmul.f32.gmra.mxu0 %v3285
      %v3375 = vpop.f32.mrf.mxu0
      %v3376 = vadd.f32 0.0, %v3375
      %3377 = vmatmul.f32.gmra.mxu0 %v3286
      %v3378 = vpop.f32.mrf.mxu0
      %v3379 = vadd.f32 0.0, %v3378
      %3380 = vmatmul.f32.gmra.mxu0 %v3287
      %v3381 = vpop.f32.mrf.mxu0
      %v3382 = vadd.f32 0.0, %v3381
      %3383 = vmatmul.f32.gmra.mxu0 %v3288
      %v3384 = vpop.f32.mrf.mxu0
      %v3385 = vadd.f32 0.0, %v3384
      %3386 = vmatmul.f32.gmra.mxu0 %v3289
      %v3387 = vpop.f32.mrf.mxu0
      %v3388 = vadd.f32 0.0, %v3387
      %3389 = vmatmul.f32.gmra.mxu0 %v3290
      %v3390 = vpop.f32.mrf.mxu0
      %v3391 = vadd.f32 0.0, %v3390
      %3392 = vmatmul.f32.gmra.mxu0 %v3291
      %v3393 = vpop.f32.mrf.mxu0
      %v3394 = vadd.f32 0.0, %v3393
      %3395 = vmatmul.f32.gmra.mxu0 %v3292
      %v3396 = vpop.f32.mrf.mxu0
      %v3397 = vadd.f32 0.0, %v3396
      %3398 = vmatmul.f32.gmra.mxu0 %v3293
      %v3399 = vpop.f32.mrf.mxu0
      %v3400 = vadd.f32 0.0, %v3399
      %3401 = vmatmul.f32.gmra.mxu0 %v3294
      %v3402 = vpop.f32.mrf.mxu0
      %v3403 = vadd.f32 0.0, %v3402
      %3404 = vmatmul.f32.gmra.mxu0 %v3295
      %v3405 = vpop.f32.mrf.mxu0
      %v3406 = vadd.f32 0.0, %v3405
      %3407 = vmatmul.f32.gmra.mxu0 %v3296
      %v3408 = vpop.f32.mrf.mxu0
      %v3409 = vadd.f32 0.0, %v3408
      %3410 = vmatmul.f32.gmra.mxu0 %v3297
      %v3411 = vpop.f32.mrf.mxu0
      %v3412 = vadd.f32 0.0, %v3411
      %3413 = vmatmul.f32.gmra.mxu0 %v3298
      %v3414 = vpop.f32.mrf.mxu0
      %v3415 = vadd.f32 0.0, %v3414
      %3416 = vmatmul.f32.gmra.mxu0 %v3299
      %v3417 = vpop.f32.mrf.mxu0
      %v3418 = vadd.f32 0.0, %v3417
      %3419 = vmatmul.f32.gmra.mxu0 %v3300
      %v3420 = vpop.f32.mrf.mxu0
      %v3421 = vadd.f32 0.0, %v3420
      %3422 = vmatmul.f32.gmra.mxu0 %v3301
      %v3423 = vpop.f32.mrf.mxu0
      %v3424 = vadd.f32 0.0, %v3423
      %3425 = vmatmul.f32.gmra.mxu0 %v3302
      %v3426 = vpop.f32.mrf.mxu0
      %v3427 = vadd.f32 0.0, %v3426
      %3428 = vmatmul.f32.gmra.mxu0 %v3303
      %v3429 = vpop.f32.mrf.mxu0
      %v3430 = vadd.f32 0.0, %v3429
      %3431 = vmatmul.f32.gmra.mxu0 %v3304
      %v3432 = vpop.f32.mrf.mxu0
      %v3433 = vadd.f32 0.0, %v3432
      %3434 = vdwg.mxu0
      %v3435 = vadd.f32 %v3241, %v3340
      %v3436 = vadd.f32 %v3242, %v3343
      %v3437 = vadd.f32 %v3243, %v3346
      %v3438 = vadd.f32 %v3244, %v3349
      %v3439 = vadd.f32 %v3245, %v3352
      %v3440 = vadd.f32 %v3246, %v3355
      %v3441 = vadd.f32 %v3247, %v3358
      %v3442 = vadd.f32 %v3248, %v3361
      %v3443 = vadd.f32 %v3249, %v3364
      %v3444 = vadd.f32 %v3250, %v3367
      %v3445 = vadd.f32 %v3251, %v3370
      %v3446 = vadd.f32 %v3252, %v3373
      %v3447 = vadd.f32 %v3253, %v3376
      %v3448 = vadd.f32 %v3254, %v3379
      %v3449 = vadd.f32 %v3255, %v3382
      %v3450 = vadd.f32 %v3256, %v3385
      %v3451 = vadd.f32 %v3257, %v3388
      %v3452 = vadd.f32 %v3258, %v3391
      %v3453 = vadd.f32 %v3259, %v3394
      %v3454 = vadd.f32 %v3260, %v3397
      %v3455 = vadd.f32 %v3261, %v3400
      %v3456 = vadd.f32 %v3262, %v3403
      %v3457 = vadd.f32 %v3263, %v3406
      %v3458 = vadd.f32 %v3264, %v3409
      %v3459 = vadd.f32 %v3265, %v3412
      %v3460 = vadd.f32 %v3266, %v3415
      %v3461 = vadd.f32 %v3267, %v3418
      %v3462 = vadd.f32 %v3268, %v3421
      %v3463 = vadd.f32 %v3269, %v3424
      %v3464 = vadd.f32 %v3270, %v3427
      %v3465 = vadd.f32 %v3271, %v3430
      %v3466 = vadd.f32 %v3272, %v3433
      %v3467 = vld [vmem:[%s1457 + $0x1] sm:$0xff]
      %v3468 = vld [vmem:[%s1457 + $0x9] sm:$0xff]
      %v3469 = vld [vmem:[%s1457 + $0x19] sm:$0xff]
      %v3470 = vld [vmem:[%s1457 + $0x21] sm:$0xff]
      %v3471 = vld [vmem:[%s1457 + $0x31] sm:$0xff]
      %v3472 = vld [vmem:[%s1457 + $0x39] sm:$0xff]
      %v3473 = vld [vmem:[%s1457 + $0x49] sm:$0xff]
      %v3474 = vld [vmem:[%s1457 + $0x51] sm:$0xff]
      %v3475 = vld [vmem:[%s1457 + $0x61] sm:$0xff]
      %v3476 = vld [vmem:[%s1457 + $0x69] sm:$0xff]
      %v3477 = vld [vmem:[%s1457 + $0x79] sm:$0xff]
      %v3478 = vld [vmem:[%s1457 + $0x81] sm:$0xff]
      %v3479 = vld [vmem:[%s1457 + $0x91] sm:$0xff]
      %v3480 = vld [vmem:[%s1457 + $0x99] sm:$0xff]
      %v3481 = vld [vmem:[%s1457 + $0xa9] sm:$0xff]
      %v3482 = vld [vmem:[%s1457 + $0xb1] sm:$0xff]
      %v3483 = vld [vmem:[%s1457 + $0xc1] sm:$0xff]
      %v3484 = vld [vmem:[%s1457 + $0xc9] sm:$0xff]
      %v3485 = vld [vmem:[%s1457 + $0xd9] sm:$0xff]
      %v3486 = vld [vmem:[%s1457 + $0xe1] sm:$0xff]
      %v3487 = vld [vmem:[%s1457 + $0xf1] sm:$0xff]
      %v3488 = vld [vmem:[%s1457 + $0xf9] sm:$0xff]
      %v3489 = vld [vmem:[%s1457 + $0x109] sm:$0xff]
      %v3490 = vld [vmem:[%s1457 + $0x111] sm:$0xff]
      %v3491 = vld [vmem:[%s1457 + $0x121] sm:$0xff]
      %v3492 = vld [vmem:[%s1457 + $0x129] sm:$0xff]
      %v3493 = vld [vmem:[%s1457 + $0x139] sm:$0xff]
      %v3494 = vld [vmem:[%s1457 + $0x141] sm:$0xff]
      %v3495 = vld [vmem:[%s1457 + $0x151] sm:$0xff]
      %v3496 = vld [vmem:[%s1457 + $0x159] sm:$0xff]
      %v3497 = vld [vmem:[%s1457 + $0x169] sm:$0xff]
      %v3498 = vld [vmem:[%s1457 + $0x171] sm:$0xff]
      %s3499 = scalar_lea.vmem %s1, 2048
      %v3500 = vld [vmem:[%s3499] sm:$0xff]
      %v3501 = vld [vmem:[%s3499 + $0x8] sm:$0xff]
      %v3502 = vld [vmem:[%s3499 + $0x10] sm:$0xff]
      %v3503 = vld [vmem:[%s3499 + $0x18] sm:$0xff]
      %v3504 = vld [vmem:[%s3499 + $0x20] sm:$0xff]
      %v3505 = vld [vmem:[%s3499 + $0x28] sm:$0xff]
      %v3506 = vld [vmem:[%s3499 + $0x30] sm:$0xff]
      %v3507 = vld [vmem:[%s3499 + $0x38] sm:$0xff]
      %v3508 = vld [vmem:[%s3499 + $0x40] sm:$0xff]
      %v3509 = vld [vmem:[%s3499 + $0x48] sm:$0xff]
      %v3510 = vld [vmem:[%s3499 + $0x50] sm:$0xff]
      %v3511 = vld [vmem:[%s3499 + $0x58] sm:$0xff]
      %v3512 = vld [vmem:[%s3499 + $0x60] sm:$0xff]
      %v3513 = vld [vmem:[%s3499 + $0x68] sm:$0xff]
      %v3514 = vld [vmem:[%s3499 + $0x70] sm:$0xff]
      %v3515 = vld [vmem:[%s3499 + $0x78] sm:$0xff]
      %3516 = vmatpush.msra.mxu0 %v3515
      %3517 = vmatpush.msra.mxu0 %v3514
      %3518 = vmatpush.msra.mxu0 %v3513
      %3519 = vmatpush.msra.mxu0 %v3512
      %3520 = vmatpush.msra.mxu0 %v3511
      %3521 = vmatpush.msra.mxu0 %v3510
      %3522 = vmatpush.msra.mxu0 %v3509
      %3523 = vmatpush.msra.mxu0 %v3508
      %3524 = vmatpush.msra.mxu0 %v3507
      %3525 = vmatpush.msra.mxu0 %v3506
      %3526 = vmatpush.msra.mxu0 %v3505
      %3527 = vmatpush.msra.mxu0 %v3504
      %3528 = vmatpush.msra.mxu0 %v3503
      %3529 = vmatpush.msra.mxu0 %v3502
      %3530 = vmatpush.msra.mxu0 %v3501
      %3531 = vmatpush.msra.mxu0 %v3500
      %3532 = vmatmul.f32.gmra.mxu0 %v3467
      %v3533 = vpop.f32.mrf.mxu0
      %v3534 = vadd.f32 0.0, %v3533
      %3535 = vmatmul.f32.gmra.mxu0 %v3468
      %v3536 = vpop.f32.mrf.mxu0
      %v3537 = vadd.f32 0.0, %v3536
      %3538 = vmatmul.f32.gmra.mxu0 %v3469
      %v3539 = vpop.f32.mrf.mxu0
      %v3540 = vadd.f32 0.0, %v3539
      %3541 = vmatmul.f32.gmra.mxu0 %v3470
      %v3542 = vpop.f32.mrf.mxu0
      %v3543 = vadd.f32 0.0, %v3542
      %3544 = vmatmul.f32.gmra.mxu0 %v3471
      %v3545 = vpop.f32.mrf.mxu0
      %v3546 = vadd.f32 0.0, %v3545
      %3547 = vmatmul.f32.gmra.mxu0 %v3472
      %v3548 = vpop.f32.mrf.mxu0
      %v3549 = vadd.f32 0.0, %v3548
      %3550 = vmatmul.f32.gmra.mxu0 %v3473
      %v3551 = vpop.f32.mrf.mxu0
      %v3552 = vadd.f32 0.0, %v3551
      %3553 = vmatmul.f32.gmra.mxu0 %v3474
      %v3554 = vpop.f32.mrf.mxu0
      %v3555 = vadd.f32 0.0, %v3554
      %3556 = vmatmul.f32.gmra.mxu0 %v3475
      %v3557 = vpop.f32.mrf.mxu0
      %v3558 = vadd.f32 0.0, %v3557
      %3559 = vmatmul.f32.gmra.mxu0 %v3476
      %v3560 = vpop.f32.mrf.mxu0
      %v3561 = vadd.f32 0.0, %v3560
      %3562 = vmatmul.f32.gmra.mxu0 %v3477
      %v3563 = vpop.f32.mrf.mxu0
      %v3564 = vadd.f32 0.0, %v3563
      %3565 = vmatmul.f32.gmra.mxu0 %v3478
      %v3566 = vpop.f32.mrf.mxu0
      %v3567 = vadd.f32 0.0, %v3566
      %3568 = vmatmul.f32.gmra.mxu0 %v3479
      %v3569 = vpop.f32.mrf.mxu0
      %v3570 = vadd.f32 0.0, %v3569
      %3571 = vmatmul.f32.gmra.mxu0 %v3480
      %v3572 = vpop.f32.mrf.mxu0
      %v3573 = vadd.f32 0.0, %v3572
      %3574 = vmatmul.f32.gmra.mxu0 %v3481
      %v3575 = vpop.f32.mrf.mxu0
      %v3576 = vadd.f32 0.0, %v3575
      %3577 = vmatmul.f32.gmra.mxu0 %v3482
      %v3578 = vpop.f32.mrf.mxu0
      %v3579 = vadd.f32 0.0, %v3578
      %3580 = vmatmul.f32.gmra.mxu0 %v3483
      %v3581 = vpop.f32.mrf.mxu0
      %v3582 = vadd.f32 0.0, %v3581
      %3583 = vmatmul.f32.gmra.mxu0 %v3484
      %v3584 = vpop.f32.mrf.mxu0
      %v3585 = vadd.f32 0.0, %v3584
      %3586 = vmatmul.f32.gmra.mxu0 %v3485
      %v3587 = vpop.f32.mrf.mxu0
      %v3588 = vadd.f32 0.0, %v3587
      %3589 = vmatmul.f32.gmra.mxu0 %v3486
      %v3590 = vpop.f32.mrf.mxu0
      %v3591 = vadd.f32 0.0, %v3590
      %3592 = vmatmul.f32.gmra.mxu0 %v3487
      %v3593 = vpop.f32.mrf.mxu0
      %v3594 = vadd.f32 0.0, %v3593
      %3595 = vmatmul.f32.gmra.mxu0 %v3488
      %v3596 = vpop.f32.mrf.mxu0
      %v3597 = vadd.f32 0.0, %v3596
      %3598 = vmatmul.f32.gmra.mxu0 %v3489
      %v3599 = vpop.f32.mrf.mxu0
      %v3600 = vadd.f32 0.0, %v3599
      %3601 = vmatmul.f32.gmra.mxu0 %v3490
      %v3602 = vpop.f32.mrf.mxu0
      %v3603 = vadd.f32 0.0, %v3602
      %3604 = vmatmul.f32.gmra.mxu0 %v3491
      %v3605 = vpop.f32.mrf.mxu0
      %v3606 = vadd.f32 0.0, %v3605
      %3607 = vmatmul.f32.gmra.mxu0 %v3492
      %v3608 = vpop.f32.mrf.mxu0
      %v3609 = vadd.f32 0.0, %v3608
      %3610 = vmatmul.f32.gmra.mxu0 %v3493
      %v3611 = vpop.f32.mrf.mxu0
      %v3612 = vadd.f32 0.0, %v3611
      %3613 = vmatmul.f32.gmra.mxu0 %v3494
      %v3614 = vpop.f32.mrf.mxu0
      %v3615 = vadd.f32 0.0, %v3614
      %3616 = vmatmul.f32.gmra.mxu0 %v3495
      %v3617 = vpop.f32.mrf.mxu0
      %v3618 = vadd.f32 0.0, %v3617
      %3619 = vmatmul.f32.gmra.mxu0 %v3496
      %v3620 = vpop.f32.mrf.mxu0
      %v3621 = vadd.f32 0.0, %v3620
      %3622 = vmatmul.f32.gmra.mxu0 %v3497
      %v3623 = vpop.f32.mrf.mxu0
      %v3624 = vadd.f32 0.0, %v3623
      %3625 = vmatmul.f32.gmra.mxu0 %v3498
      %v3626 = vpop.f32.mrf.mxu0
      %v3627 = vadd.f32 0.0, %v3626
      %3628 = vdwg.mxu0
      %v3629 = vadd.f32 %v3435, %v3534
      %v3630 = vadd.f32 %v3436, %v3537
      %v3631 = vadd.f32 %v3437, %v3540
      %v3632 = vadd.f32 %v3438, %v3543
      %v3633 = vadd.f32 %v3439, %v3546
      %v3634 = vadd.f32 %v3440, %v3549
      %v3635 = vadd.f32 %v3441, %v3552
      %v3636 = vadd.f32 %v3442, %v3555
      %v3637 = vadd.f32 %v3443, %v3558
      %v3638 = vadd.f32 %v3444, %v3561
      %v3639 = vadd.f32 %v3445, %v3564
      %v3640 = vadd.f32 %v3446, %v3567
      %v3641 = vadd.f32 %v3447, %v3570
      %v3642 = vadd.f32 %v3448, %v3573
      %v3643 = vadd.f32 %v3449, %v3576
      %v3644 = vadd.f32 %v3450, %v3579
      %v3645 = vadd.f32 %v3451, %v3582
      %v3646 = vadd.f32 %v3452, %v3585
      %v3647 = vadd.f32 %v3453, %v3588
      %v3648 = vadd.f32 %v3454, %v3591
      %v3649 = vadd.f32 %v3455, %v3594
      %v3650 = vadd.f32 %v3456, %v3597
      %v3651 = vadd.f32 %v3457, %v3600
      %v3652 = vadd.f32 %v3458, %v3603
      %v3653 = vadd.f32 %v3459, %v3606
      %v3654 = vadd.f32 %v3460, %v3609
      %v3655 = vadd.f32 %v3461, %v3612
      %v3656 = vadd.f32 %v3462, %v3615
      %v3657 = vadd.f32 %v3463, %v3618
      %v3658 = vadd.f32 %v3464, %v3621
      %v3659 = vadd.f32 %v3465, %v3624
      %v3660 = vadd.f32 %v3466, %v3627
      %v3661 = vld [vmem:[%s1457 + $0x2] sm:$0xff]
      %v3662 = vld [vmem:[%s1457 + $0xa] sm:$0xff]
      %v3663 = vld [vmem:[%s1457 + $0x1a] sm:$0xff]
      %v3664 = vld [vmem:[%s1457 + $0x22] sm:$0xff]
      %v3665 = vld [vmem:[%s1457 + $0x32] sm:$0xff]
      %v3666 = vld [vmem:[%s1457 + $0x3a] sm:$0xff]
      %v3667 = vld [vmem:[%s1457 + $0x4a] sm:$0xff]
      %v3668 = vld [vmem:[%s1457 + $0x52] sm:$0xff]
      %v3669 = vld [vmem:[%s1457 + $0x62] sm:$0xff]
      %v3670 = vld [vmem:[%s1457 + $0x6a] sm:$0xff]
      %v3671 = vld [vmem:[%s1457 + $0x7a] sm:$0xff]
      %v3672 = vld [vmem:[%s1457 + $0x82] sm:$0xff]
      %v3673 = vld [vmem:[%s1457 + $0x92] sm:$0xff]
      %v3674 = vld [vmem:[%s1457 + $0x9a] sm:$0xff]
      %v3675 = vld [vmem:[%s1457 + $0xaa] sm:$0xff]
      %v3676 = vld [vmem:[%s1457 + $0xb2] sm:$0xff]
      %v3677 = vld [vmem:[%s1457 + $0xc2] sm:$0xff]
      %v3678 = vld [vmem:[%s1457 + $0xca] sm:$0xff]
      %v3679 = vld [vmem:[%s1457 + $0xda] sm:$0xff]
      %v3680 = vld [vmem:[%s1457 + $0xe2] sm:$0xff]
      %v3681 = vld [vmem:[%s1457 + $0xf2] sm:$0xff]
      %v3682 = vld [vmem:[%s1457 + $0xfa] sm:$0xff]
      %v3683 = vld [vmem:[%s1457 + $0x10a] sm:$0xff]
      %v3684 = vld [vmem:[%s1457 + $0x112] sm:$0xff]
      %v3685 = vld [vmem:[%s1457 + $0x122] sm:$0xff]
      %v3686 = vld [vmem:[%s1457 + $0x12a] sm:$0xff]
      %v3687 = vld [vmem:[%s1457 + $0x13a] sm:$0xff]
      %v3688 = vld [vmem:[%s1457 + $0x142] sm:$0xff]
      %v3689 = vld [vmem:[%s1457 + $0x152] sm:$0xff]
      %v3690 = vld [vmem:[%s1457 + $0x15a] sm:$0xff]
      %v3691 = vld [vmem:[%s1457 + $0x16a] sm:$0xff]
      %v3692 = vld [vmem:[%s1457 + $0x172] sm:$0xff]
      %s3693 = scalar_lea.vmem %s1, 2176
      %v3694 = vld [vmem:[%s3693] sm:$0xff]
      %v3695 = vld [vmem:[%s3693 + $0x8] sm:$0xff]
      %v3696 = vld [vmem:[%s3693 + $0x10] sm:$0xff]
      %v3697 = vld [vmem:[%s3693 + $0x18] sm:$0xff]
      %v3698 = vld [vmem:[%s3693 + $0x20] sm:$0xff]
      %v3699 = vld [vmem:[%s3693 + $0x28] sm:$0xff]
      %v3700 = vld [vmem:[%s3693 + $0x30] sm:$0xff]
      %v3701 = vld [vmem:[%s3693 + $0x38] sm:$0xff]
      %v3702 = vld [vmem:[%s3693 + $0x40] sm:$0xff]
      %v3703 = vld [vmem:[%s3693 + $0x48] sm:$0xff]
      %v3704 = vld [vmem:[%s3693 + $0x50] sm:$0xff]
      %v3705 = vld [vmem:[%s3693 + $0x58] sm:$0xff]
      %v3706 = vld [vmem:[%s3693 + $0x60] sm:$0xff]
      %v3707 = vld [vmem:[%s3693 + $0x68] sm:$0xff]
      %v3708 = vld [vmem:[%s3693 + $0x70] sm:$0xff]
      %v3709 = vld [vmem:[%s3693 + $0x78] sm:$0xff]
      %3710 = vmatpush.msra.mxu0 %v3709
      %3711 = vmatpush.msra.mxu0 %v3708
      %3712 = vmatpush.msra.mxu0 %v3707
      %3713 = vmatpush.msra.mxu0 %v3706
      %3714 = vmatpush.msra.mxu0 %v3705
      %3715 = vmatpush.msra.mxu0 %v3704
      %3716 = vmatpush.msra.mxu0 %v3703
      %3717 = vmatpush.msra.mxu0 %v3702
      %3718 = vmatpush.msra.mxu0 %v3701
      %3719 = vmatpush.msra.mxu0 %v3700
      %3720 = vmatpush.msra.mxu0 %v3699
      %3721 = vmatpush.msra.mxu0 %v3698
      %3722 = vmatpush.msra.mxu0 %v3697
      %3723 = vmatpush.msra.mxu0 %v3696
      %3724 = vmatpush.msra.mxu0 %v3695
      %3725 = vmatpush.msra.mxu0 %v3694
      %3726 = vmatmul.f32.gmra.mxu0 %v3661
      %v3727 = vpop.f32.mrf.mxu0
      %v3728 = vadd.f32 0.0, %v3727
      %3729 = vmatmul.f32.gmra.mxu0 %v3662
      %v3730 = vpop.f32.mrf.mxu0
      %v3731 = vadd.f32 0.0, %v3730
      %3732 = vmatmul.f32.gmra.mxu0 %v3663
      %v3733 = vpop.f32.mrf.mxu0
      %v3734 = vadd.f32 0.0, %v3733
      %3735 = vmatmul.f32.gmra.mxu0 %v3664
      %v3736 = vpop.f32.mrf.mxu0
      %v3737 = vadd.f32 0.0, %v3736
      %3738 = vmatmul.f32.gmra.mxu0 %v3665
      %v3739 = vpop.f32.mrf.mxu0
      %v3740 = vadd.f32 0.0, %v3739
      %3741 = vmatmul.f32.gmra.mxu0 %v3666
      %v3742 = vpop.f32.mrf.mxu0
      %v3743 = vadd.f32 0.0, %v3742
      %3744 = vmatmul.f32.gmra.mxu0 %v3667
      %v3745 = vpop.f32.mrf.mxu0
      %v3746 = vadd.f32 0.0, %v3745
      %3747 = vmatmul.f32.gmra.mxu0 %v3668
      %v3748 = vpop.f32.mrf.mxu0
      %v3749 = vadd.f32 0.0, %v3748
      %3750 = vmatmul.f32.gmra.mxu0 %v3669
      %v3751 = vpop.f32.mrf.mxu0
      %v3752 = vadd.f32 0.0, %v3751
      %3753 = vmatmul.f32.gmra.mxu0 %v3670
      %v3754 = vpop.f32.mrf.mxu0
      %v3755 = vadd.f32 0.0, %v3754
      %3756 = vmatmul.f32.gmra.mxu0 %v3671
      %v3757 = vpop.f32.mrf.mxu0
      %v3758 = vadd.f32 0.0, %v3757
      %3759 = vmatmul.f32.gmra.mxu0 %v3672
      %v3760 = vpop.f32.mrf.mxu0
      %v3761 = vadd.f32 0.0, %v3760
      %3762 = vmatmul.f32.gmra.mxu0 %v3673
      %v3763 = vpop.f32.mrf.mxu0
      %v3764 = vadd.f32 0.0, %v3763
      %3765 = vmatmul.f32.gmra.mxu0 %v3674
      %v3766 = vpop.f32.mrf.mxu0
      %v3767 = vadd.f32 0.0, %v3766
      %3768 = vmatmul.f32.gmra.mxu0 %v3675
      %v3769 = vpop.f32.mrf.mxu0
      %v3770 = vadd.f32 0.0, %v3769
      %3771 = vmatmul.f32.gmra.mxu0 %v3676
      %v3772 = vpop.f32.mrf.mxu0
      %v3773 = vadd.f32 0.0, %v3772
      %3774 = vmatmul.f32.gmra.mxu0 %v3677
      %v3775 = vpop.f32.mrf.mxu0
      %v3776 = vadd.f32 0.0, %v3775
      %3777 = vmatmul.f32.gmra.mxu0 %v3678
      %v3778 = vpop.f32.mrf.mxu0
      %v3779 = vadd.f32 0.0, %v3778
      %3780 = vmatmul.f32.gmra.mxu0 %v3679
      %v3781 = vpop.f32.mrf.mxu0
      %v3782 = vadd.f32 0.0, %v3781
      %3783 = vmatmul.f32.gmra.mxu0 %v3680
      %v3784 = vpop.f32.mrf.mxu0
      %v3785 = vadd.f32 0.0, %v3784
      %3786 = vmatmul.f32.gmra.mxu0 %v3681
      %v3787 = vpop.f32.mrf.mxu0
      %v3788 = vadd.f32 0.0, %v3787
      %3789 = vmatmul.f32.gmra.mxu0 %v3682
      %v3790 = vpop.f32.mrf.mxu0
      %v3791 = vadd.f32 0.0, %v3790
      %3792 = vmatmul.f32.gmra.mxu0 %v3683
      %v3793 = vpop.f32.mrf.mxu0
      %v3794 = vadd.f32 0.0, %v3793
      %3795 = vmatmul.f32.gmra.mxu0 %v3684
      %v3796 = vpop.f32.mrf.mxu0
      %v3797 = vadd.f32 0.0, %v3796
      %3798 = vmatmul.f32.gmra.mxu0 %v3685
      %v3799 = vpop.f32.mrf.mxu0
      %v3800 = vadd.f32 0.0, %v3799
      %3801 = vmatmul.f32.gmra.mxu0 %v3686
      %v3802 = vpop.f32.mrf.mxu0
      %v3803 = vadd.f32 0.0, %v3802
      %3804 = vmatmul.f32.gmra.mxu0 %v3687
      %v3805 = vpop.f32.mrf.mxu0
      %v3806 = vadd.f32 0.0, %v3805
      %3807 = vmatmul.f32.gmra.mxu0 %v3688
      %v3808 = vpop.f32.mrf.mxu0
      %v3809 = vadd.f32 0.0, %v3808
      %3810 = vmatmul.f32.gmra.mxu0 %v3689
      %v3811 = vpop.f32.mrf.mxu0
      %v3812 = vadd.f32 0.0, %v3811
      %3813 = vmatmul.f32.gmra.mxu0 %v3690
      %v3814 = vpop.f32.mrf.mxu0
      %v3815 = vadd.f32 0.0, %v3814
      %3816 = vmatmul.f32.gmra.mxu0 %v3691
      %v3817 = vpop.f32.mrf.mxu0
      %v3818 = vadd.f32 0.0, %v3817
      %3819 = vmatmul.f32.gmra.mxu0 %v3692
      %v3820 = vpop.f32.mrf.mxu0
      %v3821 = vadd.f32 0.0, %v3820
      %3822 = vdwg.mxu0
      %v3823 = vadd.f32 %v3629, %v3728
      %v3824 = vadd.f32 %v3630, %v3731
      %v3825 = vadd.f32 %v3631, %v3734
      %v3826 = vadd.f32 %v3632, %v3737
      %v3827 = vadd.f32 %v3633, %v3740
      %v3828 = vadd.f32 %v3634, %v3743
      %v3829 = vadd.f32 %v3635, %v3746
      %v3830 = vadd.f32 %v3636, %v3749
      %v3831 = vadd.f32 %v3637, %v3752
      %v3832 = vadd.f32 %v3638, %v3755
      %v3833 = vadd.f32 %v3639, %v3758
      %v3834 = vadd.f32 %v3640, %v3761
      %v3835 = vadd.f32 %v3641, %v3764
      %v3836 = vadd.f32 %v3642, %v3767
      %v3837 = vadd.f32 %v3643, %v3770
      %v3838 = vadd.f32 %v3644, %v3773
      %v3839 = vadd.f32 %v3645, %v3776
      %v3840 = vadd.f32 %v3646, %v3779
      %v3841 = vadd.f32 %v3647, %v3782
      %v3842 = vadd.f32 %v3648, %v3785
      %v3843 = vadd.f32 %v3649, %v3788
      %v3844 = vadd.f32 %v3650, %v3791
      %v3845 = vadd.f32 %v3651, %v3794
      %v3846 = vadd.f32 %v3652, %v3797
      %v3847 = vadd.f32 %v3653, %v3800
      %v3848 = vadd.f32 %v3654, %v3803
      %v3849 = vadd.f32 %v3655, %v3806
      %v3850 = vadd.f32 %v3656, %v3809
      %v3851 = vadd.f32 %v3657, %v3812
      %v3852 = vadd.f32 %v3658, %v3815
      %v3853 = vadd.f32 %v3659, %v3818
      %v3854 = vadd.f32 %v3660, %v3821
      %v3855 = vmax.f32 %v3823, 0.0
      %v3856 = vmax.f32 %v3824, 0.0
      %v3857 = vmax.f32 %v3825, 0.0
      %v3858 = vmax.f32 %v3826, 0.0
      %v3859 = vmax.f32 %v3827, 0.0
      %v3860 = vmax.f32 %v3828, 0.0
      %v3861 = vmax.f32 %v3829, 0.0
      %v3862 = vmax.f32 %v3830, 0.0
      %v3863 = vmax.f32 %v3831, 0.0
      %v3864 = vmax.f32 %v3832, 0.0
      %v3865 = vmax.f32 %v3833, 0.0
      %v3866 = vmax.f32 %v3834, 0.0
      %v3867 = vmax.f32 %v3835, 0.0
      %v3868 = vmax.f32 %v3836, 0.0
      %v3869 = vmax.f32 %v3837, 0.0
      %v3870 = vmax.f32 %v3838, 0.0
      %v3871 = vmax.f32 %v3839, 0.0
      %v3872 = vmax.f32 %v3840, 0.0
      %v3873 = vmax.f32 %v3841, 0.0
      %v3874 = vmax.f32 %v3842, 0.0
      %v3875 = vmax.f32 %v3843, 0.0
      %v3876 = vmax.f32 %v3844, 0.0
      %v3877 = vmax.f32 %v3845, 0.0
      %v3878 = vmax.f32 %v3846, 0.0
      %v3879 = vmax.f32 %v3847, 0.0
      %v3880 = vmax.f32 %v3848, 0.0
      %v3881 = vmax.f32 %v3849, 0.0
      %v3882 = vmax.f32 %v3850, 0.0
      %v3883 = vmax.f32 %v3851, 0.0
      %v3884 = vmax.f32 %v3852, 0.0
      %v3885 = vmax.f32 %v3853, 0.0
      %v3886 = vmax.f32 %v3854, 0.0
      %3887 = vst [vmem:[#allocation3] sm:$0xff] %v3855
      %3888 = vst [vmem:[#allocation3 + $0x8] sm:$0xff] %v3856
      %3889 = vst [vmem:[#allocation3 + $0x10] sm:$0xff] %v3857
      %3890 = vst [vmem:[#allocation3 + $0x18] sm:$0xff] %v3858
      %3891 = vst [vmem:[#allocation3 + $0x20] sm:$0xff] %v3859
      %3892 = vst [vmem:[#allocation3 + $0x28] sm:$0xff] %v3860
      %3893 = vst [vmem:[#allocation3 + $0x30] sm:$0xff] %v3861
      %3894 = vst [vmem:[#allocation3 + $0x38] sm:$0xff] %v3862
      %3895 = vst [vmem:[#allocation3 + $0x40] sm:$0xff] %v3863
      %3896 = vst [vmem:[#allocation3 + $0x48] sm:$0xff] %v3864
      %3897 = vst [vmem:[#allocation3 + $0x50] sm:$0xff] %v3865
      %3898 = vst [vmem:[#allocation3 + $0x58] sm:$0xff] %v3866
      %3899 = vst [vmem:[#allocation3 + $0x60] sm:$0xff] %v3867
      %3900 = vst [vmem:[#allocation3 + $0x68] sm:$0xff] %v3868
      %3901 = vst [vmem:[#allocation3 + $0x70] sm:$0xff] %v3869
      %3902 = vst [vmem:[#allocation3 + $0x78] sm:$0xff] %v3870
      %3903 = vst [vmem:[#allocation3 + $0x80] sm:$0xff] %v3871
      %3904 = vst [vmem:[#allocation3 + $0x88] sm:$0xff] %v3872
      %3905 = vst [vmem:[#allocation3 + $0x90] sm:$0xff] %v3873
      %3906 = vst [vmem:[#allocation3 + $0x98] sm:$0xff] %v3874
      %3907 = vst [vmem:[#allocation3 + $0xa0] sm:$0xff] %v3875
      %3908 = vst [vmem:[#allocation3 + $0xa8] sm:$0xff] %v3876
      %3909 = vst [vmem:[#allocation3 + $0xb0] sm:$0xff] %v3877
      %3910 = vst [vmem:[#allocation3 + $0xb8] sm:$0xff] %v3878
      %3911 = vst [vmem:[#allocation3 + $0xc0] sm:$0xff] %v3879
      %3912 = vst [vmem:[#allocation3 + $0xc8] sm:$0xff] %v3880
      %3913 = vst [vmem:[#allocation3 + $0xd0] sm:$0xff] %v3881
      %3914 = vst [vmem:[#allocation3 + $0xd8] sm:$0xff] %v3882
      %3915 = vst [vmem:[#allocation3 + $0xe0] sm:$0xff] %v3883
      %3916 = vst [vmem:[#allocation3 + $0xe8] sm:$0xff] %v3884
      %3917 = vst [vmem:[#allocation3 + $0xf0] sm:$0xff] %v3885
      %3918 = vst [vmem:[#allocation3 + $0xf8] sm:$0xff] %v3886
      %v3919 = vld [vmem:[#allocation3] ss:$2 sm:$0xff]
      %s3920 = scalar_lea.vmem [#allocation3], 16
      %v3921 = vld [vmem:[%s3920] ss:$2 sm:$0xff]
      %s3922 = scalar_lea.vmem [#allocation3], 32
      %v3923 = vld [vmem:[%s3922] ss:$2 sm:$0xff]
      %s3924 = scalar_lea.vmem [#allocation3], 48
      %v3925 = vld [vmem:[%s3924] ss:$2 sm:$0xff]
      %s3926 = scalar_lea.vmem [#allocation3], 64
      %v3927 = vld [vmem:[%s3926] ss:$2 sm:$0xff]
      %s3928 = scalar_lea.vmem [#allocation3], 80
      %v3929 = vld [vmem:[%s3928] ss:$2 sm:$0xff]
      %s3930 = scalar_lea.vmem [#allocation3], 96
      %v3931 = vld [vmem:[%s3930] ss:$2 sm:$0xff]
      %s3932 = scalar_lea.vmem [#allocation3], 112
      %v3933 = vld [vmem:[%s3932] ss:$2 sm:$0xff]
      %s3934 = scalar_lea.vmem [#allocation3], 128
      %v3935 = vld [vmem:[%s3934] ss:$2 sm:$0xff]
      %s3936 = scalar_lea.vmem [#allocation3], 144
      %v3937 = vld [vmem:[%s3936] ss:$2 sm:$0xff]
      %s3938 = scalar_lea.vmem [#allocation3], 160
      %v3939 = vld [vmem:[%s3938] ss:$2 sm:$0xff]
      %s3940 = scalar_lea.vmem [#allocation3], 176
      %v3941 = vld [vmem:[%s3940] ss:$2 sm:$0xff]
      %s3942 = scalar_lea.vmem [#allocation3], 192
      %v3943 = vld [vmem:[%s3942] ss:$2 sm:$0xff]
      %s3944 = scalar_lea.vmem [#allocation3], 208
      %v3945 = vld [vmem:[%s3944] ss:$2 sm:$0xff]
      %s3946 = scalar_lea.vmem [#allocation3], 224
      %v3947 = vld [vmem:[%s3946] ss:$2 sm:$0xff]
      %s3948 = scalar_lea.vmem [#allocation3], 240
      %v3949 = vld [vmem:[%s3948] ss:$2 sm:$0xff]
      %s3950 = scalar_lea.vmem [#allocation3], 1
      %v3951 = vld [vmem:[%s3950] ss:$2 sm:$0xff]
      %s3952 = scalar_lea.vmem [#allocation3], 17
      %v3953 = vld [vmem:[%s3952] ss:$2 sm:$0xff]
      %s3954 = scalar_lea.vmem [#allocation3], 33
      %v3955 = vld [vmem:[%s3954] ss:$2 sm:$0xff]
      %s3956 = scalar_lea.vmem [#allocation3], 49
      %v3957 = vld [vmem:[%s3956] ss:$2 sm:$0xff]
      %s3958 = scalar_lea.vmem [#allocation3], 65
      %v3959 = vld [vmem:[%s3958] ss:$2 sm:$0xff]
      %s3960 = scalar_lea.vmem [#allocation3], 81
      %v3961 = vld [vmem:[%s3960] ss:$2 sm:$0xff]
      %s3962 = scalar_lea.vmem [#allocation3], 97
      %v3963 = vld [vmem:[%s3962] ss:$2 sm:$0xff]
      %s3964 = scalar_lea.vmem [#allocation3], 113
      %v3965 = vld [vmem:[%s3964] ss:$2 sm:$0xff]
      %s3966 = scalar_lea.vmem [#allocation3], 129
      %v3967 = vld [vmem:[%s3966] ss:$2 sm:$0xff]
      %s3968 = scalar_lea.vmem [#allocation3], 145
      %v3969 = vld [vmem:[%s3968] ss:$2 sm:$0xff]
      %s3970 = scalar_lea.vmem [#allocation3], 161
      %v3971 = vld [vmem:[%s3970] ss:$2 sm:$0xff]
      %s3972 = scalar_lea.vmem [#allocation3], 177
      %v3973 = vld [vmem:[%s3972] ss:$2 sm:$0xff]
      %s3974 = scalar_lea.vmem [#allocation3], 193
      %v3975 = vld [vmem:[%s3974] ss:$2 sm:$0xff]
      %s3976 = scalar_lea.vmem [#allocation3], 209
      %v3977 = vld [vmem:[%s3976] ss:$2 sm:$0xff]
      %s3978 = scalar_lea.vmem [#allocation3], 225
      %v3979 = vld [vmem:[%s3978] ss:$2 sm:$0xff]
      %s3980 = scalar_lea.vmem [#allocation3], 241
      %v3981 = vld [vmem:[%s3980] ss:$2 sm:$0xff]
      %v3982 = vmax.f32 %v3919, %v3951
      %v3983 = vmax.f32 %v3921, %v3953
      %v3984 = vmax.f32 %v3923, %v3955
      %v3985 = vmax.f32 %v3925, %v3957
      %v3986 = vmax.f32 %v3927, %v3959
      %v3987 = vmax.f32 %v3929, %v3961
      %v3988 = vmax.f32 %v3931, %v3963
      %v3989 = vmax.f32 %v3933, %v3965
      %v3990 = vmax.f32 %v3935, %v3967
      %v3991 = vmax.f32 %v3937, %v3969
      %v3992 = vmax.f32 %v3939, %v3971
      %v3993 = vmax.f32 %v3941, %v3973
      %v3994 = vmax.f32 %v3943, %v3975
      %v3995 = vmax.f32 %v3945, %v3977
      %v3996 = vmax.f32 %v3947, %v3979
      %v3997 = vmax.f32 %v3949, %v3981
      %v3998 = vmax.f32 %v3982, %v3983
      %v3999 = vmax.f32 %v3984, %v3985
      %v4000 = vmax.f32 %v3986, %v3987
      %v4001 = vmax.f32 %v3988, %v3989
      %v4002 = vmax.f32 %v3990, %v3991
      %v4003 = vmax.f32 %v3992, %v3993
      %v4004 = vmax.f32 %v3994, %v3995
      %v4005 = vmax.f32 %v3996, %v3997
      %4006 = vst [vmem:[%s170] sm:$0xff] %v3998
      %4007 = vst [vmem:[%s170 + $0x8] sm:$0xff] %v3999
      %4008 = vst [vmem:[%s170 + $0x10] sm:$0xff] %v4000
      %4009 = vst [vmem:[%s170 + $0x18] sm:$0xff] %v4001
      %4010 = vst [vmem:[%s170 + $0x20] sm:$0xff] %v4002
      %4011 = vst [vmem:[%s170 + $0x28] sm:$0xff] %v4003
      %4012 = vst [vmem:[%s170 + $0x30] sm:$0xff] %v4004
      %4013 = vst [vmem:[%s170 + $0x38] sm:$0xff] %v4005
      %p4014 = scmp.lt.s32.totalorder %s14, 1
      %s4015 = scalar_select %p4014, %s14, 1
      %s4016 = smul.addr %s4015, 8
      %s4017 = smul.addr %s4016, 8
      %s4018 = scalar_lea.vmem %s3, %s4017
      // Predicated region
      $region33: #{my_vgg_block.1} parent=31 // pred_check
        %p4019 = pneg %p100
      $region34: #{my_vgg_block.1} parent=31 // pred_check_branch
        %4021 = sbr.rel (%p4019) target = $region36
      $region35: #{my_vgg_block.1} parent=31 // pred_region
        _
      $region36: #{my_vgg_block.1} parent=31 // pred_fallthru
        _
    $region32: #{my_vgg_block.1} parent=5 // pred_fallthru
      _
    %p4022 = scmp.le.s32.totalorder 2, %s9
    // Predicated region
    $region37: #{my_vgg_block.1} parent=5 // pred_check
      %p4023 = pneg %p4022
    $region38: #{my_vgg_block.1} parent=5 // pred_check_branch
      %4025 = sbr.rel (%p4023) target = $region40
    $region39: #{my_vgg_block.1} parent=5 // pred_region
      %s4026 = ssub.s32 %s9, 2
      // Predicated region
      $region41: #{my_vgg_block.1} parent=39 // pred_check
        %p4027 = pneg %p106
      $region42: #{my_vgg_block.1} parent=39 // pred_check_branch
        %4029 = sbr.rel (%p4027) target = $region44
      $region43: #{my_vgg_block.1} parent=39 // pred_region
        %p4030 = scmp.lt.s32.totalorder %s15, 1
        %s4031 = scalar_select %p4030, %s15, 1
        %s4032 = smul.addr %s4031, 8
        %s4033 = smul.addr %s4032, 8
        %s4034 = scalar_lea.vmem %s3, %s4033
      $region44: #{my_vgg_block.1} parent=39 // pred_fallthru
        _
    $region40: #{my_vgg_block.1} parent=5 // pred_fallthru
      _
  $region6: #{my_vgg_block.1} parent=0 // loop_footer
    %s13 = sadd.s32 1, %s9
  $region7: #{my_vgg_block.1} parent=0 // loop_footer_branch
    %8 = sbr.rel target = $region3
  $region8: #{my_vgg_block.1} parent=0 // loop_exit
    _

</llo_original>
